<compile_context>
chip_gen: v7x
topology: tpu7x:2x2x1
jax: 0.10.0
libtpu: 0.0.40
codegen_flags: <defaults>
</compile_context>

<pallas_src>
import functools
import math

import jax
import jax.numpy as jnp
from jax.experimental import pallas as pl
from jax.experimental.pallas import tpu as pltpu

# MXU operand dtype (accumulation is always f32).  bf16 on all TPU generations per
# the perf review; set to jnp.float32 to reproduce PyTorch fp32 matmul numerics.
MATMUL_DTYPE = jnp.bfloat16
LN_EPS = 1e-5


# ----------------------------------------------------------------------------
# in-kernel helpers
# ----------------------------------------------------------------------------

def _gelu_tanh(x):
    # TODO(synk): PyTorch nn.GELU() defaults to exact erf; the tanh approximation
    # (EUP transcendental, not a VALU polynomial chain) differs by ~1e-3 max abs.
    c = math.sqrt(2.0 / math.pi)
    return 0.5 * x * (1.0 + jnp.tanh(c * (x + 0.044715 * x * x * x)))


def _layernorm_f32(x, g, b):
    mean = jnp.mean(x, axis=-1, keepdims=True)
    var = jnp.mean(jnp.square(x - mean), axis=-1, keepdims=True)
    return (x - mean) * jax.lax.rsqrt(var + LN_EPS) * g + b


# ----------------------------------------------------------------------------
# device-aware knobs
# ----------------------------------------------------------------------------

def _tpu_generation():
    try:
        kind = jax.devices()[0].device_kind.lower()
    except Exception:
        return 0
    for gen in (7, 6, 5, 4, 3, 2):
        if f"v{gen}" in kind:
            return gen
    return 0


def _pick_block(n, target_steps, row_align=1):
    """Largest block dividing `n` that yields >= target_steps grid steps (block a
    multiple of row_align); falls back to one whole-array block (grid=1)."""
    if target_steps > 1:
        for steps in range(target_steps, n + 1):
            if n % steps == 0 and (n // steps) % row_align == 0:
                return n // steps
    return n


# ----------------------------------------------------------------------------
# Pallas kernels (2 fused kernels for the whole block)
# ----------------------------------------------------------------------------

def _ln_linear_kernel(x_ref, g_ref, b_ref, w_ref, bw_ref, o_ref, *, mm_dtype):
    """K1: LayerNorm + one wide linear (packed [qkv | shortcut-proj] weight)."""
    f32 = jnp.float32
    x = x_ref[...].astype(f32)
    xn = _layernorm_f32(x, g_ref[...].astype(f32), b_ref[...].astype(f32))
    y = jnp.dot(xn.astype(mm_dtype), w_ref[...].astype(mm_dtype),
                preferred_element_type=f32)
    o_ref[...] = (y + bw_ref[...].astype(f32)).astype(o_ref.dtype)


def _attn_proj_mlp_kernel(q_ref, k_ref, v_ref, sc_ref, pw_ref, pb_ref,
                          g2_ref, gb2_ref, w1_ref, b1_ref, w2_ref, b2_ref,
                          o_ref, *, num_heads, head_dim, taps, lq, g_win,
                          scale, mm_dtype):
    """K2: q-pool + attention + out-proj + residual + norm2 + MLP + residual.

    q/k/v blocks: (num_heads, g_win, L, Dh); window tokens are pooling-tap-major,
    so the 2x2 MaxPool on q is a max over `taps` contiguous sublane slices.
    sc/out blocks: (g_win*lq, C) window-major, pooled-raster order per window.
    """
    f32 = jnp.float32
    gh = num_heads * g_win
    l_full = taps * lq
    rows = g_win * lq

    # q max-pool folded in (identity when taps == 1), scale folded into q.
    q_full = q_ref[...].reshape(gh, l_full, head_dim).astype(f32)
    q = q_full[:, 0:lq, :]
    for t in range(1, taps):
        q = jnp.maximum(q, q_full[:, t * lq:(t + 1) * lq, :])
    q = (q * scale).astype(mm_dtype)

    k = k_ref[...].reshape(gh, l_full, head_dim).astype(mm_dtype)
    v = v_ref[...].reshape(gh, l_full, head_dim).astype(mm_dtype)

    # attention over all (window, head) pairs in one batched dot_general
    s = jax.lax.dot_general(q, k, (((2,), (2,)), ((0,), (0,))),
                            preferred_element_type=f32)          # (gh, lq, L)
    m = jnp.max(s, axis=-1, keepdims=True)
    p = jnp.exp(s - m)
    denom = jnp.sum(p, axis=-1, keepdims=True)
    o = jax.lax.dot_general(p.astype(mm_dtype), v, (((2,), (1,)), ((0,), (0,))),
                            preferred_element_type=f32)          # (gh, lq, Dh)
    o = o * pl.reciprocal(denom, approx=True)   # EUP slot; ~1e-3 rel vs exact div

    # output projection: concat_h(o_h) @ Wp == sum_h o_h @ Wp[h]  (no lane concat)
    o_heads = o.reshape(num_heads, rows, head_dim)   # leading-dim regroup only
    x1 = pb_ref[...].astype(f32) + sc_ref[...].astype(f32)        # bias + shortcut
    for h in range(num_heads):
        x1 = x1 + jnp.dot(o_heads[h].astype(mm_dtype), pw_ref[h].astype(mm_dtype),
                          preferred_element_type=f32)

    # norm2 + MLP (fc1 -> GELU -> fc2) + residual, all per-token on window rows
    xn = _layernorm_f32(x1, g2_ref[...].astype(f32), gb2_ref[...].astype(f32))
    hmid = jnp.dot(xn.astype(mm_dtype), w1_ref[...].astype(mm_dtype),
                   preferred_element_type=f32)
    hmid = _gelu_tanh(hmid + b1_ref[...].astype(f32))
    y = jnp.dot(hmid.astype(mm_dtype), w2_ref[...].astype(mm_dtype),
                preferred_element_type=f32)
    y = y + b2_ref[...].astype(f32)
    o_ref[...] = (x1 + y).astype(o_ref.dtype)


# ----------------------------------------------------------------------------
# pallas_call wrappers
# ----------------------------------------------------------------------------

def ln_linear(x2d, g, b, w, bw, *, out_dtype, steps_hint, mm_dtype):
    m, k = x2d.shape
    n = w.shape[1]
    tm = _pick_block(m, steps_hint, row_align=8)
    cost = pl.CostEstimate(
        flops=int(2 * m * k * n + 8 * m * k),
        transcendentals=int(m),
        bytes_accessed=int(x2d.size * x2d.dtype.itemsize
                           + (w.size + bw.size + 2 * k) * 4
                           + m * n * jnp.dtype(out_dtype).itemsize))
    return pl.pallas_call(
        functools.partial(_ln_linear_kernel, mm_dtype=mm_dtype),
        out_shape=jax.ShapeDtypeStruct((m, n), out_dtype),
        grid=(m // tm,),
        in_specs=[pl.BlockSpec((tm, k), lambda i: (i, 0)),
                  pl.BlockSpec((1, k), lambda i: (0, 0)),
                  pl.BlockSpec((1, k), lambda i: (0, 0)),
                  pl.BlockSpec((k, n), lambda i: (0, 0)),
                  pl.BlockSpec((1, n), lambda i: (0, 0))],
        out_specs=pl.BlockSpec((tm, n), lambda i: (i, 0)),
        compiler_params=pltpu.CompilerParams(dimension_semantics=("parallel",)),
        cost_estimate=cost,
    )(x2d, g.reshape(1, k), b.reshape(1, k), w, bw.reshape(1, n))


def attn_proj_mlp(q_win, k_win, v_win, sc_win, pw, pb, g2, gb2, w1, b1, w2, b2,
                  *, num_heads, head_dim, taps, lq, steps_hint, mm_dtype,
                  out_dtype):
    n_h, nw_total, l_full, dh = q_win.shape
    c = num_heads * head_dim
    hidden = w1.shape[1]
    rows_total = nw_total * lq
    g = _pick_block(nw_total, steps_hint)
    scale = 1.0 / math.sqrt(head_dim)

    kern = functools.partial(
        _attn_proj_mlp_kernel, num_heads=num_heads, head_dim=head_dim,
        taps=taps, lq=lq, g_win=g, scale=scale, mm_dtype=mm_dtype)

    act_bytes = q_win.dtype.itemsize
    cost = pl.CostEstimate(
        flops=int(4 * nw_total * num_heads * lq * l_full * dh
                  + 2 * rows_total * c * c + 4 * rows_total * c * hidden),
        transcendentals=int(nw_total * num_heads * lq * l_full
                            + rows_total * hidden + 2 * rows_total),
        bytes_accessed=int(3 * q_win.size * act_bytes + 2 * rows_total * c * 4
                           + (pw.size + w1.size + w2.size) * 4))

    qkv_spec = pl.BlockSpec((n_h, g, l_full, dh), lambda i: (0, i, 0, 0))
    tok_spec = pl.BlockSpec((g * lq, c), lambda i: (i, 0))

    return pl.pallas_call(
        kern,
        out_shape=jax.ShapeDtypeStruct((rows_total, c), out_dtype),
        grid=(nw_total // g,),
        in_specs=[qkv_spec, qkv_spec, qkv_spec, tok_spec,
                  pl.BlockSpec((num_heads, head_dim, c), lambda i: (0, 0, 0)),
                  pl.BlockSpec((1, c), lambda i: (0, 0)),
                  pl.BlockSpec((1, c), lambda i: (0, 0)),
                  pl.BlockSpec((1, c), lambda i: (0, 0)),
                  pl.BlockSpec((c, hidden), lambda i: (0, 0)),
                  pl.BlockSpec((1, hidden), lambda i: (0, 0)),
                  pl.BlockSpec((hidden, c), lambda i: (0, 0)),
                  pl.BlockSpec((1, c), lambda i: (0, 0))],
        out_specs=tok_spec,
        input_output_aliases={3: 0},   # shortcut buffer is reused as the output
        compiler_params=pltpu.CompilerParams(dimension_semantics=("parallel",)),
        cost_estimate=cost,
    )(q_win, k_win, v_win, sc_win, pw, pb.reshape(1, c), g2.reshape(1, c),
      gb2.reshape(1, c), w1, b1.reshape(1, hidden), w2, b2.reshape(1, c))


# ----------------------------------------------------------------------------
# Pure-JAX data-layout glue (window partition / unpartition, shortcut pool)
# ----------------------------------------------------------------------------

def _partition_qkv_windows(qkv_img6, wsh, wsw, pool_stride):
    """(B, Hp, Wp, 3, nH, Dh) -> (3, nH, NW, wsh*wsw, Dh).

    With pool_stride, tokens inside each window are ordered pooling-tap-major
    (tap_r, tap_c, R, C) so the q MaxPool is a max over contiguous row slices
    inside K2 (keys/values are order-invariant; pooled queries come out in
    raster order).  Without pooling, standard raster order.
    """
    b, hp, wp_, three, n_h, dh = qkv_img6.shape
    nwh, nww = hp // wsh, wp_ // wsw
    if pool_stride is None:
        x = qkv_img6.reshape(b, nwh, wsh, nww, wsw, three, n_h, dh)
        x = x.transpose(5, 6, 0, 1, 3, 2, 4, 7)
        return x.reshape(three, n_h, b * nwh * nww, wsh * wsw, dh)
    sh, sw = pool_stride
    rh, rw = wsh // sh, wsw // sw
    x = qkv_img6.reshape(b, nwh, rh, sh, nww, rw, sw, three, n_h, dh)
    x = x.transpose(7, 8, 0, 1, 4, 3, 6, 2, 5, 9)
    return x.reshape(three, n_h, b * nwh * nww, sh * sw * rh * rw, dh)


def _partition_tokens(img, th, tw):
    """(B, H, W, C) -> (B*nh*nw*th*tw, C), window-major, raster within window."""
    b, hh, ww, c = img.shape
    nh_, nw_ = hh // th, ww // tw
    x = img.reshape(b, nh_, th, nw_, tw, c)
    x = x.transpose(0, 1, 3, 2, 4, 5)
    return x.reshape(b * nh_ * nw_ * th * tw, c)


def _unpartition_tokens(flat, b, nwh, nww, th, tw, hout, wout):
    c = flat.shape[-1]
    x = flat.reshape(b, nwh, nww, th, tw, c)
    x = x.transpose(0, 1, 3, 2, 4, 5).reshape(b, nwh * th, nww * tw, c)
    return x[:, :hout, :wout, :]


def _maxpool_xla(x, stride):
    # Shortcut MaxPool2d: one fused XLA reshape+reduce (cheaper in HBM bytes than
    # feeding the unpooled tensor through the Pallas kernel).
    sh, sw = stride
    n, h, w, c = x.shape
    ho, wo = h // sh, w // sw
    x = x[:, :ho * sh, :wo * sw, :]
    x = x.reshape(n, ho, sh, wo, sw, c)
    return jnp.max(x, axis=(2, 4))


# ----------------------------------------------------------------------------
# MultiScaleBlock forward
# ----------------------------------------------------------------------------

def multi_scale_block(x, params, *, dim, dim_out, num_heads, q_stride,
                      window_size):
    b, h0, w0, _ = x.shape
    has_proj = dim != dim_out
    has_pool = q_stride is not None
    # q_stride without a dim change is shape-inconsistent in the reference module.
    assert not (has_pool and not has_proj)
    head_dim = dim_out // num_heads

    gen = _tpu_generation()
    steps_hint = 4 if gen >= 7 else 1                      # 2 steps/TC on v7x; grid=1 on v5e/v6e
    act_dtype = jnp.bfloat16 if gen >= 6 else jnp.float32  # inter-kernel activations
    mm_dtype = MATMUL_DTYPE

    # --- K1: norm1 + packed [qkv | shortcut-proj] linear, one 256-lane store ---
    w_all, b_all = params["qkv_w"], params["qkv_b"]
    if has_proj:
        w_all = jnp.concatenate([w_all, params["proj_w"]], axis=1)
        b_all = jnp.concatenate([b_all, params["proj_b"]], axis=0)
    y = ln_linear(x.reshape(-1, dim), params["norm1_g"], params["norm1_b"],
                  w_all, b_all, out_dtype=act_dtype, steps_hint=steps_hint,
                  mm_dtype=mm_dtype)
    qkv_flat = y[:, :3 * dim_out]
    if has_proj:
        sc_img = y[:, 3 * dim_out:].reshape(b, h0, w0, dim_out)
    else:
        sc_img = x
    if has_pool:
        sc_img = _maxpool_xla(sc_img, q_stride)
    hout, wout = sc_img.shape[1], sc_img.shape[2]

    # --- window geometry -----------------------------------------------------
    if window_size > 0:
        wsh = wsw = window_size
        pad_h = (window_size - h0 % window_size) % window_size
        pad_w = (window_size - w0 % window_size) % window_size
    else:
        wsh, wsw = h0, w0            # global attention: one window per batch
        pad_h = pad_w = 0
    hp, wp_ = h0 + pad_h, w0 + pad_w

    qkv_img = qkv_flat.reshape(b, h0, w0, 3 * dim_out)
    if pad_h or pad_w:
        # Reference pads the *normalized* activations with zeros before the qkv
        # linear; qkv(0) == qkv_bias, so padded positions simply hold the bias.
        canvas = jnp.broadcast_to(
            params["qkv_b"].astype(qkv_img.dtype).reshape(1, 1, 1, 3 * dim_out),
            (b, hp, wp_, 3 * dim_out))
        qkv_img = jax.lax.dynamic_update_slice(canvas, qkv_img, (0, 0, 0, 0))

    if has_pool:
        sh, sw = q_stride
        assert wsh % sh == 0 and wsw % sw == 0
        taps, th, tw = sh * sw, wsh // sh, wsw // sw
    else:
        taps, th, tw = 1, wsh, wsw
    lq = th * tw
    # TODO(synk): lq not a multiple of 8 would need padded windows inside K2.
    assert lq % 8 == 0
    nwh, nww = hp // wsh, wp_ // wsw

    # --- window partition (head split + tap-major token order, pure XLA glue) -
    qkv_win = _partition_qkv_windows(
        qkv_img.reshape(b, hp, wp_, 3, num_heads, head_dim),
        wsh, wsw, q_stride if has_pool else None)
    q_win, k_win, v_win = qkv_win[0], qkv_win[1], qkv_win[2]

    sc_h, sc_w = nwh * th, nww * tw
    if sc_h != hout or sc_w != wout:
        sc_img = jnp.pad(sc_img, ((0, 0), (0, sc_h - hout), (0, sc_w - wout), (0, 0)))
    sc_win = _partition_tokens(sc_img, th, tw).astype(x.dtype)

    # --- K2: attention + out-proj + residual + norm2 + MLP + residual ---------
    out_flat = attn_proj_mlp(
        q_win, k_win, v_win, sc_win,
        params["attn_proj_w"].reshape(num_heads, head_dim, dim_out),
        params["attn_proj_b"], params["norm2_g"], params["norm2_b"],
        params["mlp_w1"], params["mlp_b1"], params["mlp_w2"], params["mlp_b2"],
        num_heads=num_heads, head_dim=head_dim, taps=taps, lq=lq,
        steps_hint=steps_hint, mm_dtype=mm_dtype, out_dtype=x.dtype)

    return _unpartition_tokens(out_flat, b, nwh, nww, th, tw, hout, wout)


# ----------------------------------------------------------------------------
# Deterministic parameter init (weights stored (in, out); y = x @ W + b, which
# matches PyTorch's x @ W.T + b with W stored (out, in)).
# ----------------------------------------------------------------------------

def init_params(key, dim, dim_out, hidden):
    ks = jax.random.split(key, 10)
    n = lambda k, shape: (0.02 * jax.random.normal(k, shape)).astype(jnp.float32)
    return {
        "norm1_g": jnp.ones((dim,), jnp.float32),
        "norm1_b": jnp.zeros((dim,), jnp.float32),
        "proj_w": n(ks[0], (dim, dim_out)),
        "proj_b": n(ks[1], (dim_out,)),
        "qkv_w": n(ks[2], (dim, dim_out * 3)),
        "qkv_b": n(ks[3], (dim_out * 3,)),
        "attn_proj_w": n(ks[4], (dim_out, dim_out)),
        "attn_proj_b": n(ks[5], (dim_out,)),
        "norm2_g": jnp.ones((dim_out,), jnp.float32),
        "norm2_b": jnp.zeros((dim_out,), jnp.float32),
        "mlp_w1": n(ks[6], (dim_out, hidden)),
        "mlp_b1": n(ks[7], (hidden,)),
        "mlp_w2": n(ks[8], (hidden, dim_out)),
        "mlp_b2": n(ks[9], (dim_out,)),
    }


if __name__ == "__main__":
    dim, dim_out, num_heads = 32, 64, 2
    mlp_ratio = 4.0
    q_stride = (2, 2)
    window_size = 8
    b, h, w = 2, 16, 16

    key = jax.random.PRNGKey(0)
    kx, kp = jax.random.split(key)
    x = jax.random.normal(kx, (b, h, w, dim), dtype=jnp.float32)
    params = init_params(kp, dim, dim_out, int(dim_out * mlp_ratio))

    fwd = jax.jit(functools.partial(
        multi_scale_block, dim=dim, dim_out=dim_out, num_heads=num_heads,
        q_stride=q_stride, window_size=window_size))

    out = jax.block_until_ready(fwd(x, params))
    assert out.shape == (b, h // q_stride[0], w // q_stride[1], dim_out), out.shape
    assert bool(jnp.all(jnp.isfinite(out)))
    print("KERNEL_OK")
</pallas_src>

<mosaic_0001>
module attributes {stable_mosaic.version = 11 : i64} {
  func.func @_ln_linear_kernel(%arg0: i32, %arg1: memref<512x32xf32, #tpu.memory_space<vmem>>, %arg2: memref<1x32xf32, #tpu.memory_space<vmem>>, %arg3: memref<1x32xf32, #tpu.memory_space<vmem>>, %arg4: memref<32x256xf32, #tpu.memory_space<vmem>>, %arg5: memref<1x256xf32, #tpu.memory_space<vmem>>, %arg6: memref<512x256xf32, #tpu.memory_space<vmem>>) attributes {dimension_semantics = [#tpu.dimension_semantics<parallel>], iteration_bounds = array<i64: 1>, scalar_prefetch = 0 : i64, scratch_operands = 0 : i64, tpu.core_type = #tpu.core_type<tc>, window_params = [{transform_indices = @transform_0, window_bounds = array<i64: 512, 32>}, {pipeline_mode = #tpu.pipeline_mode<synchronous>, transform_indices = @transform_1, window_bounds = array<i64: 1, 32>}, {pipeline_mode = #tpu.pipeline_mode<synchronous>, transform_indices = @transform_2, window_bounds = array<i64: 1, 32>}, {pipeline_mode = #tpu.pipeline_mode<synchronous>, transform_indices = @transform_3, window_bounds = array<i64: 32, 256>}, {pipeline_mode = #tpu.pipeline_mode<synchronous>, transform_indices = @transform_4, window_bounds = array<i64: 1, 256>}, {transform_indices = @transform_5, window_bounds = array<i64: 512, 256>}]} {
    %c0 = arith.constant 0 : index
    %c0_0 = arith.constant 0 : index
    %0 = vector.load %arg1[%c0, %c0_0] : memref<512x32xf32, #tpu.memory_space<vmem>>, vector<512x32xf32>
    %c0_1 = arith.constant 0 : index
    %c0_2 = arith.constant 0 : index
    %1 = vector.load %arg2[%c0_1, %c0_2] : memref<1x32xf32, #tpu.memory_space<vmem>>, vector<1x32xf32>
    %c0_3 = arith.constant 0 : index
    %c0_4 = arith.constant 0 : index
    %2 = vector.load %arg3[%c0_3, %c0_4] : memref<1x32xf32, #tpu.memory_space<vmem>>, vector<1x32xf32>
    %cst = arith.constant dense<0.000000e+00> : vector<512xf32>
    %3 = vector.multi_reduction <add>, %0, %cst [1] : vector<512x32xf32> to vector<512xf32>
    %4 = vector.shape_cast %3 : vector<512xf32> to vector<512x1xf32>
    %cst_5 = arith.constant 3.200000e+01 : f32
    %5 = vector.broadcast %cst_5 : f32 to vector<512x1xf32>
    %6 = arith.divf %4, %5 : vector<512x1xf32>
    %7 = vector.broadcast %6 : vector<512x1xf32> to vector<512x32xf32>
    %8 = arith.subf %0, %7 : vector<512x32xf32>
    %9 = arith.mulf %8, %8 : vector<512x32xf32>
    %cst_6 = arith.constant dense<0.000000e+00> : vector<512xf32>
    %10 = vector.multi_reduction <add>, %9, %cst_6 [1] : vector<512x32xf32> to vector<512xf32>
    %11 = vector.shape_cast %10 : vector<512xf32> to vector<512x1xf32>
    %cst_7 = arith.constant 3.200000e+01 : f32
    %12 = vector.broadcast %cst_7 : f32 to vector<512x1xf32>
    %13 = arith.divf %11, %12 : vector<512x1xf32>
    %14 = vector.broadcast %6 : vector<512x1xf32> to vector<512x32xf32>
    %15 = arith.subf %0, %14 : vector<512x32xf32>
    %cst_8 = arith.constant 9.99999974E-6 : f32
    %16 = vector.broadcast %cst_8 : f32 to vector<512x1xf32>
    %17 = arith.addf %13, %16 : vector<512x1xf32>
    %18 = math.rsqrt %17 : vector<512x1xf32>
    %19 = vector.broadcast %18 : vector<512x1xf32> to vector<512x32xf32>
    %20 = arith.mulf %15, %19 : vector<512x32xf32>
    %21 = vector.broadcast %1 : vector<1x32xf32> to vector<512x32xf32>
    %22 = arith.mulf %20, %21 : vector<512x32xf32>
    %23 = vector.broadcast %2 : vector<1x32xf32> to vector<512x32xf32>
    %24 = arith.addf %22, %23 : vector<512x32xf32>
    %25 = arith.truncf %24 : vector<512x32xf32> to vector<512x32xbf16>
    %c0_9 = arith.constant 0 : index
    %c0_10 = arith.constant 0 : index
    %26 = vector.load %arg4[%c0_9, %c0_10] : memref<32x256xf32, #tpu.memory_space<vmem>>, vector<32x256xf32>
    %27 = arith.truncf %26 : vector<32x256xf32> to vector<32x256xbf16>
    %cst_11 = arith.constant dense<0.000000e+00> : vector<512x256xf32>
    %28 = tpu.matmul %25, %27, %cst_11 {dimension_numbers = #tpu.dot_dimension_numbers<[1], [0], [0], [1], [0, 0, 1, 1], [], []>} : vector<512x32xbf16>, vector<32x256xbf16>, vector<512x256xf32> -> vector<512x256xf32>
    %c0_12 = arith.constant 0 : index
    %c0_13 = arith.constant 0 : index
    %29 = vector.load %arg5[%c0_12, %c0_13] : memref<1x256xf32, #tpu.memory_space<vmem>>, vector<1x256xf32>
    %30 = vector.broadcast %29 : vector<1x256xf32> to vector<512x256xf32>
    %31 = arith.addf %28, %30 : vector<512x256xf32>
    %c0_14 = arith.constant 0 : index
    %c0_15 = arith.constant 0 : index
    %32 = vector.load %arg6[%c0_14, %c0_15] : memref<512x256xf32, #tpu.memory_space<vmem>>, vector<512x256xf32>
    tpu.vector_store %arg6[%c0_14, %c0_15], %31 {strides = array<i32>} : memref<512x256xf32, #tpu.memory_space<vmem>>, vector<512x256xf32>,
    return
  }
  func.func @transform_0(%arg0: i32) -> (i32, i32) {
    %c0_i32 = arith.constant 0 : i32
    %c0_i32_0 = arith.constant 0 : i32
    return %arg0, %c0_i32 : i32, i32
  }
  func.func @transform_1(%arg0: i32) -> (i32, i32) {
    %c0_i32 = arith.constant 0 : i32
    %c0_i32_0 = arith.constant 0 : i32
    %c0_i32_1 = arith.constant 0 : i32
    return %c0_i32, %c0_i32_0 : i32, i32
  }
  func.func @transform_2(%arg0: i32) -> (i32, i32) {
    %c0_i32 = arith.constant 0 : i32
    %c0_i32_0 = arith.constant 0 : i32
    %c0_i32_1 = arith.constant 0 : i32
    return %c0_i32, %c0_i32_0 : i32, i32
  }
  func.func @transform_3(%arg0: i32) -> (i32, i32) {
    %c0_i32 = arith.constant 0 : i32
    %c0_i32_0 = arith.constant 0 : i32
    %c0_i32_1 = arith.constant 0 : i32
    return %c0_i32, %c0_i32_0 : i32, i32
  }
  func.func @transform_4(%arg0: i32) -> (i32, i32) {
    %c0_i32 = arith.constant 0 : i32
    %c0_i32_0 = arith.constant 0 : i32
    %c0_i32_1 = arith.constant 0 : i32
    return %c0_i32, %c0_i32_0 : i32, i32
  }
  func.func @transform_5(%arg0: i32) -> (i32, i32) {
    %c0_i32 = arith.constant 0 : i32
    %c0_i32_0 = arith.constant 0 : i32
    return %arg0, %c0_i32 : i32, i32
  }
}

module attributes {stable_mosaic.version = 11 : i64} {
  func.func @_attn_proj_mlp_kernel(%arg0: i32, %arg1: memref<2x8x64x32xf32, #tpu.memory_space<vmem>>, %arg2: memref<2x8x64x32xf32, #tpu.memory_space<vmem>>, %arg3: memref<2x8x64x32xf32, #tpu.memory_space<vmem>>, %arg4: memref<128x64xf32, #tpu.memory_space<vmem>>, %arg5: memref<2x32x64xf32, #tpu.memory_space<vmem>>, %arg6: memref<1x64xf32, #tpu.memory_space<vmem>>, %arg7: memref<1x64xf32, #tpu.memory_space<vmem>>, %arg8: memref<1x64xf32, #tpu.memory_space<vmem>>, %arg9: memref<64x256xf32, #tpu.memory_space<vmem>>, %arg10: memref<1x256xf32, #tpu.memory_space<vmem>>, %arg11: memref<256x64xf32, #tpu.memory_space<vmem>>, %arg12: memref<1x64xf32, #tpu.memory_space<vmem>>, %arg13: memref<128x64xf32, #tpu.memory_space<vmem>>) attributes {dimension_semantics = [#tpu.dimension_semantics<parallel>], iteration_bounds = array<i64: 1>, scalar_prefetch = 0 : i64, scratch_operands = 0 : i64, tpu.core_type = #tpu.core_type<tc>, window_params = [{transform_indices = @transform_0, window_bounds = array<i64: 2, 8, 64, 32>}, {transform_indices = @transform_1, window_bounds = array<i64: 2, 8, 64, 32>}, {transform_indices = @transform_2, window_bounds = array<i64: 2, 8, 64, 32>}, {transform_indices = @transform_3, window_bounds = array<i64: 128, 64>}, {pipeline_mode = #tpu.pipeline_mode<synchronous>, transform_indices = @transform_4, window_bounds = array<i64: 2, 32, 64>}, {pipeline_mode = #tpu.pipeline_mode<synchronous>, transform_indices = @transform_5, window_bounds = array<i64: 1, 64>}, {pipeline_mode = #tpu.pipeline_mode<synchronous>, transform_indices = @transform_6, window_bounds = array<i64: 1, 64>}, {pipeline_mode = #tpu.pipeline_mode<synchronous>, transform_indices = @transform_7, window_bounds = array<i64: 1, 64>}, {pipeline_mode = #tpu.pipeline_mode<synchronous>, transform_indices = @transform_8, window_bounds = array<i64: 64, 256>}, {pipeline_mode = #tpu.pipeline_mode<synchronous>, transform_indices = @transform_9, window_bounds = array<i64: 1, 256>}, {pipeline_mode = #tpu.pipeline_mode<synchronous>, transform_indices = @transform_10, window_bounds = array<i64: 256, 64>}, {pipeline_mode = #tpu.pipeline_mode<synchronous>, transform_indices = @transform_11, window_bounds = array<i64: 1, 64>}, {transform_indices = @transform_12, window_bounds = array<i64: 128, 64>}]} {
    %c0 = arith.constant 0 : index
    %c0_0 = arith.constant 0 : index
    %c0_1 = arith.constant 0 : index
    %c0_2 = arith.constant 0 : index
    %0 = vector.load %arg1[%c0, %c0_0, %c0_1, %c0_2] : memref<2x8x64x32xf32, #tpu.memory_space<vmem>>, vector<2x8x64x32xf32>
    %1 = vector.shape_cast %0 : vector<2x8x64x32xf32> to vector<16x64x32xf32>
    %2 = vector.extract_strided_slice %1 {offsets = [0, 0, 0], sizes = [16, 16, 32], strides = [1, 1, 1]} : vector<16x64x32xf32> to vector<16x16x32xf32>
    %3 = vector.extract_strided_slice %1 {offsets = [0, 16, 0], sizes = [16, 16, 32], strides = [1, 1, 1]} : vector<16x64x32xf32> to vector<16x16x32xf32>
    %4 = arith.maximumf %2, %3 : vector<16x16x32xf32>
    %5 = vector.extract_strided_slice %1 {offsets = [0, 32, 0], sizes = [16, 16, 32], strides = [1, 1, 1]} : vector<16x64x32xf32> to vector<16x16x32xf32>
    %6 = arith.maximumf %4, %5 : vector<16x16x32xf32>
    %7 = vector.extract_strided_slice %1 {offsets = [0, 48, 0], sizes = [16, 16, 32], strides = [1, 1, 1]} : vector<16x64x32xf32> to vector<16x16x32xf32>
    %8 = arith.maximumf %6, %7 : vector<16x16x32xf32>
    %cst = arith.constant 0.176776692 : f32
    %9 = vector.broadcast %cst : f32 to vector<16x16x32xf32>
    %10 = arith.mulf %8, %9 : vector<16x16x32xf32>
    %11 = arith.truncf %10 : vector<16x16x32xf32> to vector<16x16x32xbf16>
    %c0_3 = arith.constant 0 : index
    %c0_4 = arith.constant 0 : index
    %c0_5 = arith.constant 0 : index
    %c0_6 = arith.constant 0 : index
    %12 = vector.load %arg2[%c0_3, %c0_4, %c0_5, %c0_6] : memref<2x8x64x32xf32, #tpu.memory_space<vmem>>, vector<2x8x64x32xf32>
    %13 = vector.shape_cast %12 : vector<2x8x64x32xf32> to vector<16x64x32xf32>
    %14 = arith.truncf %13 : vector<16x64x32xf32> to vector<16x64x32xbf16>
    %c0_7 = arith.constant 0 : index
    %c0_8 = arith.constant 0 : index
    %c0_9 = arith.constant 0 : index
    %c0_10 = arith.constant 0 : index
    %15 = vector.load %arg3[%c0_7, %c0_8, %c0_9, %c0_10] : memref<2x8x64x32xf32, #tpu.memory_space<vmem>>, vector<2x8x64x32xf32>
    %16 = vector.shape_cast %15 : vector<2x8x64x32xf32> to vector<16x64x32xf32>
    %17 = arith.truncf %16 : vector<16x64x32xf32> to vector<16x64x32xbf16>
    %cst_11 = arith.constant dense<0.000000e+00> : vector<16x16x64xf32>
    %18 = tpu.matmul %11, %14, %cst_11 {dimension_numbers = #tpu.dot_dimension_numbers<[2], [2], [1], [1], [0, 0, 0, 1, 1, 1], [0], [0]>} : vector<16x16x32xbf16>, vector<16x64x32xbf16>, vector<16x16x64xf32> -> vector<16x16x64xf32>
    %cst_12 = arith.constant dense<0xFF800000> : vector<16x16xf32>
    %19 = vector.multi_reduction <maximumf>, %18, %cst_12 [2] : vector<16x16x64xf32> to vector<16x16xf32>
    %20 = vector.shape_cast %19 : vector<16x16xf32> to vector<16x16x1xf32>
    %21 = vector.broadcast %20 : vector<16x16x1xf32> to vector<16x16x64xf32>
    %22 = arith.subf %18, %21 : vector<16x16x64xf32>
    %23 = math.exp %22 : vector<16x16x64xf32>
    %cst_13 = arith.constant dense<0.000000e+00> : vector<16x16xf32>
    %24 = vector.multi_reduction <add>, %23, %cst_13 [2] : vector<16x16x64xf32> to vector<16x16xf32>
    %25 = vector.shape_cast %24 : vector<16x16xf32> to vector<16x16x1xf32>
    %26 = arith.truncf %23 : vector<16x16x64xf32> to vector<16x16x64xbf16>
    %cst_14 = arith.constant dense<0.000000e+00> : vector<16x16x32xf32>
    %27 = tpu.matmul %26, %17, %cst_14 {dimension_numbers = #tpu.dot_dimension_numbers<[2], [1], [1], [2], [0, 0, 0, 1, 1, 2], [0], [0]>} : vector<16x16x64xbf16>, vector<16x64x32xbf16>, vector<16x16x32xf32> -> vector<16x16x32xf32>
    %28 = tpu.reciprocal %25 {approx = true} : vector<16x16x1xf32> -> vector<16x16x1xf32>
    %29 = vector.broadcast %28 : vector<16x16x1xf32> to vector<16x16x32xf32>
    %30 = arith.mulf %27, %29 : vector<16x16x32xf32>
    %31 = vector.shape_cast %30 : vector<16x16x32xf32> to vector<2x128x32xf32>
    %c0_15 = arith.constant 0 : index
    %c0_16 = arith.constant 0 : index
    %32 = vector.load %arg6[%c0_15, %c0_16] : memref<1x64xf32, #tpu.memory_space<vmem>>, vector<1x64xf32>
    %c0_17 = arith.constant 0 : index
    %c0_18 = arith.constant 0 : index
    %33 = vector.load %arg4[%c0_17, %c0_18] : memref<128x64xf32, #tpu.memory_space<vmem>>, vector<128x64xf32>
    %34 = vector.broadcast %32 : vector<1x64xf32> to vector<128x64xf32>
    %35 = arith.addf %34, %33 : vector<128x64xf32>
    %36 = vector.extract_strided_slice %31 {offsets = [0, 0, 0], sizes = [1, 128, 32], strides = [1, 1, 1]} : vector<2x128x32xf32> to vector<1x128x32xf32>
    %37 = vector.shape_cast %36 : vector<1x128x32xf32> to vector<128x32xf32>
    %38 = arith.truncf %37 : vector<128x32xf32> to vector<128x32xbf16>
    %c0_19 = arith.constant 0 : index
    %c0_20 = arith.constant 0 : index
    %c0_21 = arith.constant 0 : index
    %39 = vector.load %arg5[%c0_19, %c0_20, %c0_21] : memref<2x32x64xf32, #tpu.memory_space<vmem>>, vector<1x32x64xf32>
    %40 = vector.shape_cast %39 : vector<1x32x64xf32> to vector<32x64xf32>
    %41 = arith.truncf %40 : vector<32x64xf32> to vector<32x64xbf16>
    %cst_22 = arith.constant dense<0.000000e+00> : vector<128x64xf32>
    %42 = tpu.matmul %38, %41, %cst_22 {dimension_numbers = #tpu.dot_dimension_numbers<[1], [0], [0], [1], [0, 0, 1, 1], [], []>} : vector<128x32xbf16>, vector<32x64xbf16>, vector<128x64xf32> -> vector<128x64xf32>
    %43 = arith.addf %35, %42 : vector<128x64xf32>
    %44 = vector.extract_strided_slice %31 {offsets = [1, 0, 0], sizes = [1, 128, 32], strides = [1, 1, 1]} : vector<2x128x32xf32> to vector<1x128x32xf32>
    %45 = vector.shape_cast %44 : vector<1x128x32xf32> to vector<128x32xf32>
    %46 = arith.truncf %45 : vector<128x32xf32> to vector<128x32xbf16>
    %c1 = arith.constant 1 : index
    %c0_23 = arith.constant 0 : index
    %c0_24 = arith.constant 0 : index
    %47 = vector.load %arg5[%c1, %c0_23, %c0_24] : memref<2x32x64xf32, #tpu.memory_space<vmem>>, vector<1x32x64xf32>
    %48 = vector.shape_cast %47 : vector<1x32x64xf32> to vector<32x64xf32>
    %49 = arith.truncf %48 : vector<32x64xf32> to vector<32x64xbf16>
    %cst_25 = arith.constant dense<0.000000e+00> : vector<128x64xf32>
    %50 = tpu.matmul %46, %49, %cst_25 {dimension_numbers = #tpu.dot_dimension_numbers<[1], [0], [0], [1], [0, 0, 1, 1], [], []>} : vector<128x32xbf16>, vector<32x64xbf16>, vector<128x64xf32> -> vector<128x64xf32>
    %51 = arith.addf %43, %50 : vector<128x64xf32>
    %c0_26 = arith.constant 0 : index
    %c0_27 = arith.constant 0 : index
    %52 = vector.load %arg7[%c0_26, %c0_27] : memref<1x64xf32, #tpu.memory_space<vmem>>, vector<1x64xf32>
    %c0_28 = arith.constant 0 : index
    %c0_29 = arith.constant 0 : index
    %53 = vector.load %arg8[%c0_28, %c0_29] : memref<1x64xf32, #tpu.memory_space<vmem>>, vector<1x64xf32>
    %cst_30 = arith.constant dense<0.000000e+00> : vector<128xf32>
    %54 = vector.multi_reduction <add>, %51, %cst_30 [1] : vector<128x64xf32> to vector<128xf32>
    %55 = vector.shape_cast %54 : vector<128xf32> to vector<128x1xf32>
    %cst_31 = arith.constant 6.400000e+01 : f32
    %56 = vector.broadcast %cst_31 : f32 to vector<128x1xf32>
    %57 = arith.divf %55, %56 : vector<128x1xf32>
    %58 = vector.broadcast %57 : vector<128x1xf32> to vector<128x64xf32>
    %59 = arith.subf %51, %58 : vector<128x64xf32>
    %60 = arith.mulf %59, %59 : vector<128x64xf32>
    %cst_32 = arith.constant dense<0.000000e+00> : vector<128xf32>
    %61 = vector.multi_reduction <add>, %60, %cst_32 [1] : vector<128x64xf32> to vector<128xf32>
    %62 = vector.shape_cast %61 : vector<128xf32> to vector<128x1xf32>
    %cst_33 = arith.constant 6.400000e+01 : f32
    %63 = vector.broadcast %cst_33 : f32 to vector<128x1xf32>
    %64 = arith.divf %62, %63 : vector<128x1xf32>
    %65 = vector.broadcast %57 : vector<128x1xf32> to vector<128x64xf32>
    %66 = arith.subf %51, %65 : vector<128x64xf32>
    %cst_34 = arith.constant 9.99999974E-6 : f32
    %67 = vector.broadcast %cst_34 : f32 to vector<128x1xf32>
    %68 = arith.addf %64, %67 : vector<128x1xf32>
    %69 = math.rsqrt %68 : vector<128x1xf32>
    %70 = vector.broadcast %69 : vector<128x1xf32> to vector<128x64xf32>
    %71 = arith.mulf %66, %70 : vector<128x64xf32>
    %72 = vector.broadcast %52 : vector<1x64xf32> to vector<128x64xf32>
    %73 = arith.mulf %71, %72 : vector<128x64xf32>
    %74 = vector.broadcast %53 : vector<1x64xf32> to vector<128x64xf32>
    %75 = arith.addf %73, %74 : vector<128x64xf32>
    %76 = arith.truncf %75 : vector<128x64xf32> to vector<128x64xbf16>
    %c0_35 = arith.constant 0 : index
    %c0_36 = arith.constant 0 : index
    %77 = vector.load %arg9[%c0_35, %c0_36] : memref<64x256xf32, #tpu.memory_space<vmem>>, vector<64x256xf32>
    %78 = arith.truncf %77 : vector<64x256xf32> to vector<64x256xbf16>
    %cst_37 = arith.constant dense<0.000000e+00> : vector<128x256xf32>
    %79 = tpu.matmul %76, %78, %cst_37 {dimension_numbers = #tpu.dot_dimension_numbers<[1], [0], [0], [1], [0, 0, 1, 1], [], []>} : vector<128x64xbf16>, vector<64x256xbf16>, vector<128x256xf32> -> vector<128x256xf32>
    %c0_38 = arith.constant 0 : index
    %c0_39 = arith.constant 0 : index
    %80 = vector.load %arg10[%c0_38, %c0_39] : memref<1x256xf32, #tpu.memory_space<vmem>>, vector<1x256xf32>
    %81 = vector.broadcast %80 : vector<1x256xf32> to vector<128x256xf32>
    %82 = arith.addf %79, %81 : vector<128x256xf32>
    %cst_40 = arith.constant 5.000000e-01 : f32
    %83 = vector.broadcast %cst_40 : f32 to vector<128x256xf32>
    %84 = arith.mulf %83, %82 : vector<128x256xf32>
    %cst_41 = arith.constant 4.471500e-02 : f32
    %85 = vector.broadcast %cst_41 : f32 to vector<128x256xf32>
    %86 = arith.mulf %85, %82 : vector<128x256xf32>
    %87 = arith.mulf %86, %82 : vector<128x256xf32>
    %88 = arith.mulf %87, %82 : vector<128x256xf32>
    %89 = arith.addf %82, %88 : vector<128x256xf32>
    %cst_42 = arith.constant 0.797884583 : f32
    %90 = vector.broadcast %cst_42 : f32 to vector<128x256xf32>
    %91 = arith.mulf %90, %89 : vector<128x256xf32>
    %92 = math.tanh %91 : vector<128x256xf32>
    %cst_43 = arith.constant 1.000000e+00 : f32
    %93 = vector.broadcast %cst_43 : f32 to vector<128x256xf32>
    %94 = arith.addf %93, %92 : vector<128x256xf32>
    %95 = arith.mulf %84, %94 : vector<128x256xf32>
    %96 = arith.truncf %95 : vector<128x256xf32> to vector<128x256xbf16>
    %c0_44 = arith.constant 0 : index
    %c0_45 = arith.constant 0 : index
    %97 = vector.load %arg11[%c0_44, %c0_45] : memref<256x64xf32, #tpu.memory_space<vmem>>, vector<256x64xf32>
    %98 = arith.truncf %97 : vector<256x64xf32> to vector<256x64xbf16>
    %cst_46 = arith.constant dense<0.000000e+00> : vector<128x64xf32>
    %99 = tpu.matmul %96, %98, %cst_46 {dimension_numbers = #tpu.dot_dimension_numbers<[1], [0], [0], [1], [0, 0, 1, 1], [], []>} : vector<128x256xbf16>, vector<256x64xbf16>, vector<128x64xf32> -> vector<128x64xf32>
    %c0_47 = arith.constant 0 : index
    %c0_48 = arith.constant 0 : index
    %100 = vector.load %arg12[%c0_47, %c0_48] : memref<1x64xf32, #tpu.memory_space<vmem>>, vector<1x64xf32>
    %101 = vector.broadcast %100 : vector<1x64xf32> to vector<128x64xf32>
    %102 = arith.addf %99, %101 : vector<128x64xf32>
    %103 = arith.addf %51, %102 : vector<128x64xf32>
    %c0_49 = arith.constant 0 : index
    %c0_50 = arith.constant 0 : index
    %104 = vector.load %arg13[%c0_49, %c0_50] : memref<128x64xf32, #tpu.memory_space<vmem>>, vector<128x64xf32>
    tpu.vector_store %arg13[%c0_49, %c0_50], %103 {strides = array<i32>} : memref<128x64xf32, #tpu.memory_space<vmem>>, vector<128x64xf32>,
    return
  }
  func.func @transform_0(%arg0: i32) -> (i32, i32, i32, i32) {
    %c0_i32 = arith.constant 0 : i32
    %c0_i32_0 = arith.constant 0 : i32
    %c0_i32_1 = arith.constant 0 : i32
    %c0_i32_2 = arith.constant 0 : i32
    return %c0_i32, %arg0, %c0_i32_0, %c0_i32_1 : i32, i32, i32, i32
  }
  func.func @transform_1(%arg0: i32) -> (i32, i32, i32, i32) {
    %c0_i32 = arith.constant 0 : i32
    %c0_i32_0 = arith.constant 0 : i32
    %c0_i32_1 = arith.constant 0 : i32
    %c0_i32_2 = arith.constant 0 : i32
    return %c0_i32, %arg0, %c0_i32_0, %c0_i32_1 : i32, i32, i32, i32
  }
  func.func @transform_2(%arg0: i32) -> (i32, i32, i32, i32) {
    %c0_i32 = arith.constant 0 : i32
    %c0_i32_0 = arith.constant 0 : i32
    %c0_i32_1 = arith.constant 0 : i32
    %c0_i32_2 = arith.constant 0 : i32
    return %c0_i32, %arg0, %c0_i32_0, %c0_i32_1 : i32, i32, i32, i32
  }
  func.func @transform_3(%arg0: i32) -> (i32, i32) {
    %c0_i32 = arith.constant 0 : i32
    %c0_i32_0 = arith.constant 0 : i32
    return %arg0, %c0_i32 : i32, i32
  }
  func.func @transform_4(%arg0: i32) -> (i32, i32, i32) {
    %c0_i32 = arith.constant 0 : i32
    %c0_i32_0 = arith.constant 0 : i32
    %c0_i32_1 = arith.constant 0 : i32
    %c0_i32_2 = arith.constant 0 : i32
    return %c0_i32, %c0_i32_0, %c0_i32_1 : i32, i32, i32
  }
  func.func @transform_5(%arg0: i32) -> (i32, i32) {
    %c0_i32 = arith.constant 0 : i32
    %c0_i32_0 = arith.constant 0 : i32
    %c0_i32_1 = arith.constant 0 : i32
    return %c0_i32, %c0_i32_0 : i32, i32
  }
  func.func @transform_6(%arg0: i32) -> (i32, i32) {
    %c0_i32 = arith.constant 0 : i32
    %c0_i32_0 = arith.constant 0 : i32
    %c0_i32_1 = arith.constant 0 : i32
    return %c0_i32, %c0_i32_0 : i32, i32
  }
  func.func @transform_7(%arg0: i32) -> (i32, i32) {
    %c0_i32 = arith.constant 0 : i32
    %c0_i32_0 = arith.constant 0 : i32
    %c0_i32_1 = arith.constant 0 : i32
    return %c0_i32, %c0_i32_0 : i32, i32
  }
  func.func @transform_8(%arg0: i32) -> (i32, i32) {
    %c0_i32 = arith.constant 0 : i32
    %c0_i32_0 = arith.constant 0 : i32
    %c0_i32_1 = arith.constant 0 : i32
    return %c0_i32, %c0_i32_0 : i32, i32
  }
  func.func @transform_9(%arg0: i32) -> (i32, i32) {
    %c0_i32 = arith.constant 0 : i32
    %c0_i32_0 = arith.constant 0 : i32
    %c0_i32_1 = arith.constant 0 : i32
    return %c0_i32, %c0_i32_0 : i32, i32
  }
  func.func @transform_10(%arg0: i32) -> (i32, i32) {
    %c0_i32 = arith.constant 0 : i32
    %c0_i32_0 = arith.constant 0 : i32
    %c0_i32_1 = arith.constant 0 : i32
    return %c0_i32, %c0_i32_0 : i32, i32
  }
  func.func @transform_11(%arg0: i32) -> (i32, i32) {
    %c0_i32 = arith.constant 0 : i32
    %c0_i32_0 = arith.constant 0 : i32
    %c0_i32_1 = arith.constant 0 : i32
    return %c0_i32, %c0_i32_0 : i32, i32
  }
  func.func @transform_12(%arg0: i32) -> (i32, i32) {
    %c0_i32 = arith.constant 0 : i32
    %c0_i32_0 = arith.constant 0 : i32
    return %arg0, %c0_i32 : i32, i32
  }
}

</mosaic_0001>

<llo_original>
// kernel: multi_scale_block.2
$region0: #{multi_scale_block.2}
  #allocation0 [shape = 'u32[]', space=smem, size = 0x4, offset = 0x4, fixed_abs, tag = 'smem constant byte address 0x4 - core index']
  #allocation1 [shape = 'u32[144,128]{1,0:T(1,128)}', space=vmem, size = 0x12000, scoped, tag = 'internal scratch']
  %s0 = inlined_call_operand.hbm [shape: f32[512,32], index: 0, kind: input, shape index: {}]
  %s1 = inlined_call_operand.hbm [shape: f32[1,32], index: 1, kind: input, shape index: {}]
  %s2 = inlined_call_operand.hbm [shape: f32[1,32], index: 2, kind: input, shape index: {}]
  %s3 = inlined_call_operand.vmem [shape: f32[32,256], index: 3, kind: input, shape index: {}]
  %s4 = inlined_call_operand.vmem [shape: f32[1,256], index: 4, kind: input, shape index: {}]
  %s5 = inlined_call_operand.vmem [shape: f32[512,256], index: 5, kind: output, shape index: {}]
  %s6 = sld [smem:[#allocation0]]
  $region42: #{multi_scale_block.2} parent=0
    _
  %s8 = ssub.s32 1, %s6
  %s9 = scalar_select 0, %s8, %s6
  $region1: #{multi_scale_block.2} parent=0
    #allocation2 [shape = 'u8[262144]{0}', space=vmem, size = 0x40000, scoped, tag = 'input window, operand 0, single buffered']
    #allocation3 [shape = 's32[1]{0}', space=sflag, size = 0x4, scoped, tag = 'scoped memory for multi_scale_block.2']
    #allocation4 [shape = 'u8[512]{0}', space=vmem, size = 0x400, scoped, tag = 'input window, operand 1, single buffered']
    #allocation5 [shape = 's32[1]{0}', space=sflag, size = 0x4, scoped, tag = 'scoped memory for multi_scale_block.2']
    #allocation6 [shape = 'u8[512]{0}', space=vmem, size = 0x400, scoped, tag = 'input window, operand 2, single buffered']
    %10 = vsyncpa [#allocation3], 0
    %11 = vsyncpa [#allocation5], 0
    // Predicated region
    $region2: #{multi_scale_block.2} parent=1 // pred_check
      _
    $region3: #{multi_scale_block.2} parent=1 // pred_check_branch
      %13 = sbr.rel (0) target = $region5
    $region4: #{multi_scale_block.2} parent=1 // pred_region
      %s15 = ssub.s32 8192, 8192
      %16 = vsyncadd [#allocation3], %s15
      %s17 = sshll.u32 [#allocation2], 4
      %s18 = int_to_ptr.vmem [resolvable:$true] %s17
      %23 = dma.hbm_to_vmem [thread:$0]  %s0, 8192, %s18, [#allocation3], 128, 128, 8
    $region5: #{multi_scale_block.2} parent=1 // pred_fallthru
      _
    // Predicated region
    $region6: #{multi_scale_block.2} parent=1 // pred_check
      _
    $region7: #{multi_scale_block.2} parent=1 // pred_check_branch
      %25 = sbr.rel (0) target = $region9
    $region8: #{multi_scale_block.2} parent=1 // pred_region
      %s27 = ssub.s32 16, 16
      %28 = vsyncadd [#allocation5], %s27
      %s30 = sshll.u32 [#allocation4], 4
      %s31 = int_to_ptr.vmem [resolvable:$true] %s30
      %33 = dma.hbm_to_vmem [thread:$0]  %s1, 16, %s31, [#allocation5]
    $region9: #{multi_scale_block.2} parent=1 // pred_fallthru
      _
    // Predicated region
    $region10: #{multi_scale_block.2} parent=1 // pred_check
      _
    $region11: #{multi_scale_block.2} parent=1 // pred_check_branch
      %35 = sbr.rel (0) target = $region13
    $region12: #{multi_scale_block.2} parent=1 // pred_region
      %s37 = ssub.s32 16, 16
      %38 = vsyncadd [#allocation5], %s37
      %s40 = sshll.u32 [#allocation6], 4
      %s41 = int_to_ptr.vmem [resolvable:$true] %s40
      %43 = dma.hbm_to_vmem [thread:$0]  %s2, 16, %s41, [#allocation5]
    $region13: #{multi_scale_block.2} parent=1 // pred_fallthru
      _
    // Predicated region
    $region14: #{multi_scale_block.2} parent=1 // pred_check
      _
    $region15: #{multi_scale_block.2} parent=1 // pred_check_branch
      %45 = sbr.rel (0) target = $region17
    $region16: #{multi_scale_block.2} parent=1 // pred_region
      _
    $region17: #{multi_scale_block.2} parent=1 // pred_fallthru
      _
    // Predicated region
    $region18: #{multi_scale_block.2} parent=1 // pred_check
      _
    $region19: #{multi_scale_block.2} parent=1 // pred_check_branch
      %47 = sbr.rel (0) target = $region21
    $region20: #{multi_scale_block.2} parent=1 // pred_region
      _
    $region21: #{multi_scale_block.2} parent=1 // pred_fallthru
      _
    // Predicated region
    $region22: #{multi_scale_block.2} parent=1 // pred_check
      _
    $region23: #{multi_scale_block.2} parent=1 // pred_check_branch
      %49 = sbr.rel (0) target = $region25
    $region24: #{multi_scale_block.2} parent=1 // pred_region
      %50 = dma.done [#allocation3], 8192
    $region25: #{multi_scale_block.2} parent=1 // pred_fallthru
      _
    // Predicated region
    $region26: #{multi_scale_block.2} parent=1 // pred_check
      _
    $region27: #{multi_scale_block.2} parent=1 // pred_check_branch
      %52 = sbr.rel (0) target = $region29
    $region28: #{multi_scale_block.2} parent=1 // pred_region
      %53 = dma.done [#allocation5], 16
    $region29: #{multi_scale_block.2} parent=1 // pred_fallthru
      _
    // Predicated region
    $region30: #{multi_scale_block.2} parent=1 // pred_check
      _
    $region31: #{multi_scale_block.2} parent=1 // pred_check_branch
      %55 = sbr.rel (0) target = $region33
    $region32: #{multi_scale_block.2} parent=1 // pred_region
      %56 = dma.done [#allocation5], 16
    $region33: #{multi_scale_block.2} parent=1 // pred_fallthru
      _
    %v58 = vld [vmem:[#allocation2] sm:$0xff]
    %v59 = vld [vmem:[#allocation2 + $0x8] sm:$0xff]
    %v60 = vld [vmem:[#allocation2 + $0x10] sm:$0xff]
    %v61 = vld [vmem:[#allocation2 + $0x18] sm:$0xff]
    %v62 = vld [vmem:[#allocation2 + $0x20] sm:$0xff]
    %v63 = vld [vmem:[#allocation2 + $0x28] sm:$0xff]
    %v64 = vld [vmem:[#allocation2 + $0x30] sm:$0xff]
    %v65 = vld [vmem:[#allocation2 + $0x38] sm:$0xff]
    %v66 = vld [vmem:[#allocation2 + $0x40] sm:$0xff]
    %v67 = vld [vmem:[#allocation2 + $0x48] sm:$0xff]
    %v68 = vld [vmem:[#allocation2 + $0x50] sm:$0xff]
    %v69 = vld [vmem:[#allocation2 + $0x58] sm:$0xff]
    %v70 = vld [vmem:[#allocation2 + $0x60] sm:$0xff]
    %v71 = vld [vmem:[#allocation2 + $0x68] sm:$0xff]
    %v72 = vld [vmem:[#allocation2 + $0x70] sm:$0xff]
    %v73 = vld [vmem:[#allocation2 + $0x78] sm:$0xff]
    %v74 = vld [vmem:[#allocation2 + $0x80] sm:$0xff]
    %v75 = vld [vmem:[#allocation2 + $0x88] sm:$0xff]
    %v76 = vld [vmem:[#allocation2 + $0x90] sm:$0xff]
    %v77 = vld [vmem:[#allocation2 + $0x98] sm:$0xff]
    %v78 = vld [vmem:[#allocation2 + $0xa0] sm:$0xff]
    %v79 = vld [vmem:[#allocation2 + $0xa8] sm:$0xff]
    %v80 = vld [vmem:[#allocation2 + $0xb0] sm:$0xff]
    %v81 = vld [vmem:[#allocation2 + $0xb8] sm:$0xff]
    %v82 = vld [vmem:[#allocation2 + $0xc0] sm:$0xff]
    %v83 = vld [vmem:[#allocation2 + $0xc8] sm:$0xff]
    %v84 = vld [vmem:[#allocation2 + $0xd0] sm:$0xff]
    %v85 = vld [vmem:[#allocation2 + $0xd8] sm:$0xff]
    %v86 = vld [vmem:[#allocation2 + $0xe0] sm:$0xff]
    %v87 = vld [vmem:[#allocation2 + $0xe8] sm:$0xff]
    %v88 = vld [vmem:[#allocation2 + $0xf0] sm:$0xff]
    %v89 = vld [vmem:[#allocation2 + $0xf8] sm:$0xff]
    %v90 = vld [vmem:[#allocation2 + $0x100] sm:$0xff]
    %v91 = vld [vmem:[#allocation2 + $0x108] sm:$0xff]
    %v92 = vld [vmem:[#allocation2 + $0x110] sm:$0xff]
    %v93 = vld [vmem:[#allocation2 + $0x118] sm:$0xff]
    %v94 = vld [vmem:[#allocation2 + $0x120] sm:$0xff]
    %v95 = vld [vmem:[#allocation2 + $0x128] sm:$0xff]
    %v96 = vld [vmem:[#allocation2 + $0x130] sm:$0xff]
    %v97 = vld [vmem:[#allocation2 + $0x138] sm:$0xff]
    %v98 = vld [vmem:[#allocation2 + $0x140] sm:$0xff]
    %v99 = vld [vmem:[#allocation2 + $0x148] sm:$0xff]
    %v100 = vld [vmem:[#allocation2 + $0x150] sm:$0xff]
    %v101 = vld [vmem:[#allocation2 + $0x158] sm:$0xff]
    %v102 = vld [vmem:[#allocation2 + $0x160] sm:$0xff]
    %v103 = vld [vmem:[#allocation2 + $0x168] sm:$0xff]
    %v104 = vld [vmem:[#allocation2 + $0x170] sm:$0xff]
    %v105 = vld [vmem:[#allocation2 + $0x178] sm:$0xff]
    %v106 = vld [vmem:[#allocation2 + $0x180] sm:$0xff]
    %v107 = vld [vmem:[#allocation2 + $0x188] sm:$0xff]
    %v108 = vld [vmem:[#allocation2 + $0x190] sm:$0xff]
    %v109 = vld [vmem:[#allocation2 + $0x198] sm:$0xff]
    %v110 = vld [vmem:[#allocation2 + $0x1a0] sm:$0xff]
    %v111 = vld [vmem:[#allocation2 + $0x1a8] sm:$0xff]
    %v112 = vld [vmem:[#allocation2 + $0x1b0] sm:$0xff]
    %v113 = vld [vmem:[#allocation2 + $0x1b8] sm:$0xff]
    %v114 = vld [vmem:[#allocation2 + $0x1c0] sm:$0xff]
    %v115 = vld [vmem:[#allocation2 + $0x1c8] sm:$0xff]
    %v116 = vld [vmem:[#allocation2 + $0x1d0] sm:$0xff]
    %v117 = vld [vmem:[#allocation2 + $0x1d8] sm:$0xff]
    %v118 = vld [vmem:[#allocation2 + $0x1e0] sm:$0xff]
    %v119 = vld [vmem:[#allocation2 + $0x1e8] sm:$0xff]
    %v120 = vld [vmem:[#allocation2 + $0x1f0] sm:$0xff]
    %v121 = vld [vmem:[#allocation2 + $0x1f8] sm:$0xff]
    %v122 = vld [vmem:[#allocation4] sm:$0x1]
    %v123 = vld [vmem:[#allocation6] sm:$0x1]
    %vm124 = vcmask 261120
    %v125 = vsel %vm124, %v58, 0.0
    %126 = vadd.xlane.f32.xlu0 %v125
    %v127 = vpop.xlane.xlu0 %126
    %v128 = vsel %vm124, %v59, 0.0
    %129 = vadd.xlane.f32.xlu0 %v128
    %v130 = vpop.xlane.xlu0 %129
    %v131 = vsel %vm124, %v60, 0.0
    %132 = vadd.xlane.f32.xlu0 %v131
    %v133 = vpop.xlane.xlu0 %132
    %v134 = vsel %vm124, %v61, 0.0
    %135 = vadd.xlane.f32.xlu0 %v134
    %v136 = vpop.xlane.xlu0 %135
    %v137 = vsel %vm124, %v62, 0.0
    %138 = vadd.xlane.f32.xlu0 %v137
    %v139 = vpop.xlane.xlu0 %138
    %v140 = vsel %vm124, %v63, 0.0
    %141 = vadd.xlane.f32.xlu0 %v140
    %v142 = vpop.xlane.xlu0 %141
    %v143 = vsel %vm124, %v64, 0.0
    %144 = vadd.xlane.f32.xlu0 %v143
    %v145 = vpop.xlane.xlu0 %144
    %v146 = vsel %vm124, %v65, 0.0
    %147 = vadd.xlane.f32.xlu0 %v146
    %v148 = vpop.xlane.xlu0 %147
    %v149 = vsel %vm124, %v66, 0.0
    %150 = vadd.xlane.f32.xlu0 %v149
    %v151 = vpop.xlane.xlu0 %150
    %v152 = vsel %vm124, %v67, 0.0
    %153 = vadd.xlane.f32.xlu0 %v152
    %v154 = vpop.xlane.xlu0 %153
    %v155 = vsel %vm124, %v68, 0.0
    %156 = vadd.xlane.f32.xlu0 %v155
    %v157 = vpop.xlane.xlu0 %156
    %v158 = vsel %vm124, %v69, 0.0
    %159 = vadd.xlane.f32.xlu0 %v158
    %v160 = vpop.xlane.xlu0 %159
    %v161 = vsel %vm124, %v70, 0.0
    %162 = vadd.xlane.f32.xlu0 %v161
    %v163 = vpop.xlane.xlu0 %162
    %v164 = vsel %vm124, %v71, 0.0
    %165 = vadd.xlane.f32.xlu0 %v164
    %v166 = vpop.xlane.xlu0 %165
    %v167 = vsel %vm124, %v72, 0.0
    %168 = vadd.xlane.f32.xlu0 %v167
    %v169 = vpop.xlane.xlu0 %168
    %v170 = vsel %vm124, %v73, 0.0
    %171 = vadd.xlane.f32.xlu0 %v170
    %v172 = vpop.xlane.xlu0 %171
    %v173 = vsel %vm124, %v74, 0.0
    %174 = vadd.xlane.f32.xlu0 %v173
    %v175 = vpop.xlane.xlu0 %174
    %v176 = vsel %vm124, %v75, 0.0
    %177 = vadd.xlane.f32.xlu0 %v176
    %v178 = vpop.xlane.xlu0 %177
    %v179 = vsel %vm124, %v76, 0.0
    %180 = vadd.xlane.f32.xlu0 %v179
    %v181 = vpop.xlane.xlu0 %180
    %v182 = vsel %vm124, %v77, 0.0
    %183 = vadd.xlane.f32.xlu0 %v182
    %v184 = vpop.xlane.xlu0 %183
    %v185 = vsel %vm124, %v78, 0.0
    %186 = vadd.xlane.f32.xlu0 %v185
    %v187 = vpop.xlane.xlu0 %186
    %v188 = vsel %vm124, %v79, 0.0
    %189 = vadd.xlane.f32.xlu0 %v188
    %v190 = vpop.xlane.xlu0 %189
    %v191 = vsel %vm124, %v80, 0.0
    %192 = vadd.xlane.f32.xlu0 %v191
    %v193 = vpop.xlane.xlu0 %192
    %v194 = vsel %vm124, %v81, 0.0
    %195 = vadd.xlane.f32.xlu0 %v194
    %v196 = vpop.xlane.xlu0 %195
    %v197 = vsel %vm124, %v82, 0.0
    %198 = vadd.xlane.f32.xlu0 %v197
    %v199 = vpop.xlane.xlu0 %198
    %v200 = vsel %vm124, %v83, 0.0
    %201 = vadd.xlane.f32.xlu0 %v200
    %v202 = vpop.xlane.xlu0 %201
    %v203 = vsel %vm124, %v84, 0.0
    %204 = vadd.xlane.f32.xlu0 %v203
    %v205 = vpop.xlane.xlu0 %204
    %v206 = vsel %vm124, %v85, 0.0
    %207 = vadd.xlane.f32.xlu0 %v206
    %v208 = vpop.xlane.xlu0 %207
    %v209 = vsel %vm124, %v86, 0.0
    %210 = vadd.xlane.f32.xlu0 %v209
    %v211 = vpop.xlane.xlu0 %210
    %v212 = vsel %vm124, %v87, 0.0
    %213 = vadd.xlane.f32.xlu0 %v212
    %v214 = vpop.xlane.xlu0 %213
    %v215 = vsel %vm124, %v88, 0.0
    %216 = vadd.xlane.f32.xlu0 %v215
    %v217 = vpop.xlane.xlu0 %216
    %v218 = vsel %vm124, %v89, 0.0
    %219 = vadd.xlane.f32.xlu0 %v218
    %v220 = vpop.xlane.xlu0 %219
    %v221 = vsel %vm124, %v90, 0.0
    %222 = vadd.xlane.f32.xlu0 %v221
    %v223 = vpop.xlane.xlu0 %222
    %v224 = vsel %vm124, %v91, 0.0
    %225 = vadd.xlane.f32.xlu0 %v224
    %v226 = vpop.xlane.xlu0 %225
    %v227 = vsel %vm124, %v92, 0.0
    %228 = vadd.xlane.f32.xlu0 %v227
    %v229 = vpop.xlane.xlu0 %228
    %v230 = vsel %vm124, %v93, 0.0
    %231 = vadd.xlane.f32.xlu0 %v230
    %v232 = vpop.xlane.xlu0 %231
    %v233 = vsel %vm124, %v94, 0.0
    %234 = vadd.xlane.f32.xlu0 %v233
    %v235 = vpop.xlane.xlu0 %234
    %v236 = vsel %vm124, %v95, 0.0
    %237 = vadd.xlane.f32.xlu0 %v236
    %v238 = vpop.xlane.xlu0 %237
    %v239 = vsel %vm124, %v96, 0.0
    %240 = vadd.xlane.f32.xlu0 %v239
    %v241 = vpop.xlane.xlu0 %240
    %v242 = vsel %vm124, %v97, 0.0
    %243 = vadd.xlane.f32.xlu0 %v242
    %v244 = vpop.xlane.xlu0 %243
    %v245 = vsel %vm124, %v98, 0.0
    %246 = vadd.xlane.f32.xlu0 %v245
    %v247 = vpop.xlane.xlu0 %246
    %v248 = vsel %vm124, %v99, 0.0
    %249 = vadd.xlane.f32.xlu0 %v248
    %v250 = vpop.xlane.xlu0 %249
    %v251 = vsel %vm124, %v100, 0.0
    %252 = vadd.xlane.f32.xlu0 %v251
    %v253 = vpop.xlane.xlu0 %252
    %v254 = vsel %vm124, %v101, 0.0
    %255 = vadd.xlane.f32.xlu0 %v254
    %v256 = vpop.xlane.xlu0 %255
    %v257 = vsel %vm124, %v102, 0.0
    %258 = vadd.xlane.f32.xlu0 %v257
    %v259 = vpop.xlane.xlu0 %258
    %v260 = vsel %vm124, %v103, 0.0
    %261 = vadd.xlane.f32.xlu0 %v260
    %v262 = vpop.xlane.xlu0 %261
    %v263 = vsel %vm124, %v104, 0.0
    %264 = vadd.xlane.f32.xlu0 %v263
    %v265 = vpop.xlane.xlu0 %264
    %v266 = vsel %vm124, %v105, 0.0
    %267 = vadd.xlane.f32.xlu0 %v266
    %v268 = vpop.xlane.xlu0 %267
    %v269 = vsel %vm124, %v106, 0.0
    %270 = vadd.xlane.f32.xlu0 %v269
    %v271 = vpop.xlane.xlu0 %270
    %v272 = vsel %vm124, %v107, 0.0
    %273 = vadd.xlane.f32.xlu0 %v272
    %v274 = vpop.xlane.xlu0 %273
    %v275 = vsel %vm124, %v108, 0.0
    %276 = vadd.xlane.f32.xlu0 %v275
    %v277 = vpop.xlane.xlu0 %276
    %v278 = vsel %vm124, %v109, 0.0
    %279 = vadd.xlane.f32.xlu0 %v278
    %v280 = vpop.xlane.xlu0 %279
    %v281 = vsel %vm124, %v110, 0.0
    %282 = vadd.xlane.f32.xlu0 %v281
    %v283 = vpop.xlane.xlu0 %282
    %v284 = vsel %vm124, %v111, 0.0
    %285 = vadd.xlane.f32.xlu0 %v284
    %v286 = vpop.xlane.xlu0 %285
    %v287 = vsel %vm124, %v112, 0.0
    %288 = vadd.xlane.f32.xlu0 %v287
    %v289 = vpop.xlane.xlu0 %288
    %v290 = vsel %vm124, %v113, 0.0
    %291 = vadd.xlane.f32.xlu0 %v290
    %v292 = vpop.xlane.xlu0 %291
    %v293 = vsel %vm124, %v114, 0.0
    %294 = vadd.xlane.f32.xlu0 %v293
    %v295 = vpop.xlane.xlu0 %294
    %v296 = vsel %vm124, %v115, 0.0
    %297 = vadd.xlane.f32.xlu0 %v296
    %v298 = vpop.xlane.xlu0 %297
    %v299 = vsel %vm124, %v116, 0.0
    %300 = vadd.xlane.f32.xlu0 %v299
    %v301 = vpop.xlane.xlu0 %300
    %v302 = vsel %vm124, %v117, 0.0
    %303 = vadd.xlane.f32.xlu0 %v302
    %v304 = vpop.xlane.xlu0 %303
    %v305 = vsel %vm124, %v118, 0.0
    %306 = vadd.xlane.f32.xlu0 %v305
    %v307 = vpop.xlane.xlu0 %306
    %v308 = vsel %vm124, %v119, 0.0
    %309 = vadd.xlane.f32.xlu0 %v308
    %v310 = vpop.xlane.xlu0 %309
    %v311 = vsel %vm124, %v120, 0.0
    %312 = vadd.xlane.f32.xlu0 %v311
    %v313 = vpop.xlane.xlu0 %312
    %v314 = vsel %vm124, %v121, 0.0
    %315 = vadd.xlane.f32.xlu0 %v314
    %v316 = vpop.xlane.xlu0 %315
    %v317 = vrcp.pop 32.0
    %v318 = vmul.f32 %v127, %v317
    %v319 = vmul.f32 %v130, %v317
    %v320 = vmul.f32 %v133, %v317
    %v321 = vmul.f32 %v136, %v317
    %v322 = vmul.f32 %v139, %v317
    %v323 = vmul.f32 %v142, %v317
    %v324 = vmul.f32 %v145, %v317
    %v325 = vmul.f32 %v148, %v317
    %v326 = vmul.f32 %v151, %v317
    %v327 = vmul.f32 %v154, %v317
    %v328 = vmul.f32 %v157, %v317
    %v329 = vmul.f32 %v160, %v317
    %v330 = vmul.f32 %v163, %v317
    %v331 = vmul.f32 %v166, %v317
    %v332 = vmul.f32 %v169, %v317
    %v333 = vmul.f32 %v172, %v317
    %v334 = vmul.f32 %v175, %v317
    %v335 = vmul.f32 %v178, %v317
    %v336 = vmul.f32 %v181, %v317
    %v337 = vmul.f32 %v184, %v317
    %v338 = vmul.f32 %v187, %v317
    %v339 = vmul.f32 %v190, %v317
    %v340 = vmul.f32 %v193, %v317
    %v341 = vmul.f32 %v196, %v317
    %v342 = vmul.f32 %v199, %v317
    %v343 = vmul.f32 %v202, %v317
    %v344 = vmul.f32 %v205, %v317
    %v345 = vmul.f32 %v208, %v317
    %v346 = vmul.f32 %v211, %v317
    %v347 = vmul.f32 %v214, %v317
    %v348 = vmul.f32 %v217, %v317
    %v349 = vmul.f32 %v220, %v317
    %v350 = vmul.f32 %v223, %v317
    %v351 = vmul.f32 %v226, %v317
    %v352 = vmul.f32 %v229, %v317
    %v353 = vmul.f32 %v232, %v317
    %v354 = vmul.f32 %v235, %v317
    %v355 = vmul.f32 %v238, %v317
    %v356 = vmul.f32 %v241, %v317
    %v357 = vmul.f32 %v244, %v317
    %v358 = vmul.f32 %v247, %v317
    %v359 = vmul.f32 %v250, %v317
    %v360 = vmul.f32 %v253, %v317
    %v361 = vmul.f32 %v256, %v317
    %v362 = vmul.f32 %v259, %v317
    %v363 = vmul.f32 %v262, %v317
    %v364 = vmul.f32 %v265, %v317
    %v365 = vmul.f32 %v268, %v317
    %v366 = vmul.f32 %v271, %v317
    %v367 = vmul.f32 %v274, %v317
    %v368 = vmul.f32 %v277, %v317
    %v369 = vmul.f32 %v280, %v317
    %v370 = vmul.f32 %v283, %v317
    %v371 = vmul.f32 %v286, %v317
    %v372 = vmul.f32 %v289, %v317
    %v373 = vmul.f32 %v292, %v317
    %v374 = vmul.f32 %v295, %v317
    %v375 = vmul.f32 %v298, %v317
    %v376 = vmul.f32 %v301, %v317
    %v377 = vmul.f32 %v304, %v317
    %v378 = vmul.f32 %v307, %v317
    %v379 = vmul.f32 %v310, %v317
    %v380 = vmul.f32 %v313, %v317
    %v381 = vmul.f32 %v316, %v317
    %v382 = vsub.f32 %v58, %v318
    %v383 = vsub.f32 %v59, %v319
    %v384 = vsub.f32 %v60, %v320
    %v385 = vsub.f32 %v61, %v321
    %v386 = vsub.f32 %v62, %v322
    %v387 = vsub.f32 %v63, %v323
    %v388 = vsub.f32 %v64, %v324
    %v389 = vsub.f32 %v65, %v325
    %v390 = vsub.f32 %v66, %v326
    %v391 = vsub.f32 %v67, %v327
    %v392 = vsub.f32 %v68, %v328
    %v393 = vsub.f32 %v69, %v329
    %v394 = vsub.f32 %v70, %v330
    %v395 = vsub.f32 %v71, %v331
    %v396 = vsub.f32 %v72, %v332
    %v397 = vsub.f32 %v73, %v333
    %v398 = vsub.f32 %v74, %v334
    %v399 = vsub.f32 %v75, %v335
    %v400 = vsub.f32 %v76, %v336
    %v401 = vsub.f32 %v77, %v337
    %v402 = vsub.f32 %v78, %v338
    %v403 = vsub.f32 %v79, %v339
    %v404 = vsub.f32 %v80, %v340
    %v405 = vsub.f32 %v81, %v341
    %v406 = vsub.f32 %v82, %v342
    %v407 = vsub.f32 %v83, %v343
    %v408 = vsub.f32 %v84, %v344
    %v409 = vsub.f32 %v85, %v345
    %v410 = vsub.f32 %v86, %v346
    %v411 = vsub.f32 %v87, %v347
    %v412 = vsub.f32 %v88, %v348
    %v413 = vsub.f32 %v89, %v349
    %v414 = vsub.f32 %v90, %v350
    %v415 = vsub.f32 %v91, %v351
    %v416 = vsub.f32 %v92, %v352
    %v417 = vsub.f32 %v93, %v353
    %v418 = vsub.f32 %v94, %v354
    %v419 = vsub.f32 %v95, %v355
    %v420 = vsub.f32 %v96, %v356
    %v421 = vsub.f32 %v97, %v357
    %v422 = vsub.f32 %v98, %v358
    %v423 = vsub.f32 %v99, %v359
    %v424 = vsub.f32 %v100, %v360
    %v425 = vsub.f32 %v101, %v361
    %v426 = vsub.f32 %v102, %v362
    %v427 = vsub.f32 %v103, %v363
    %v428 = vsub.f32 %v104, %v364
    %v429 = vsub.f32 %v105, %v365
    %v430 = vsub.f32 %v106, %v366
    %v431 = vsub.f32 %v107, %v367
    %v432 = vsub.f32 %v108, %v368
    %v433 = vsub.f32 %v109, %v369
    %v434 = vsub.f32 %v110, %v370
    %v435 = vsub.f32 %v111, %v371
    %v436 = vsub.f32 %v112, %v372
    %v437 = vsub.f32 %v113, %v373
    %v438 = vsub.f32 %v114, %v374
    %v439 = vsub.f32 %v115, %v375
    %v440 = vsub.f32 %v116, %v376
    %v441 = vsub.f32 %v117, %v377
    %v442 = vsub.f32 %v118, %v378
    %v443 = vsub.f32 %v119, %v379
    %v444 = vsub.f32 %v120, %v380
    %v445 = vsub.f32 %v121, %v381
    %v446 = vmul.f32 %v382, %v382
    %v447 = vmul.f32 %v383, %v383
    %v448 = vmul.f32 %v384, %v384
    %v449 = vmul.f32 %v385, %v385
    %v450 = vmul.f32 %v386, %v386
    %v451 = vmul.f32 %v387, %v387
    %v452 = vmul.f32 %v388, %v388
    %v453 = vmul.f32 %v389, %v389
    %v454 = vmul.f32 %v390, %v390
    %v455 = vmul.f32 %v391, %v391
    %v456 = vmul.f32 %v392, %v392
    %v457 = vmul.f32 %v393, %v393
    %v458 = vmul.f32 %v394, %v394
    %v459 = vmul.f32 %v395, %v395
    %v460 = vmul.f32 %v396, %v396
    %v461 = vmul.f32 %v397, %v397
    %v462 = vmul.f32 %v398, %v398
    %v463 = vmul.f32 %v399, %v399
    %v464 = vmul.f32 %v400, %v400
    %v465 = vmul.f32 %v401, %v401
    %v466 = vmul.f32 %v402, %v402
    %v467 = vmul.f32 %v403, %v403
    %v468 = vmul.f32 %v404, %v404
    %v469 = vmul.f32 %v405, %v405
    %v470 = vmul.f32 %v406, %v406
    %v471 = vmul.f32 %v407, %v407
    %v472 = vmul.f32 %v408, %v408
    %v473 = vmul.f32 %v409, %v409
    %v474 = vmul.f32 %v410, %v410
    %v475 = vmul.f32 %v411, %v411
    %v476 = vmul.f32 %v412, %v412
    %v477 = vmul.f32 %v413, %v413
    %v478 = vmul.f32 %v414, %v414
    %v479 = vmul.f32 %v415, %v415
    %v480 = vmul.f32 %v416, %v416
    %v481 = vmul.f32 %v417, %v417
    %v482 = vmul.f32 %v418, %v418
    %v483 = vmul.f32 %v419, %v419
    %v484 = vmul.f32 %v420, %v420
    %v485 = vmul.f32 %v421, %v421
    %v486 = vmul.f32 %v422, %v422
    %v487 = vmul.f32 %v423, %v423
    %v488 = vmul.f32 %v424, %v424
    %v489 = vmul.f32 %v425, %v425
    %v490 = vmul.f32 %v426, %v426
    %v491 = vmul.f32 %v427, %v427
    %v492 = vmul.f32 %v428, %v428
    %v493 = vmul.f32 %v429, %v429
    %v494 = vmul.f32 %v430, %v430
    %v495 = vmul.f32 %v431, %v431
    %v496 = vmul.f32 %v432, %v432
    %v497 = vmul.f32 %v433, %v433
    %v498 = vmul.f32 %v434, %v434
    %v499 = vmul.f32 %v435, %v435
    %v500 = vmul.f32 %v436, %v436
    %v501 = vmul.f32 %v437, %v437
    %v502 = vmul.f32 %v438, %v438
    %v503 = vmul.f32 %v439, %v439
    %v504 = vmul.f32 %v440, %v440
    %v505 = vmul.f32 %v441, %v441
    %v506 = vmul.f32 %v442, %v442
    %v507 = vmul.f32 %v443, %v443
    %v508 = vmul.f32 %v444, %v444
    %v509 = vmul.f32 %v445, %v445
    %v510 = vsel %vm124, %v446, 0.0
    %511 = vadd.xlane.f32.xlu0 %v510
    %v512 = vpop.xlane.xlu0 %511
    %v513 = vsel %vm124, %v447, 0.0
    %514 = vadd.xlane.f32.xlu0 %v513
    %v515 = vpop.xlane.xlu0 %514
    %v516 = vsel %vm124, %v448, 0.0
    %517 = vadd.xlane.f32.xlu0 %v516
    %v518 = vpop.xlane.xlu0 %517
    %v519 = vsel %vm124, %v449, 0.0
    %520 = vadd.xlane.f32.xlu0 %v519
    %v521 = vpop.xlane.xlu0 %520
    %v522 = vsel %vm124, %v450, 0.0
    %523 = vadd.xlane.f32.xlu0 %v522
    %v524 = vpop.xlane.xlu0 %523
    %v525 = vsel %vm124, %v451, 0.0
    %526 = vadd.xlane.f32.xlu0 %v525
    %v527 = vpop.xlane.xlu0 %526
    %v528 = vsel %vm124, %v452, 0.0
    %529 = vadd.xlane.f32.xlu0 %v528
    %v530 = vpop.xlane.xlu0 %529
    %v531 = vsel %vm124, %v453, 0.0
    %532 = vadd.xlane.f32.xlu0 %v531
    %v533 = vpop.xlane.xlu0 %532
    %v534 = vsel %vm124, %v454, 0.0
    %535 = vadd.xlane.f32.xlu0 %v534
    %v536 = vpop.xlane.xlu0 %535
    %v537 = vsel %vm124, %v455, 0.0
    %538 = vadd.xlane.f32.xlu0 %v537
    %v539 = vpop.xlane.xlu0 %538
    %v540 = vsel %vm124, %v456, 0.0
    %541 = vadd.xlane.f32.xlu0 %v540
    %v542 = vpop.xlane.xlu0 %541
    %v543 = vsel %vm124, %v457, 0.0
    %544 = vadd.xlane.f32.xlu0 %v543
    %v545 = vpop.xlane.xlu0 %544
    %v546 = vsel %vm124, %v458, 0.0
    %547 = vadd.xlane.f32.xlu0 %v546
    %v548 = vpop.xlane.xlu0 %547
    %v549 = vsel %vm124, %v459, 0.0
    %550 = vadd.xlane.f32.xlu0 %v549
    %v551 = vpop.xlane.xlu0 %550
    %v552 = vsel %vm124, %v460, 0.0
    %553 = vadd.xlane.f32.xlu0 %v552
    %v554 = vpop.xlane.xlu0 %553
    %v555 = vsel %vm124, %v461, 0.0
    %556 = vadd.xlane.f32.xlu0 %v555
    %v557 = vpop.xlane.xlu0 %556
    %v558 = vsel %vm124, %v462, 0.0
    %559 = vadd.xlane.f32.xlu0 %v558
    %v560 = vpop.xlane.xlu0 %559
    %v561 = vsel %vm124, %v463, 0.0
    %562 = vadd.xlane.f32.xlu0 %v561
    %v563 = vpop.xlane.xlu0 %562
    %v564 = vsel %vm124, %v464, 0.0
    %565 = vadd.xlane.f32.xlu0 %v564
    %v566 = vpop.xlane.xlu0 %565
    %v567 = vsel %vm124, %v465, 0.0
    %568 = vadd.xlane.f32.xlu0 %v567
    %v569 = vpop.xlane.xlu0 %568
    %v570 = vsel %vm124, %v466, 0.0
    %571 = vadd.xlane.f32.xlu0 %v570
    %v572 = vpop.xlane.xlu0 %571
    %v573 = vsel %vm124, %v467, 0.0
    %574 = vadd.xlane.f32.xlu0 %v573
    %v575 = vpop.xlane.xlu0 %574
    %v576 = vsel %vm124, %v468, 0.0
    %577 = vadd.xlane.f32.xlu0 %v576
    %v578 = vpop.xlane.xlu0 %577
    %v579 = vsel %vm124, %v469, 0.0
    %580 = vadd.xlane.f32.xlu0 %v579
    %v581 = vpop.xlane.xlu0 %580
    %v582 = vsel %vm124, %v470, 0.0
    %583 = vadd.xlane.f32.xlu0 %v582
    %v584 = vpop.xlane.xlu0 %583
    %v585 = vsel %vm124, %v471, 0.0
    %586 = vadd.xlane.f32.xlu0 %v585
    %v587 = vpop.xlane.xlu0 %586
    %v588 = vsel %vm124, %v472, 0.0
    %589 = vadd.xlane.f32.xlu0 %v588
    %v590 = vpop.xlane.xlu0 %589
    %v591 = vsel %vm124, %v473, 0.0
    %592 = vadd.xlane.f32.xlu0 %v591
    %v593 = vpop.xlane.xlu0 %592
    %v594 = vsel %vm124, %v474, 0.0
    %595 = vadd.xlane.f32.xlu0 %v594
    %v596 = vpop.xlane.xlu0 %595
    %v597 = vsel %vm124, %v475, 0.0
    %598 = vadd.xlane.f32.xlu0 %v597
    %v599 = vpop.xlane.xlu0 %598
    %v600 = vsel %vm124, %v476, 0.0
    %601 = vadd.xlane.f32.xlu0 %v600
    %v602 = vpop.xlane.xlu0 %601
    %v603 = vsel %vm124, %v477, 0.0
    %604 = vadd.xlane.f32.xlu0 %v603
    %v605 = vpop.xlane.xlu0 %604
    %v606 = vsel %vm124, %v478, 0.0
    %607 = vadd.xlane.f32.xlu0 %v606
    %v608 = vpop.xlane.xlu0 %607
    %v609 = vsel %vm124, %v479, 0.0
    %610 = vadd.xlane.f32.xlu0 %v609
    %v611 = vpop.xlane.xlu0 %610
    %v612 = vsel %vm124, %v480, 0.0
    %613 = vadd.xlane.f32.xlu0 %v612
    %v614 = vpop.xlane.xlu0 %613
    %v615 = vsel %vm124, %v481, 0.0
    %616 = vadd.xlane.f32.xlu0 %v615
    %v617 = vpop.xlane.xlu0 %616
    %v618 = vsel %vm124, %v482, 0.0
    %619 = vadd.xlane.f32.xlu0 %v618
    %v620 = vpop.xlane.xlu0 %619
    %v621 = vsel %vm124, %v483, 0.0
    %622 = vadd.xlane.f32.xlu0 %v621
    %v623 = vpop.xlane.xlu0 %622
    %v624 = vsel %vm124, %v484, 0.0
    %625 = vadd.xlane.f32.xlu0 %v624
    %v626 = vpop.xlane.xlu0 %625
    %v627 = vsel %vm124, %v485, 0.0
    %628 = vadd.xlane.f32.xlu0 %v627
    %v629 = vpop.xlane.xlu0 %628
    %v630 = vsel %vm124, %v486, 0.0
    %631 = vadd.xlane.f32.xlu0 %v630
    %v632 = vpop.xlane.xlu0 %631
    %v633 = vsel %vm124, %v487, 0.0
    %634 = vadd.xlane.f32.xlu0 %v633
    %v635 = vpop.xlane.xlu0 %634
    %v636 = vsel %vm124, %v488, 0.0
    %637 = vadd.xlane.f32.xlu0 %v636
    %v638 = vpop.xlane.xlu0 %637
    %v639 = vsel %vm124, %v489, 0.0
    %640 = vadd.xlane.f32.xlu0 %v639
    %v641 = vpop.xlane.xlu0 %640
    %v642 = vsel %vm124, %v490, 0.0
    %643 = vadd.xlane.f32.xlu0 %v642
    %v644 = vpop.xlane.xlu0 %643
    %v645 = vsel %vm124, %v491, 0.0
    %646 = vadd.xlane.f32.xlu0 %v645
    %v647 = vpop.xlane.xlu0 %646
    %v648 = vsel %vm124, %v492, 0.0
    %649 = vadd.xlane.f32.xlu0 %v648
    %v650 = vpop.xlane.xlu0 %649
    %v651 = vsel %vm124, %v493, 0.0
    %652 = vadd.xlane.f32.xlu0 %v651
    %v653 = vpop.xlane.xlu0 %652
    %v654 = vsel %vm124, %v494, 0.0
    %655 = vadd.xlane.f32.xlu0 %v654
    %v656 = vpop.xlane.xlu0 %655
    %v657 = vsel %vm124, %v495, 0.0
    %658 = vadd.xlane.f32.xlu0 %v657
    %v659 = vpop.xlane.xlu0 %658
    %v660 = vsel %vm124, %v496, 0.0
    %661 = vadd.xlane.f32.xlu0 %v660
    %v662 = vpop.xlane.xlu0 %661
    %v663 = vsel %vm124, %v497, 0.0
    %664 = vadd.xlane.f32.xlu0 %v663
    %v665 = vpop.xlane.xlu0 %664
    %v666 = vsel %vm124, %v498, 0.0
    %667 = vadd.xlane.f32.xlu0 %v666
    %v668 = vpop.xlane.xlu0 %667
    %v669 = vsel %vm124, %v499, 0.0
    %670 = vadd.xlane.f32.xlu0 %v669
    %v671 = vpop.xlane.xlu0 %670
    %v672 = vsel %vm124, %v500, 0.0
    %673 = vadd.xlane.f32.xlu0 %v672
    %v674 = vpop.xlane.xlu0 %673
    %v675 = vsel %vm124, %v501, 0.0
    %676 = vadd.xlane.f32.xlu0 %v675
    %v677 = vpop.xlane.xlu0 %676
    %v678 = vsel %vm124, %v502, 0.0
    %679 = vadd.xlane.f32.xlu0 %v678
    %v680 = vpop.xlane.xlu0 %679
    %v681 = vsel %vm124, %v503, 0.0
    %682 = vadd.xlane.f32.xlu0 %v681
    %v683 = vpop.xlane.xlu0 %682
    %v684 = vsel %vm124, %v504, 0.0
    %685 = vadd.xlane.f32.xlu0 %v684
    %v686 = vpop.xlane.xlu0 %685
    %v687 = vsel %vm124, %v505, 0.0
    %688 = vadd.xlane.f32.xlu0 %v687
    %v689 = vpop.xlane.xlu0 %688
    %v690 = vsel %vm124, %v506, 0.0
    %691 = vadd.xlane.f32.xlu0 %v690
    %v692 = vpop.xlane.xlu0 %691
    %v693 = vsel %vm124, %v507, 0.0
    %694 = vadd.xlane.f32.xlu0 %v693
    %v695 = vpop.xlane.xlu0 %694
    %v696 = vsel %vm124, %v508, 0.0
    %697 = vadd.xlane.f32.xlu0 %v696
    %v698 = vpop.xlane.xlu0 %697
    %v699 = vsel %vm124, %v509, 0.0
    %700 = vadd.xlane.f32.xlu0 %v699
    %v701 = vpop.xlane.xlu0 %700
    %v702 = vmul.f32 %v512, %v317
    %v703 = vmul.f32 %v515, %v317
    %v704 = vmul.f32 %v518, %v317
    %v705 = vmul.f32 %v521, %v317
    %v706 = vmul.f32 %v524, %v317
    %v707 = vmul.f32 %v527, %v317
    %v708 = vmul.f32 %v530, %v317
    %v709 = vmul.f32 %v533, %v317
    %v710 = vmul.f32 %v536, %v317
    %v711 = vmul.f32 %v539, %v317
    %v712 = vmul.f32 %v542, %v317
    %v713 = vmul.f32 %v545, %v317
    %v714 = vmul.f32 %v548, %v317
    %v715 = vmul.f32 %v551, %v317
    %v716 = vmul.f32 %v554, %v317
    %v717 = vmul.f32 %v557, %v317
    %v718 = vmul.f32 %v560, %v317
    %v719 = vmul.f32 %v563, %v317
    %v720 = vmul.f32 %v566, %v317
    %v721 = vmul.f32 %v569, %v317
    %v722 = vmul.f32 %v572, %v317
    %v723 = vmul.f32 %v575, %v317
    %v724 = vmul.f32 %v578, %v317
    %v725 = vmul.f32 %v581, %v317
    %v726 = vmul.f32 %v584, %v317
    %v727 = vmul.f32 %v587, %v317
    %v728 = vmul.f32 %v590, %v317
    %v729 = vmul.f32 %v593, %v317
    %v730 = vmul.f32 %v596, %v317
    %v731 = vmul.f32 %v599, %v317
    %v732 = vmul.f32 %v602, %v317
    %v733 = vmul.f32 %v605, %v317
    %v734 = vmul.f32 %v608, %v317
    %v735 = vmul.f32 %v611, %v317
    %v736 = vmul.f32 %v614, %v317
    %v737 = vmul.f32 %v617, %v317
    %v738 = vmul.f32 %v620, %v317
    %v739 = vmul.f32 %v623, %v317
    %v740 = vmul.f32 %v626, %v317
    %v741 = vmul.f32 %v629, %v317
    %v742 = vmul.f32 %v632, %v317
    %v743 = vmul.f32 %v635, %v317
    %v744 = vmul.f32 %v638, %v317
    %v745 = vmul.f32 %v641, %v317
    %v746 = vmul.f32 %v644, %v317
    %v747 = vmul.f32 %v647, %v317
    %v748 = vmul.f32 %v650, %v317
    %v749 = vmul.f32 %v653, %v317
    %v750 = vmul.f32 %v656, %v317
    %v751 = vmul.f32 %v659, %v317
    %v752 = vmul.f32 %v662, %v317
    %v753 = vmul.f32 %v665, %v317
    %v754 = vmul.f32 %v668, %v317
    %v755 = vmul.f32 %v671, %v317
    %v756 = vmul.f32 %v674, %v317
    %v757 = vmul.f32 %v677, %v317
    %v758 = vmul.f32 %v680, %v317
    %v759 = vmul.f32 %v683, %v317
    %v760 = vmul.f32 %v686, %v317
    %v761 = vmul.f32 %v689, %v317
    %v762 = vmul.f32 %v692, %v317
    %v763 = vmul.f32 %v695, %v317
    %v764 = vmul.f32 %v698, %v317
    %v765 = vmul.f32 %v701, %v317
    %v766 = vadd.f32 %v702, 1e-05
    %v767 = vadd.f32 %v703, 1e-05
    %v768 = vadd.f32 %v704, 1e-05
    %v769 = vadd.f32 %v705, 1e-05
    %v770 = vadd.f32 %v706, 1e-05
    %v771 = vadd.f32 %v707, 1e-05
    %v772 = vadd.f32 %v708, 1e-05
    %v773 = vadd.f32 %v709, 1e-05
    %v774 = vadd.f32 %v710, 1e-05
    %v775 = vadd.f32 %v711, 1e-05
    %v776 = vadd.f32 %v712, 1e-05
    %v777 = vadd.f32 %v713, 1e-05
    %v778 = vadd.f32 %v714, 1e-05
    %v779 = vadd.f32 %v715, 1e-05
    %v780 = vadd.f32 %v716, 1e-05
    %v781 = vadd.f32 %v717, 1e-05
    %v782 = vadd.f32 %v718, 1e-05
    %v783 = vadd.f32 %v719, 1e-05
    %v784 = vadd.f32 %v720, 1e-05
    %v785 = vadd.f32 %v721, 1e-05
    %v786 = vadd.f32 %v722, 1e-05
    %v787 = vadd.f32 %v723, 1e-05
    %v788 = vadd.f32 %v724, 1e-05
    %v789 = vadd.f32 %v725, 1e-05
    %v790 = vadd.f32 %v726, 1e-05
    %v791 = vadd.f32 %v727, 1e-05
    %v792 = vadd.f32 %v728, 1e-05
    %v793 = vadd.f32 %v729, 1e-05
    %v794 = vadd.f32 %v730, 1e-05
    %v795 = vadd.f32 %v731, 1e-05
    %v796 = vadd.f32 %v732, 1e-05
    %v797 = vadd.f32 %v733, 1e-05
    %v798 = vadd.f32 %v734, 1e-05
    %v799 = vadd.f32 %v735, 1e-05
    %v800 = vadd.f32 %v736, 1e-05
    %v801 = vadd.f32 %v737, 1e-05
    %v802 = vadd.f32 %v738, 1e-05
    %v803 = vadd.f32 %v739, 1e-05
    %v804 = vadd.f32 %v740, 1e-05
    %v805 = vadd.f32 %v741, 1e-05
    %v806 = vadd.f32 %v742, 1e-05
    %v807 = vadd.f32 %v743, 1e-05
    %v808 = vadd.f32 %v744, 1e-05
    %v809 = vadd.f32 %v745, 1e-05
    %v810 = vadd.f32 %v746, 1e-05
    %v811 = vadd.f32 %v747, 1e-05
    %v812 = vadd.f32 %v748, 1e-05
    %v813 = vadd.f32 %v749, 1e-05
    %v814 = vadd.f32 %v750, 1e-05
    %v815 = vadd.f32 %v751, 1e-05
    %v816 = vadd.f32 %v752, 1e-05
    %v817 = vadd.f32 %v753, 1e-05
    %v818 = vadd.f32 %v754, 1e-05
    %v819 = vadd.f32 %v755, 1e-05
    %v820 = vadd.f32 %v756, 1e-05
    %v821 = vadd.f32 %v757, 1e-05
    %v822 = vadd.f32 %v758, 1e-05
    %v823 = vadd.f32 %v759, 1e-05
    %v824 = vadd.f32 %v760, 1e-05
    %v825 = vadd.f32 %v761, 1e-05
    %v826 = vadd.f32 %v762, 1e-05
    %v827 = vadd.f32 %v763, 1e-05
    %v828 = vadd.f32 %v764, 1e-05
    %v829 = vadd.f32 %v765, 1e-05
    %v830 = vrsqrt.pop %v766
    %v831 = vrsqrt.pop %v767
    %v832 = vrsqrt.pop %v768
    %v833 = vrsqrt.pop %v769
    %v834 = vrsqrt.pop %v770
    %v835 = vrsqrt.pop %v771
    %v836 = vrsqrt.pop %v772
    %v837 = vrsqrt.pop %v773
    %v838 = vrsqrt.pop %v774
    %v839 = vrsqrt.pop %v775
    %v840 = vrsqrt.pop %v776
    %v841 = vrsqrt.pop %v777
    %v842 = vrsqrt.pop %v778
    %v843 = vrsqrt.pop %v779
    %v844 = vrsqrt.pop %v780
    %v845 = vrsqrt.pop %v781
    %v846 = vrsqrt.pop %v782
    %v847 = vrsqrt.pop %v783
    %v848 = vrsqrt.pop %v784
    %v849 = vrsqrt.pop %v785
    %v850 = vrsqrt.pop %v786
    %v851 = vrsqrt.pop %v787
    %v852 = vrsqrt.pop %v788
    %v853 = vrsqrt.pop %v789
    %v854 = vrsqrt.pop %v790
    %v855 = vrsqrt.pop %v791
    %v856 = vrsqrt.pop %v792
    %v857 = vrsqrt.pop %v793
    %v858 = vrsqrt.pop %v794
    %v859 = vrsqrt.pop %v795
    %v860 = vrsqrt.pop %v796
    %v861 = vrsqrt.pop %v797
    %v862 = vrsqrt.pop %v798
    %v863 = vrsqrt.pop %v799
    %v864 = vrsqrt.pop %v800
    %v865 = vrsqrt.pop %v801
    %v866 = vrsqrt.pop %v802
    %v867 = vrsqrt.pop %v803
    %v868 = vrsqrt.pop %v804
    %v869 = vrsqrt.pop %v805
    %v870 = vrsqrt.pop %v806
    %v871 = vrsqrt.pop %v807
    %v872 = vrsqrt.pop %v808
    %v873 = vrsqrt.pop %v809
    %v874 = vrsqrt.pop %v810
    %v875 = vrsqrt.pop %v811
    %v876 = vrsqrt.pop %v812
    %v877 = vrsqrt.pop %v813
    %v878 = vrsqrt.pop %v814
    %v879 = vrsqrt.pop %v815
    %v880 = vrsqrt.pop %v816
    %v881 = vrsqrt.pop %v817
    %v882 = vrsqrt.pop %v818
    %v883 = vrsqrt.pop %v819
    %v884 = vrsqrt.pop %v820
    %v885 = vrsqrt.pop %v821
    %v886 = vrsqrt.pop %v822
    %v887 = vrsqrt.pop %v823
    %v888 = vrsqrt.pop %v824
    %v889 = vrsqrt.pop %v825
    %v890 = vrsqrt.pop %v826
    %v891 = vrsqrt.pop %v827
    %v892 = vrsqrt.pop %v828
    %v893 = vrsqrt.pop %v829
    %v894 = vmul.f32 %v382, %v830
    %v895 = vmul.f32 %v383, %v831
    %v896 = vmul.f32 %v384, %v832
    %v897 = vmul.f32 %v385, %v833
    %v898 = vmul.f32 %v386, %v834
    %v899 = vmul.f32 %v387, %v835
    %v900 = vmul.f32 %v388, %v836
    %v901 = vmul.f32 %v389, %v837
    %v902 = vmul.f32 %v390, %v838
    %v903 = vmul.f32 %v391, %v839
    %v904 = vmul.f32 %v392, %v840
    %v905 = vmul.f32 %v393, %v841
    %v906 = vmul.f32 %v394, %v842
    %v907 = vmul.f32 %v395, %v843
    %v908 = vmul.f32 %v396, %v844
    %v909 = vmul.f32 %v397, %v845
    %v910 = vmul.f32 %v398, %v846
    %v911 = vmul.f32 %v399, %v847
    %v912 = vmul.f32 %v400, %v848
    %v913 = vmul.f32 %v401, %v849
    %v914 = vmul.f32 %v402, %v850
    %v915 = vmul.f32 %v403, %v851
    %v916 = vmul.f32 %v404, %v852
    %v917 = vmul.f32 %v405, %v853
    %v918 = vmul.f32 %v406, %v854
    %v919 = vmul.f32 %v407, %v855
    %v920 = vmul.f32 %v408, %v856
    %v921 = vmul.f32 %v409, %v857
    %v922 = vmul.f32 %v410, %v858
    %v923 = vmul.f32 %v411, %v859
    %v924 = vmul.f32 %v412, %v860
    %v925 = vmul.f32 %v413, %v861
    %v926 = vmul.f32 %v414, %v862
    %v927 = vmul.f32 %v415, %v863
    %v928 = vmul.f32 %v416, %v864
    %v929 = vmul.f32 %v417, %v865
    %v930 = vmul.f32 %v418, %v866
    %v931 = vmul.f32 %v419, %v867
    %v932 = vmul.f32 %v420, %v868
    %v933 = vmul.f32 %v421, %v869
    %v934 = vmul.f32 %v422, %v870
    %v935 = vmul.f32 %v423, %v871
    %v936 = vmul.f32 %v424, %v872
    %v937 = vmul.f32 %v425, %v873
    %v938 = vmul.f32 %v426, %v874
    %v939 = vmul.f32 %v427, %v875
    %v940 = vmul.f32 %v428, %v876
    %v941 = vmul.f32 %v429, %v877
    %v942 = vmul.f32 %v430, %v878
    %v943 = vmul.f32 %v431, %v879
    %v944 = vmul.f32 %v432, %v880
    %v945 = vmul.f32 %v433, %v881
    %v946 = vmul.f32 %v434, %v882
    %v947 = vmul.f32 %v435, %v883
    %v948 = vmul.f32 %v436, %v884
    %v949 = vmul.f32 %v437, %v885
    %v950 = vmul.f32 %v438, %v886
    %v951 = vmul.f32 %v439, %v887
    %v952 = vmul.f32 %v440, %v888
    %v953 = vmul.f32 %v441, %v889
    %v954 = vmul.f32 %v442, %v890
    %v955 = vmul.f32 %v443, %v891
    %v956 = vmul.f32 %v444, %v892
    %v957 = vmul.f32 %v445, %v893
    %v959 = vlaneseq
    %v960 = vshrl.u32 %v959, 7
    %v961 = vsub.s32 0, %v960
    %v962 = vrot.slane %v122, %v961
    %v964 = vmul.f32 %v894, %v962
    %v965 = vmul.f32 %v895, %v962
    %v966 = vmul.f32 %v896, %v962
    %v967 = vmul.f32 %v897, %v962
    %v968 = vmul.f32 %v898, %v962
    %v969 = vmul.f32 %v899, %v962
    %v970 = vmul.f32 %v900, %v962
    %v971 = vmul.f32 %v901, %v962
    %v972 = vmul.f32 %v902, %v962
    %v973 = vmul.f32 %v903, %v962
    %v974 = vmul.f32 %v904, %v962
    %v975 = vmul.f32 %v905, %v962
    %v976 = vmul.f32 %v906, %v962
    %v977 = vmul.f32 %v907, %v962
    %v978 = vmul.f32 %v908, %v962
    %v979 = vmul.f32 %v909, %v962
    %v980 = vmul.f32 %v910, %v962
    %v981 = vmul.f32 %v911, %v962
    %v982 = vmul.f32 %v912, %v962
    %v983 = vmul.f32 %v913, %v962
    %v984 = vmul.f32 %v914, %v962
    %v985 = vmul.f32 %v915, %v962
    %v986 = vmul.f32 %v916, %v962
    %v987 = vmul.f32 %v917, %v962
    %v988 = vmul.f32 %v918, %v962
    %v989 = vmul.f32 %v919, %v962
    %v990 = vmul.f32 %v920, %v962
    %v991 = vmul.f32 %v921, %v962
    %v992 = vmul.f32 %v922, %v962
    %v993 = vmul.f32 %v923, %v962
    %v994 = vmul.f32 %v924, %v962
    %v995 = vmul.f32 %v925, %v962
    %v996 = vmul.f32 %v926, %v962
    %v997 = vmul.f32 %v927, %v962
    %v998 = vmul.f32 %v928, %v962
    %v999 = vmul.f32 %v929, %v962
    %v1000 = vmul.f32 %v930, %v962
    %v1001 = vmul.f32 %v931, %v962
    %v1002 = vmul.f32 %v932, %v962
    %v1003 = vmul.f32 %v933, %v962
    %v1004 = vmul.f32 %v934, %v962
    %v1005 = vmul.f32 %v935, %v962
    %v1006 = vmul.f32 %v936, %v962
    %v1007 = vmul.f32 %v937, %v962
    %v1008 = vmul.f32 %v938, %v962
    %v1009 = vmul.f32 %v939, %v962
    %v1010 = vmul.f32 %v940, %v962
    %v1011 = vmul.f32 %v941, %v962
    %v1012 = vmul.f32 %v942, %v962
    %v1013 = vmul.f32 %v943, %v962
    %v1014 = vmul.f32 %v944, %v962
    %v1015 = vmul.f32 %v945, %v962
    %v1016 = vmul.f32 %v946, %v962
    %v1017 = vmul.f32 %v947, %v962
    %v1018 = vmul.f32 %v948, %v962
    %v1019 = vmul.f32 %v949, %v962
    %v1020 = vmul.f32 %v950, %v962
    %v1021 = vmul.f32 %v951, %v962
    %v1022 = vmul.f32 %v952, %v962
    %v1023 = vmul.f32 %v953, %v962
    %v1024 = vmul.f32 %v954, %v962
    %v1025 = vmul.f32 %v955, %v962
    %v1026 = vmul.f32 %v956, %v962
    %v1027 = vmul.f32 %v957, %v962
    %v1029 = vlaneseq
    %v1030 = vshrl.u32 %v1029, 7
    %v1031 = vsub.s32 0, %v1030
    %v1032 = vrot.slane %v123, %v1031
    %v1034 = vadd.f32 %v964, %v1032
    %v1035 = vadd.f32 %v965, %v1032
    %v1036 = vadd.f32 %v966, %v1032
    %v1037 = vadd.f32 %v967, %v1032
    %v1038 = vadd.f32 %v968, %v1032
    %v1039 = vadd.f32 %v969, %v1032
    %v1040 = vadd.f32 %v970, %v1032
    %v1041 = vadd.f32 %v971, %v1032
    %v1042 = vadd.f32 %v972, %v1032
    %v1043 = vadd.f32 %v973, %v1032
    %v1044 = vadd.f32 %v974, %v1032
    %v1045 = vadd.f32 %v975, %v1032
    %v1046 = vadd.f32 %v976, %v1032
    %v1047 = vadd.f32 %v977, %v1032
    %v1048 = vadd.f32 %v978, %v1032
    %v1049 = vadd.f32 %v979, %v1032
    %v1050 = vadd.f32 %v980, %v1032
    %v1051 = vadd.f32 %v981, %v1032
    %v1052 = vadd.f32 %v982, %v1032
    %v1053 = vadd.f32 %v983, %v1032
    %v1054 = vadd.f32 %v984, %v1032
    %v1055 = vadd.f32 %v985, %v1032
    %v1056 = vadd.f32 %v986, %v1032
    %v1057 = vadd.f32 %v987, %v1032
    %v1058 = vadd.f32 %v988, %v1032
    %v1059 = vadd.f32 %v989, %v1032
    %v1060 = vadd.f32 %v990, %v1032
    %v1061 = vadd.f32 %v991, %v1032
    %v1062 = vadd.f32 %v992, %v1032
    %v1063 = vadd.f32 %v993, %v1032
    %v1064 = vadd.f32 %v994, %v1032
    %v1065 = vadd.f32 %v995, %v1032
    %v1066 = vadd.f32 %v996, %v1032
    %v1067 = vadd.f32 %v997, %v1032
    %v1068 = vadd.f32 %v998, %v1032
    %v1069 = vadd.f32 %v999, %v1032
    %v1070 = vadd.f32 %v1000, %v1032
    %v1071 = vadd.f32 %v1001, %v1032
    %v1072 = vadd.f32 %v1002, %v1032
    %v1073 = vadd.f32 %v1003, %v1032
    %v1074 = vadd.f32 %v1004, %v1032
    %v1075 = vadd.f32 %v1005, %v1032
    %v1076 = vadd.f32 %v1006, %v1032
    %v1077 = vadd.f32 %v1007, %v1032
    %v1078 = vadd.f32 %v1008, %v1032
    %v1079 = vadd.f32 %v1009, %v1032
    %v1080 = vadd.f32 %v1010, %v1032
    %v1081 = vadd.f32 %v1011, %v1032
    %v1082 = vadd.f32 %v1012, %v1032
    %v1083 = vadd.f32 %v1013, %v1032
    %v1084 = vadd.f32 %v1014, %v1032
    %v1085 = vadd.f32 %v1015, %v1032
    %v1086 = vadd.f32 %v1016, %v1032
    %v1087 = vadd.f32 %v1017, %v1032
    %v1088 = vadd.f32 %v1018, %v1032
    %v1089 = vadd.f32 %v1019, %v1032
    %v1090 = vadd.f32 %v1020, %v1032
    %v1091 = vadd.f32 %v1021, %v1032
    %v1092 = vadd.f32 %v1022, %v1032
    %v1093 = vadd.f32 %v1023, %v1032
    %v1094 = vadd.f32 %v1024, %v1032
    %v1095 = vadd.f32 %v1025, %v1032
    %v1096 = vadd.f32 %v1026, %v1032
    %v1097 = vadd.f32 %v1027, %v1032
    %v1098 = vpack.c.bf16 %v1035, %v1034
    %v1099 = vpack.c.bf16 %v1037, %v1036
    %v1100 = vpack.c.bf16 %v1039, %v1038
    %v1101 = vpack.c.bf16 %v1041, %v1040
    %v1102 = vpack.c.bf16 %v1043, %v1042
    %v1103 = vpack.c.bf16 %v1045, %v1044
    %v1104 = vpack.c.bf16 %v1047, %v1046
    %v1105 = vpack.c.bf16 %v1049, %v1048
    %v1106 = vpack.c.bf16 %v1051, %v1050
    %v1107 = vpack.c.bf16 %v1053, %v1052
    %v1108 = vpack.c.bf16 %v1055, %v1054
    %v1109 = vpack.c.bf16 %v1057, %v1056
    %v1110 = vpack.c.bf16 %v1059, %v1058
    %v1111 = vpack.c.bf16 %v1061, %v1060
    %v1112 = vpack.c.bf16 %v1063, %v1062
    %v1113 = vpack.c.bf16 %v1065, %v1064
    %v1114 = vpack.c.bf16 %v1067, %v1066
    %v1115 = vpack.c.bf16 %v1069, %v1068
    %v1116 = vpack.c.bf16 %v1071, %v1070
    %v1117 = vpack.c.bf16 %v1073, %v1072
    %v1118 = vpack.c.bf16 %v1075, %v1074
    %v1119 = vpack.c.bf16 %v1077, %v1076
    %v1120 = vpack.c.bf16 %v1079, %v1078
    %v1121 = vpack.c.bf16 %v1081, %v1080
    %v1122 = vpack.c.bf16 %v1083, %v1082
    %v1123 = vpack.c.bf16 %v1085, %v1084
    %v1124 = vpack.c.bf16 %v1087, %v1086
    %v1125 = vpack.c.bf16 %v1089, %v1088
    %v1126 = vpack.c.bf16 %v1091, %v1090
    %v1127 = vpack.c.bf16 %v1093, %v1092
    %v1128 = vpack.c.bf16 %v1095, %v1094
    %v1129 = vpack.c.bf16 %v1097, %v1096
    %v1130 = vld [vmem:[%s3] sm:$0xff]
    %v1131 = vld [vmem:[%s3 + $0x8] sm:$0xff]
    %v1132 = vld [vmem:[%s3 + $0x10] sm:$0xff]
    %v1133 = vld [vmem:[%s3 + $0x18] sm:$0xff]
    %v1134 = vld [vmem:[%s3 + $0x20] sm:$0xff]
    %v1135 = vld [vmem:[%s3 + $0x28] sm:$0xff]
    %v1136 = vld [vmem:[%s3 + $0x30] sm:$0xff]
    %v1137 = vld [vmem:[%s3 + $0x38] sm:$0xff]
    %v1138 = vpack.c.bf16 %v1132, %v1130
    %v1139 = vpack.c.bf16 %v1133, %v1131
    %v1140 = vpack.c.bf16 %v1136, %v1134
    %v1141 = vpack.c.bf16 %v1137, %v1135
    %v1142 = vld [vmem:[%s4] sm:$0x3]
    %v1144 = vlaneseq
    %v1145 = vshrl.u32 %v1144, 7
    %v1146 = vsub.s32 0, %v1145
    %v1147 = vrot.slane %v1142, %v1146
    %v1148 = vlaneseq
    %v1149 = vshrl.u32 %v1148, 7
    %v1150 = vsub.s32 1, %v1149
    %v1151 = vrot.slane %v1142, %v1150
    %v1155 = vsel %vm124, %v1098, 0
    %v1158 = vsel %vm124, %v1099, 0
    %v1161 = vsel %vm124, %v1100, 0
    %v1164 = vsel %vm124, %v1101, 0
    %v1167 = vsel %vm124, %v1102, 0
    %v1170 = vsel %vm124, %v1103, 0
    %v1173 = vsel %vm124, %v1104, 0
    %v1176 = vsel %vm124, %v1105, 0
    %v1179 = vsel %vm124, %v1106, 0
    %v1182 = vsel %vm124, %v1107, 0
    %v1185 = vsel %vm124, %v1108, 0
    %v1188 = vsel %vm124, %v1109, 0
    %v1191 = vsel %vm124, %v1110, 0
    %v1194 = vsel %vm124, %v1111, 0
    %v1197 = vsel %vm124, %v1112, 0
    %v1200 = vsel %vm124, %v1113, 0
    %v1203 = vsel %vm124, %v1114, 0
    %v1206 = vsel %vm124, %v1115, 0
    %v1209 = vsel %vm124, %v1116, 0
    %v1212 = vsel %vm124, %v1117, 0
    %v1215 = vsel %vm124, %v1118, 0
    %v1218 = vsel %vm124, %v1119, 0
    %v1221 = vsel %vm124, %v1120, 0
    %v1224 = vsel %vm124, %v1121, 0
    %v1227 = vsel %vm124, %v1122, 0
    %v1230 = vsel %vm124, %v1123, 0
    %v1233 = vsel %vm124, %v1124, 0
    %v1236 = vsel %vm124, %v1125, 0
    %v1239 = vsel %vm124, %v1126, 0
    %v1242 = vsel %vm124, %v1127, 0
    %v1245 = vsel %vm124, %v1128, 0
    %v1248 = vsel %vm124, %v1129, 0
    %1250 = vmatprep.subr.bf16.mxu0 %v1139
    %1251 = vmatpush1.bf16.msra.mxu0 %v1138
    %1252 = vmatprep.subr.bf16.mxu0 %v1141
    %1253 = vmatpush1.bf16.msra.mxu0 %v1140
    %1254 = vmatprep.subr.bf16.mxu0 0
    %1255 = vmatpush1.bf16.msra.mxu0 0
    %1256 = vmatprep.subr.bf16.mxu0 0
    %1257 = vmatpush1.bf16.msra.mxu0 0
    %1258 = vmatprep.subr.bf16.mxu0 0
    %1259 = vmatpush1.bf16.msra.mxu0 0
    %1260 = vmatprep.subr.bf16.mxu0 0
    %1261 = vmatpush1.bf16.msra.mxu0 0
    %1262 = vmatprep.subr.bf16.mxu0 0
    %1263 = vmatpush1.bf16.msra.mxu0 0
    %1264 = vmatprep.subr.bf16.mxu0 0
    %1265 = vmatpush1.bf16.msra.mxu0 0
    %1266 = vmatprep.subr.bf16.mxu0 0
    %1267 = vmatpush1.bf16.msra.mxu0 0
    %1268 = vmatprep.subr.bf16.mxu0 0
    %1269 = vmatpush1.bf16.msra.mxu0 0
    %1270 = vmatprep.subr.bf16.mxu0 0
    %1271 = vmatpush1.bf16.msra.mxu0 0
    %1272 = vmatprep.subr.bf16.mxu0 0
    %1273 = vmatpush1.bf16.msra.mxu0 0
    %1274 = vmatprep.subr.bf16.mxu0 0
    %1275 = vmatpush1.bf16.msra.mxu0 0
    %1276 = vmatprep.subr.bf16.mxu0 0
    %1277 = vmatpush1.bf16.msra.mxu0 0
    %1278 = vmatprep.subr.bf16.mxu0 0
    %1279 = vmatpush1.bf16.msra.mxu0 0
    %1280 = vmatprep.subr.bf16.mxu0 0
    %1281 = vmatpush1.bf16.msra.mxu0 0
    %1282 = vmatprep.mubr.bf16.mxu0 0
    %1283 = vmatmul.mubr.bf16.gmra.mrb[0].mxu0 %v1155
    %v1284 = vpop.f32.mrb[0].mxu0
    %v1285 = vadd.f32 %v1147, %v1284
    %v1286 = vpop.f32.mrb[0].mxu0
    %v1287 = vadd.f32 %v1151, %v1286
    %v1288 = vpop.f32.mrb[0].mxu0
    %v1289 = vadd.f32 %v1147, %v1288
    %v1290 = vpop.f32.mrb[0].mxu0
    %v1291 = vadd.f32 %v1151, %v1290
    %1292 = vmatprep.mubr.bf16.mxu0 0
    %1293 = vmatmul.mubr.bf16.gmra.mrb[0].mxu0 %v1158
    %v1294 = vpop.f32.mrb[0].mxu0
    %v1295 = vadd.f32 %v1147, %v1294
    %v1296 = vpop.f32.mrb[0].mxu0
    %v1297 = vadd.f32 %v1151, %v1296
    %v1298 = vpop.f32.mrb[0].mxu0
    %v1299 = vadd.f32 %v1147, %v1298
    %v1300 = vpop.f32.mrb[0].mxu0
    %v1301 = vadd.f32 %v1151, %v1300
    %1302 = vmatprep.mubr.bf16.mxu0 0
    %1303 = vmatmul.mubr.bf16.gmra.mrb[0].mxu0 %v1161
    %v1304 = vpop.f32.mrb[0].mxu0
    %v1305 = vadd.f32 %v1147, %v1304
    %v1306 = vpop.f32.mrb[0].mxu0
    %v1307 = vadd.f32 %v1151, %v1306
    %v1308 = vpop.f32.mrb[0].mxu0
    %v1309 = vadd.f32 %v1147, %v1308
    %v1310 = vpop.f32.mrb[0].mxu0
    %v1311 = vadd.f32 %v1151, %v1310
    %1312 = vmatprep.mubr.bf16.mxu0 0
    %1313 = vmatmul.mubr.bf16.gmra.mrb[0].mxu0 %v1164
    %v1314 = vpop.f32.mrb[0].mxu0
    %v1315 = vadd.f32 %v1147, %v1314
    %v1316 = vpop.f32.mrb[0].mxu0
    %v1317 = vadd.f32 %v1151, %v1316
    %v1318 = vpop.f32.mrb[0].mxu0
    %v1319 = vadd.f32 %v1147, %v1318
    %v1320 = vpop.f32.mrb[0].mxu0
    %v1321 = vadd.f32 %v1151, %v1320
    %1322 = vmatprep.mubr.bf16.mxu0 0
    %1323 = vmatmul.mubr.bf16.gmra.mrb[0].mxu0 %v1167
    %v1324 = vpop.f32.mrb[0].mxu0
    %v1325 = vadd.f32 %v1147, %v1324
    %v1326 = vpop.f32.mrb[0].mxu0
    %v1327 = vadd.f32 %v1151, %v1326
    %v1328 = vpop.f32.mrb[0].mxu0
    %v1329 = vadd.f32 %v1147, %v1328
    %v1330 = vpop.f32.mrb[0].mxu0
    %v1331 = vadd.f32 %v1151, %v1330
    %1332 = vmatprep.mubr.bf16.mxu0 0
    %1333 = vmatmul.mubr.bf16.gmra.mrb[0].mxu0 %v1170
    %v1334 = vpop.f32.mrb[0].mxu0
    %v1335 = vadd.f32 %v1147, %v1334
    %v1336 = vpop.f32.mrb[0].mxu0
    %v1337 = vadd.f32 %v1151, %v1336
    %v1338 = vpop.f32.mrb[0].mxu0
    %v1339 = vadd.f32 %v1147, %v1338
    %v1340 = vpop.f32.mrb[0].mxu0
    %v1341 = vadd.f32 %v1151, %v1340
    %1342 = vmatprep.mubr.bf16.mxu0 0
    %1343 = vmatmul.mubr.bf16.gmra.mrb[0].mxu0 %v1173
    %v1344 = vpop.f32.mrb[0].mxu0
    %v1345 = vadd.f32 %v1147, %v1344
    %v1346 = vpop.f32.mrb[0].mxu0
    %v1347 = vadd.f32 %v1151, %v1346
    %v1348 = vpop.f32.mrb[0].mxu0
    %v1349 = vadd.f32 %v1147, %v1348
    %v1350 = vpop.f32.mrb[0].mxu0
    %v1351 = vadd.f32 %v1151, %v1350
    %1352 = vmatprep.mubr.bf16.mxu0 0
    %1353 = vmatmul.mubr.bf16.gmra.mrb[0].mxu0 %v1176
    %v1354 = vpop.f32.mrb[0].mxu0
    %v1355 = vadd.f32 %v1147, %v1354
    %v1356 = vpop.f32.mrb[0].mxu0
    %v1357 = vadd.f32 %v1151, %v1356
    %v1358 = vpop.f32.mrb[0].mxu0
    %v1359 = vadd.f32 %v1147, %v1358
    %v1360 = vpop.f32.mrb[0].mxu0
    %v1361 = vadd.f32 %v1151, %v1360
    %1362 = vmatprep.mubr.bf16.mxu0 0
    %1363 = vmatmul.mubr.bf16.gmra.mrb[0].mxu0 %v1179
    %v1364 = vpop.f32.mrb[0].mxu0
    %v1365 = vadd.f32 %v1147, %v1364
    %v1366 = vpop.f32.mrb[0].mxu0
    %v1367 = vadd.f32 %v1151, %v1366
    %v1368 = vpop.f32.mrb[0].mxu0
    %v1369 = vadd.f32 %v1147, %v1368
    %v1370 = vpop.f32.mrb[0].mxu0
    %v1371 = vadd.f32 %v1151, %v1370
    %1372 = vmatprep.mubr.bf16.mxu0 0
    %1373 = vmatmul.mubr.bf16.gmra.mrb[0].mxu0 %v1182
    %v1374 = vpop.f32.mrb[0].mxu0
    %v1375 = vadd.f32 %v1147, %v1374
    %v1376 = vpop.f32.mrb[0].mxu0
    %v1377 = vadd.f32 %v1151, %v1376
    %v1378 = vpop.f32.mrb[0].mxu0
    %v1379 = vadd.f32 %v1147, %v1378
    %v1380 = vpop.f32.mrb[0].mxu0
    %v1381 = vadd.f32 %v1151, %v1380
    %1382 = vmatprep.mubr.bf16.mxu0 0
    %1383 = vmatmul.mubr.bf16.gmra.mrb[0].mxu0 %v1185
    %v1384 = vpop.f32.mrb[0].mxu0
    %v1385 = vadd.f32 %v1147, %v1384
    %v1386 = vpop.f32.mrb[0].mxu0
    %v1387 = vadd.f32 %v1151, %v1386
    %v1388 = vpop.f32.mrb[0].mxu0
    %v1389 = vadd.f32 %v1147, %v1388
    %v1390 = vpop.f32.mrb[0].mxu0
    %v1391 = vadd.f32 %v1151, %v1390
    %1392 = vmatprep.mubr.bf16.mxu0 0
    %1393 = vmatmul.mubr.bf16.gmra.mrb[0].mxu0 %v1188
    %v1394 = vpop.f32.mrb[0].mxu0
    %v1395 = vadd.f32 %v1147, %v1394
    %v1396 = vpop.f32.mrb[0].mxu0
    %v1397 = vadd.f32 %v1151, %v1396
    %v1398 = vpop.f32.mrb[0].mxu0
    %v1399 = vadd.f32 %v1147, %v1398
    %v1400 = vpop.f32.mrb[0].mxu0
    %v1401 = vadd.f32 %v1151, %v1400
    %1402 = vmatprep.mubr.bf16.mxu0 0
    %1403 = vmatmul.mubr.bf16.gmra.mrb[0].mxu0 %v1191
    %v1404 = vpop.f32.mrb[0].mxu0
    %v1405 = vadd.f32 %v1147, %v1404
    %v1406 = vpop.f32.mrb[0].mxu0
    %v1407 = vadd.f32 %v1151, %v1406
    %v1408 = vpop.f32.mrb[0].mxu0
    %v1409 = vadd.f32 %v1147, %v1408
    %v1410 = vpop.f32.mrb[0].mxu0
    %v1411 = vadd.f32 %v1151, %v1410
    %1412 = vmatprep.mubr.bf16.mxu0 0
    %1413 = vmatmul.mubr.bf16.gmra.mrb[0].mxu0 %v1194
    %v1414 = vpop.f32.mrb[0].mxu0
    %v1415 = vadd.f32 %v1147, %v1414
    %v1416 = vpop.f32.mrb[0].mxu0
    %v1417 = vadd.f32 %v1151, %v1416
    %v1418 = vpop.f32.mrb[0].mxu0
    %v1419 = vadd.f32 %v1147, %v1418
    %v1420 = vpop.f32.mrb[0].mxu0
    %v1421 = vadd.f32 %v1151, %v1420
    %1422 = vmatprep.mubr.bf16.mxu0 0
    %1423 = vmatmul.mubr.bf16.gmra.mrb[0].mxu0 %v1197
    %v1424 = vpop.f32.mrb[0].mxu0
    %v1425 = vadd.f32 %v1147, %v1424
    %v1426 = vpop.f32.mrb[0].mxu0
    %v1427 = vadd.f32 %v1151, %v1426
    %v1428 = vpop.f32.mrb[0].mxu0
    %v1429 = vadd.f32 %v1147, %v1428
    %v1430 = vpop.f32.mrb[0].mxu0
    %v1431 = vadd.f32 %v1151, %v1430
    %1432 = vmatprep.mubr.bf16.mxu0 0
    %1433 = vmatmul.mubr.bf16.gmra.mrb[0].mxu0 %v1200
    %v1434 = vpop.f32.mrb[0].mxu0
    %v1435 = vadd.f32 %v1147, %v1434
    %v1436 = vpop.f32.mrb[0].mxu0
    %v1437 = vadd.f32 %v1151, %v1436
    %v1438 = vpop.f32.mrb[0].mxu0
    %v1439 = vadd.f32 %v1147, %v1438
    %v1440 = vpop.f32.mrb[0].mxu0
    %v1441 = vadd.f32 %v1151, %v1440
    %1442 = vmatprep.mubr.bf16.mxu0 0
    %1443 = vmatmul.mubr.bf16.gmra.mrb[0].mxu0 %v1203
    %v1444 = vpop.f32.mrb[0].mxu0
    %v1445 = vadd.f32 %v1147, %v1444
    %v1446 = vpop.f32.mrb[0].mxu0
    %v1447 = vadd.f32 %v1151, %v1446
    %v1448 = vpop.f32.mrb[0].mxu0
    %v1449 = vadd.f32 %v1147, %v1448
    %v1450 = vpop.f32.mrb[0].mxu0
    %v1451 = vadd.f32 %v1151, %v1450
    %1452 = vmatprep.mubr.bf16.mxu0 0
    %1453 = vmatmul.mubr.bf16.gmra.mrb[0].mxu0 %v1206
    %v1454 = vpop.f32.mrb[0].mxu0
    %v1455 = vadd.f32 %v1147, %v1454
    %v1456 = vpop.f32.mrb[0].mxu0
    %v1457 = vadd.f32 %v1151, %v1456
    %v1458 = vpop.f32.mrb[0].mxu0
    %v1459 = vadd.f32 %v1147, %v1458
    %v1460 = vpop.f32.mrb[0].mxu0
    %v1461 = vadd.f32 %v1151, %v1460
    %1462 = vmatprep.mubr.bf16.mxu0 0
    %1463 = vmatmul.mubr.bf16.gmra.mrb[0].mxu0 %v1209
    %v1464 = vpop.f32.mrb[0].mxu0
    %v1465 = vadd.f32 %v1147, %v1464
    %v1466 = vpop.f32.mrb[0].mxu0
    %v1467 = vadd.f32 %v1151, %v1466
    %v1468 = vpop.f32.mrb[0].mxu0
    %v1469 = vadd.f32 %v1147, %v1468
    %v1470 = vpop.f32.mrb[0].mxu0
    %v1471 = vadd.f32 %v1151, %v1470
    %1472 = vmatprep.mubr.bf16.mxu0 0
    %1473 = vmatmul.mubr.bf16.gmra.mrb[0].mxu0 %v1212
    %v1474 = vpop.f32.mrb[0].mxu0
    %v1475 = vadd.f32 %v1147, %v1474
    %v1476 = vpop.f32.mrb[0].mxu0
    %v1477 = vadd.f32 %v1151, %v1476
    %v1478 = vpop.f32.mrb[0].mxu0
    %v1479 = vadd.f32 %v1147, %v1478
    %v1480 = vpop.f32.mrb[0].mxu0
    %v1481 = vadd.f32 %v1151, %v1480
    %1482 = vmatprep.mubr.bf16.mxu0 0
    %1483 = vmatmul.mubr.bf16.gmra.mrb[0].mxu0 %v1215
    %v1484 = vpop.f32.mrb[0].mxu0
    %v1485 = vadd.f32 %v1147, %v1484
    %v1486 = vpop.f32.mrb[0].mxu0
    %v1487 = vadd.f32 %v1151, %v1486
    %v1488 = vpop.f32.mrb[0].mxu0
    %v1489 = vadd.f32 %v1147, %v1488
    %v1490 = vpop.f32.mrb[0].mxu0
    %v1491 = vadd.f32 %v1151, %v1490
    %1492 = vmatprep.mubr.bf16.mxu0 0
    %1493 = vmatmul.mubr.bf16.gmra.mrb[0].mxu0 %v1218
    %v1494 = vpop.f32.mrb[0].mxu0
    %v1495 = vadd.f32 %v1147, %v1494
    %v1496 = vpop.f32.mrb[0].mxu0
    %v1497 = vadd.f32 %v1151, %v1496
    %v1498 = vpop.f32.mrb[0].mxu0
    %v1499 = vadd.f32 %v1147, %v1498
    %v1500 = vpop.f32.mrb[0].mxu0
    %v1501 = vadd.f32 %v1151, %v1500
    %1502 = vmatprep.mubr.bf16.mxu0 0
    %1503 = vmatmul.mubr.bf16.gmra.mrb[0].mxu0 %v1221
    %v1504 = vpop.f32.mrb[0].mxu0
    %v1505 = vadd.f32 %v1147, %v1504
    %v1506 = vpop.f32.mrb[0].mxu0
    %v1507 = vadd.f32 %v1151, %v1506
    %v1508 = vpop.f32.mrb[0].mxu0
    %v1509 = vadd.f32 %v1147, %v1508
    %v1510 = vpop.f32.mrb[0].mxu0
    %v1511 = vadd.f32 %v1151, %v1510
    %1512 = vmatprep.mubr.bf16.mxu0 0
    %1513 = vmatmul.mubr.bf16.gmra.mrb[0].mxu0 %v1224
    %v1514 = vpop.f32.mrb[0].mxu0
    %v1515 = vadd.f32 %v1147, %v1514
    %v1516 = vpop.f32.mrb[0].mxu0
    %v1517 = vadd.f32 %v1151, %v1516
    %v1518 = vpop.f32.mrb[0].mxu0
    %v1519 = vadd.f32 %v1147, %v1518
    %v1520 = vpop.f32.mrb[0].mxu0
    %v1521 = vadd.f32 %v1151, %v1520
    %1522 = vmatprep.mubr.bf16.mxu0 0
    %1523 = vmatmul.mubr.bf16.gmra.mrb[0].mxu0 %v1227
    %v1524 = vpop.f32.mrb[0].mxu0
    %v1525 = vadd.f32 %v1147, %v1524
    %v1526 = vpop.f32.mrb[0].mxu0
    %v1527 = vadd.f32 %v1151, %v1526
    %v1528 = vpop.f32.mrb[0].mxu0
    %v1529 = vadd.f32 %v1147, %v1528
    %v1530 = vpop.f32.mrb[0].mxu0
    %v1531 = vadd.f32 %v1151, %v1530
    %1532 = vmatprep.mubr.bf16.mxu0 0
    %1533 = vmatmul.mubr.bf16.gmra.mrb[0].mxu0 %v1230
    %v1534 = vpop.f32.mrb[0].mxu0
    %v1535 = vadd.f32 %v1147, %v1534
    %v1536 = vpop.f32.mrb[0].mxu0
    %v1537 = vadd.f32 %v1151, %v1536
    %v1538 = vpop.f32.mrb[0].mxu0
    %v1539 = vadd.f32 %v1147, %v1538
    %v1540 = vpop.f32.mrb[0].mxu0
    %v1541 = vadd.f32 %v1151, %v1540
    %1542 = vmatprep.mubr.bf16.mxu0 0
    %1543 = vmatmul.mubr.bf16.gmra.mrb[0].mxu0 %v1233
    %v1544 = vpop.f32.mrb[0].mxu0
    %v1545 = vadd.f32 %v1147, %v1544
    %v1546 = vpop.f32.mrb[0].mxu0
    %v1547 = vadd.f32 %v1151, %v1546
    %v1548 = vpop.f32.mrb[0].mxu0
    %v1549 = vadd.f32 %v1147, %v1548
    %v1550 = vpop.f32.mrb[0].mxu0
    %v1551 = vadd.f32 %v1151, %v1550
    %1552 = vmatprep.mubr.bf16.mxu0 0
    %1553 = vmatmul.mubr.bf16.gmra.mrb[0].mxu0 %v1236
    %v1554 = vpop.f32.mrb[0].mxu0
    %v1555 = vadd.f32 %v1147, %v1554
    %v1556 = vpop.f32.mrb[0].mxu0
    %v1557 = vadd.f32 %v1151, %v1556
    %v1558 = vpop.f32.mrb[0].mxu0
    %v1559 = vadd.f32 %v1147, %v1558
    %v1560 = vpop.f32.mrb[0].mxu0
    %v1561 = vadd.f32 %v1151, %v1560
    %1562 = vmatprep.mubr.bf16.mxu0 0
    %1563 = vmatmul.mubr.bf16.gmra.mrb[0].mxu0 %v1239
    %v1564 = vpop.f32.mrb[0].mxu0
    %v1565 = vadd.f32 %v1147, %v1564
    %v1566 = vpop.f32.mrb[0].mxu0
    %v1567 = vadd.f32 %v1151, %v1566
    %v1568 = vpop.f32.mrb[0].mxu0
    %v1569 = vadd.f32 %v1147, %v1568
    %v1570 = vpop.f32.mrb[0].mxu0
    %v1571 = vadd.f32 %v1151, %v1570
    %1572 = vmatprep.mubr.bf16.mxu0 0
    %1573 = vmatmul.mubr.bf16.gmra.mrb[0].mxu0 %v1242
    %v1574 = vpop.f32.mrb[0].mxu0
    %v1575 = vadd.f32 %v1147, %v1574
    %v1576 = vpop.f32.mrb[0].mxu0
    %v1577 = vadd.f32 %v1151, %v1576
    %v1578 = vpop.f32.mrb[0].mxu0
    %v1579 = vadd.f32 %v1147, %v1578
    %v1580 = vpop.f32.mrb[0].mxu0
    %v1581 = vadd.f32 %v1151, %v1580
    %1582 = vmatprep.mubr.bf16.mxu0 0
    %1583 = vmatmul.mubr.bf16.gmra.mrb[0].mxu0 %v1245
    %v1584 = vpop.f32.mrb[0].mxu0
    %v1585 = vadd.f32 %v1147, %v1584
    %v1586 = vpop.f32.mrb[0].mxu0
    %v1587 = vadd.f32 %v1151, %v1586
    %v1588 = vpop.f32.mrb[0].mxu0
    %v1589 = vadd.f32 %v1147, %v1588
    %v1590 = vpop.f32.mrb[0].mxu0
    %v1591 = vadd.f32 %v1151, %v1590
    %1592 = vmatprep.mubr.bf16.mxu0 0
    %1593 = vmatmul.mubr.bf16.gmra.mrb[0].mxu0 %v1248
    %v1594 = vpop.f32.mrb[0].mxu0
    %v1595 = vadd.f32 %v1147, %v1594
    %v1596 = vpop.f32.mrb[0].mxu0
    %v1597 = vadd.f32 %v1151, %v1596
    %v1598 = vpop.f32.mrb[0].mxu0
    %v1599 = vadd.f32 %v1147, %v1598
    %v1600 = vpop.f32.mrb[0].mxu0
    %v1601 = vadd.f32 %v1151, %v1600
    %1602 = vdwg.mxu0
    %1603 = vst [vmem:[%s5] sm:$0xff] %v1285
    %1604 = vst [vmem:[%s5 + $0x8] sm:$0xff] %v1287
    %1605 = vst [vmem:[%s5 + $0x10] sm:$0xff] %v1289
    %1606 = vst [vmem:[%s5 + $0x18] sm:$0xff] %v1291
    %1607 = vst [vmem:[%s5 + $0x20] sm:$0xff] %v1295
    %1608 = vst [vmem:[%s5 + $0x28] sm:$0xff] %v1297
    %1609 = vst [vmem:[%s5 + $0x30] sm:$0xff] %v1299
    %1610 = vst [vmem:[%s5 + $0x38] sm:$0xff] %v1301
    %1611 = vst [vmem:[%s5 + $0x40] sm:$0xff] %v1305
    %1612 = vst [vmem:[%s5 + $0x48] sm:$0xff] %v1307
    %1613 = vst [vmem:[%s5 + $0x50] sm:$0xff] %v1309
    %1614 = vst [vmem:[%s5 + $0x58] sm:$0xff] %v1311
    %1615 = vst [vmem:[%s5 + $0x60] sm:$0xff] %v1315
    %1616 = vst [vmem:[%s5 + $0x68] sm:$0xff] %v1317
    %1617 = vst [vmem:[%s5 + $0x70] sm:$0xff] %v1319
    %1618 = vst [vmem:[%s5 + $0x78] sm:$0xff] %v1321
    %1619 = vst [vmem:[%s5 + $0x80] sm:$0xff] %v1325
    %1620 = vst [vmem:[%s5 + $0x88] sm:$0xff] %v1327
    %1621 = vst [vmem:[%s5 + $0x90] sm:$0xff] %v1329
    %1622 = vst [vmem:[%s5 + $0x98] sm:$0xff] %v1331
    %1623 = vst [vmem:[%s5 + $0xa0] sm:$0xff] %v1335
    %1624 = vst [vmem:[%s5 + $0xa8] sm:$0xff] %v1337
    %1625 = vst [vmem:[%s5 + $0xb0] sm:$0xff] %v1339
    %1626 = vst [vmem:[%s5 + $0xb8] sm:$0xff] %v1341
    %1627 = vst [vmem:[%s5 + $0xc0] sm:$0xff] %v1345
    %1628 = vst [vmem:[%s5 + $0xc8] sm:$0xff] %v1347
    %1629 = vst [vmem:[%s5 + $0xd0] sm:$0xff] %v1349
    %1630 = vst [vmem:[%s5 + $0xd8] sm:$0xff] %v1351
    %1631 = vst [vmem:[%s5 + $0xe0] sm:$0xff] %v1355
    %1632 = vst [vmem:[%s5 + $0xe8] sm:$0xff] %v1357
    %1633 = vst [vmem:[%s5 + $0xf0] sm:$0xff] %v1359
    %1634 = vst [vmem:[%s5 + $0xf8] sm:$0xff] %v1361
    %1635 = vst [vmem:[%s5 + $0x100] sm:$0xff] %v1365
    %1636 = vst [vmem:[%s5 + $0x108] sm:$0xff] %v1367
    %1637 = vst [vmem:[%s5 + $0x110] sm:$0xff] %v1369
    %1638 = vst [vmem:[%s5 + $0x118] sm:$0xff] %v1371
    %1639 = vst [vmem:[%s5 + $0x120] sm:$0xff] %v1375
    %1640 = vst [vmem:[%s5 + $0x128] sm:$0xff] %v1377
    %1641 = vst [vmem:[%s5 + $0x130] sm:$0xff] %v1379
    %1642 = vst [vmem:[%s5 + $0x138] sm:$0xff] %v1381
    %1643 = vst [vmem:[%s5 + $0x140] sm:$0xff] %v1385
    %1644 = vst [vmem:[%s5 + $0x148] sm:$0xff] %v1387
    %1645 = vst [vmem:[%s5 + $0x150] sm:$0xff] %v1389
    %1646 = vst [vmem:[%s5 + $0x158] sm:$0xff] %v1391
    %1647 = vst [vmem:[%s5 + $0x160] sm:$0xff] %v1395
    %1648 = vst [vmem:[%s5 + $0x168] sm:$0xff] %v1397
    %1649 = vst [vmem:[%s5 + $0x170] sm:$0xff] %v1399
    %1650 = vst [vmem:[%s5 + $0x178] sm:$0xff] %v1401
    %1651 = vst [vmem:[%s5 + $0x180] sm:$0xff] %v1405
    %1652 = vst [vmem:[%s5 + $0x188] sm:$0xff] %v1407
    %1653 = vst [vmem:[%s5 + $0x190] sm:$0xff] %v1409
    %1654 = vst [vmem:[%s5 + $0x198] sm:$0xff] %v1411
    %1655 = vst [vmem:[%s5 + $0x1a0] sm:$0xff] %v1415
    %1656 = vst [vmem:[%s5 + $0x1a8] sm:$0xff] %v1417
    %1657 = vst [vmem:[%s5 + $0x1b0] sm:$0xff] %v1419
    %1658 = vst [vmem:[%s5 + $0x1b8] sm:$0xff] %v1421
    %1659 = vst [vmem:[%s5 + $0x1c0] sm:$0xff] %v1425
    %1660 = vst [vmem:[%s5 + $0x1c8] sm:$0xff] %v1427
    %1661 = vst [vmem:[%s5 + $0x1d0] sm:$0xff] %v1429
    %1662 = vst [vmem:[%s5 + $0x1d8] sm:$0xff] %v1431
    %1663 = vst [vmem:[%s5 + $0x1e0] sm:$0xff] %v1435
    %1664 = vst [vmem:[%s5 + $0x1e8] sm:$0xff] %v1437
    %1665 = vst [vmem:[%s5 + $0x1f0] sm:$0xff] %v1439
    %1666 = vst [vmem:[%s5 + $0x1f8] sm:$0xff] %v1441
    %1667 = vst [vmem:[%s5 + $0x200] sm:$0xff] %v1445
    %1668 = vst [vmem:[%s5 + $0x208] sm:$0xff] %v1447
    %1669 = vst [vmem:[%s5 + $0x210] sm:$0xff] %v1449
    %1670 = vst [vmem:[%s5 + $0x218] sm:$0xff] %v1451
    %1671 = vst [vmem:[%s5 + $0x220] sm:$0xff] %v1455
    %1672 = vst [vmem:[%s5 + $0x228] sm:$0xff] %v1457
    %1673 = vst [vmem:[%s5 + $0x230] sm:$0xff] %v1459
    %1674 = vst [vmem:[%s5 + $0x238] sm:$0xff] %v1461
    %1675 = vst [vmem:[%s5 + $0x240] sm:$0xff] %v1465
    %1676 = vst [vmem:[%s5 + $0x248] sm:$0xff] %v1467
    %1677 = vst [vmem:[%s5 + $0x250] sm:$0xff] %v1469
    %1678 = vst [vmem:[%s5 + $0x258] sm:$0xff] %v1471
    %1679 = vst [vmem:[%s5 + $0x260] sm:$0xff] %v1475
    %1680 = vst [vmem:[%s5 + $0x268] sm:$0xff] %v1477
    %1681 = vst [vmem:[%s5 + $0x270] sm:$0xff] %v1479
    %1682 = vst [vmem:[%s5 + $0x278] sm:$0xff] %v1481
    %1683 = vst [vmem:[%s5 + $0x280] sm:$0xff] %v1485
    %1684 = vst [vmem:[%s5 + $0x288] sm:$0xff] %v1487
    %1685 = vst [vmem:[%s5 + $0x290] sm:$0xff] %v1489
    %1686 = vst [vmem:[%s5 + $0x298] sm:$0xff] %v1491
    %1687 = vst [vmem:[%s5 + $0x2a0] sm:$0xff] %v1495
    %1688 = vst [vmem:[%s5 + $0x2a8] sm:$0xff] %v1497
    %1689 = vst [vmem:[%s5 + $0x2b0] sm:$0xff] %v1499
    %1690 = vst [vmem:[%s5 + $0x2b8] sm:$0xff] %v1501
    %1691 = vst [vmem:[%s5 + $0x2c0] sm:$0xff] %v1505
    %1692 = vst [vmem:[%s5 + $0x2c8] sm:$0xff] %v1507
    %1693 = vst [vmem:[%s5 + $0x2d0] sm:$0xff] %v1509
    %1694 = vst [vmem:[%s5 + $0x2d8] sm:$0xff] %v1511
    %1695 = vst [vmem:[%s5 + $0x2e0] sm:$0xff] %v1515
    %1696 = vst [vmem:[%s5 + $0x2e8] sm:$0xff] %v1517
    %1697 = vst [vmem:[%s5 + $0x2f0] sm:$0xff] %v1519
    %1698 = vst [vmem:[%s5 + $0x2f8] sm:$0xff] %v1521
    %1699 = vst [vmem:[%s5 + $0x300] sm:$0xff] %v1525
    %1700 = vst [vmem:[%s5 + $0x308] sm:$0xff] %v1527
    %1701 = vst [vmem:[%s5 + $0x310] sm:$0xff] %v1529
    %1702 = vst [vmem:[%s5 + $0x318] sm:$0xff] %v1531
    %1703 = vst [vmem:[%s5 + $0x320] sm:$0xff] %v1535
    %1704 = vst [vmem:[%s5 + $0x328] sm:$0xff] %v1537
    %1705 = vst [vmem:[%s5 + $0x330] sm:$0xff] %v1539
    %1706 = vst [vmem:[%s5 + $0x338] sm:$0xff] %v1541
    %1707 = vst [vmem:[%s5 + $0x340] sm:$0xff] %v1545
    %1708 = vst [vmem:[%s5 + $0x348] sm:$0xff] %v1547
    %1709 = vst [vmem:[%s5 + $0x350] sm:$0xff] %v1549
    %1710 = vst [vmem:[%s5 + $0x358] sm:$0xff] %v1551
    %1711 = vst [vmem:[%s5 + $0x360] sm:$0xff] %v1555
    %1712 = vst [vmem:[%s5 + $0x368] sm:$0xff] %v1557
    %1713 = vst [vmem:[%s5 + $0x370] sm:$0xff] %v1559
    %1714 = vst [vmem:[%s5 + $0x378] sm:$0xff] %v1561
    %1715 = vst [vmem:[%s5 + $0x380] sm:$0xff] %v1565
    %1716 = vst [vmem:[%s5 + $0x388] sm:$0xff] %v1567
    %1717 = vst [vmem:[%s5 + $0x390] sm:$0xff] %v1569
    %1718 = vst [vmem:[%s5 + $0x398] sm:$0xff] %v1571
    %1719 = vst [vmem:[%s5 + $0x3a0] sm:$0xff] %v1575
    %1720 = vst [vmem:[%s5 + $0x3a8] sm:$0xff] %v1577
    %1721 = vst [vmem:[%s5 + $0x3b0] sm:$0xff] %v1579
    %1722 = vst [vmem:[%s5 + $0x3b8] sm:$0xff] %v1581
    %1723 = vst [vmem:[%s5 + $0x3c0] sm:$0xff] %v1585
    %1724 = vst [vmem:[%s5 + $0x3c8] sm:$0xff] %v1587
    %1725 = vst [vmem:[%s5 + $0x3d0] sm:$0xff] %v1589
    %1726 = vst [vmem:[%s5 + $0x3d8] sm:$0xff] %v1591
    %1727 = vst [vmem:[%s5 + $0x3e0] sm:$0xff] %v1595
    %1728 = vst [vmem:[%s5 + $0x3e8] sm:$0xff] %v1597
    %1729 = vst [vmem:[%s5 + $0x3f0] sm:$0xff] %v1599
    %1730 = vst [vmem:[%s5 + $0x3f8] sm:$0xff] %v1601
    // Predicated region
    $region34: #{multi_scale_block.2} parent=1 // pred_check
      _
    $region35: #{multi_scale_block.2} parent=1 // pred_check_branch
      %1732 = sbr.rel (0) target = $region37
    $region36: #{multi_scale_block.2} parent=1 // pred_region
      _
    $region37: #{multi_scale_block.2} parent=1 // pred_fallthru
      _
    // Predicated region
    $region38: #{multi_scale_block.2} parent=1 // pred_check
      _
    $region39: #{multi_scale_block.2} parent=1 // pred_check_branch
      %1734 = sbr.rel (0) target = $region41
    $region40: #{multi_scale_block.2} parent=1 // pred_region
      _
    $region41: #{multi_scale_block.2} parent=1 // pred_fallthru
      _
    %1735 = vsyncpa [#allocation3], 1
    %1736 = vsyncpa [#allocation5], 1

// kernel: multi_scale_block.3
$region0: #{multi_scale_block.3}
  #allocation0 [shape = 'u32[]', space=smem, size = 0x4, offset = 0x4, fixed_abs, tag = 'smem constant byte address 0x4 - core index']
  #allocation1 [shape = 'u32[144,128]{1,0:T(1,128)}', space=vmem, size = 0x12000, scoped, tag = 'internal scratch']
  %s0 = inlined_call_operand.vmem [shape: f32[2,8,64,32], index: 0, kind: input, shape index: {}]
  %s1 = inlined_call_operand.vmem [shape: f32[2,8,64,32], index: 1, kind: input, shape index: {}]
  %s2 = inlined_call_operand.vmem [shape: f32[2,8,64,32], index: 2, kind: input, shape index: {}]
  %s3 = inlined_call_operand.vmem [shape: f32[128,64], index: 3, kind: input, shape index: {}, may-alias: {3,12}]
  %s4 = inlined_call_operand.vmem [shape: f32[2,32,64], index: 4, kind: input, shape index: {}]
  %s5 = inlined_call_operand.vmem [shape: f32[1,64], index: 5, kind: input, shape index: {}]
  %s6 = inlined_call_operand.vmem [shape: f32[1,64], index: 6, kind: input, shape index: {}]
  %s7 = inlined_call_operand.vmem [shape: f32[1,64], index: 7, kind: input, shape index: {}]
  %s8 = inlined_call_operand.vmem [shape: f32[64,256], index: 8, kind: input, shape index: {}]
  %s9 = inlined_call_operand.vmem [shape: f32[1,256], index: 9, kind: input, shape index: {}]
  %s10 = inlined_call_operand.vmem [shape: f32[256,64], index: 10, kind: input, shape index: {}]
  %s11 = inlined_call_operand.vmem [shape: f32[1,64], index: 11, kind: input, shape index: {}]
  %s12 = inlined_call_operand.vmem [shape: f32[128,64], index: 12, kind: output, shape index: {}, may-alias: {3,12}]
  %s13 = sld [smem:[#allocation0]]
  $region58: #{multi_scale_block.3} parent=0
    _
  %s15 = ssub.s32 1, %s13
  %s16 = scalar_select 0, %s15, %s13
  // Predicated region
  $region2: #{multi_scale_block.3} parent=0 // pred_check
    _
  $region3: #{multi_scale_block.3} parent=0 // pred_check_branch
    %18 = sbr.rel (0) target = $region5
  $region4: #{multi_scale_block.3} parent=0 // pred_region
    _
  $region5: #{multi_scale_block.3} parent=0 // pred_fallthru
    _
  // Predicated region
  $region6: #{multi_scale_block.3} parent=0 // pred_check
    _
  $region7: #{multi_scale_block.3} parent=0 // pred_check_branch
    %20 = sbr.rel (0) target = $region9
  $region8: #{multi_scale_block.3} parent=0 // pred_region
    _
  $region9: #{multi_scale_block.3} parent=0 // pred_fallthru
    _
  // Predicated region
  $region10: #{multi_scale_block.3} parent=0 // pred_check
    _
  $region11: #{multi_scale_block.3} parent=0 // pred_check_branch
    %22 = sbr.rel (0) target = $region13
  $region12: #{multi_scale_block.3} parent=0 // pred_region
    _
  $region13: #{multi_scale_block.3} parent=0 // pred_fallthru
    _
  // Predicated region
  $region14: #{multi_scale_block.3} parent=0 // pred_check
    _
  $region15: #{multi_scale_block.3} parent=0 // pred_check_branch
    %24 = sbr.rel (0) target = $region17
  $region16: #{multi_scale_block.3} parent=0 // pred_region
    _
  $region17: #{multi_scale_block.3} parent=0 // pred_fallthru
    _
  // Predicated region
  $region18: #{multi_scale_block.3} parent=0 // pred_check
    _
  $region19: #{multi_scale_block.3} parent=0 // pred_check_branch
    %26 = sbr.rel (0) target = $region21
  $region20: #{multi_scale_block.3} parent=0 // pred_region
    _
  $region21: #{multi_scale_block.3} parent=0 // pred_fallthru
    _
  // Predicated region
  $region22: #{multi_scale_block.3} parent=0 // pred_check
    _
  $region23: #{multi_scale_block.3} parent=0 // pred_check_branch
    %28 = sbr.rel (0) target = $region25
  $region24: #{multi_scale_block.3} parent=0 // pred_region
    _
  $region25: #{multi_scale_block.3} parent=0 // pred_fallthru
    _
  // Predicated region
  $region26: #{multi_scale_block.3} parent=0 // pred_check
    _
  $region27: #{multi_scale_block.3} parent=0 // pred_check_branch
    %30 = sbr.rel (0) target = $region29
  $region28: #{multi_scale_block.3} parent=0 // pred_region
    _
  $region29: #{multi_scale_block.3} parent=0 // pred_fallthru
    _
  // Predicated region
  $region30: #{multi_scale_block.3} parent=0 // pred_check
    _
  $region31: #{multi_scale_block.3} parent=0 // pred_check_branch
    %32 = sbr.rel (0) target = $region33
  $region32: #{multi_scale_block.3} parent=0 // pred_region
    _
  $region33: #{multi_scale_block.3} parent=0 // pred_fallthru
    _
  // Predicated region
  $region34: #{multi_scale_block.3} parent=0 // pred_check
    _
  $region35: #{multi_scale_block.3} parent=0 // pred_check_branch
    %34 = sbr.rel (0) target = $region37
  $region36: #{multi_scale_block.3} parent=0 // pred_region
    _
  $region37: #{multi_scale_block.3} parent=0 // pred_fallthru
    _
  // Predicated region
  $region38: #{multi_scale_block.3} parent=0 // pred_check
    _
  $region39: #{multi_scale_block.3} parent=0 // pred_check_branch
    %36 = sbr.rel (0) target = $region41
  $region40: #{multi_scale_block.3} parent=0 // pred_region
    _
  $region41: #{multi_scale_block.3} parent=0 // pred_fallthru
    _
  // Predicated region
  $region42: #{multi_scale_block.3} parent=0 // pred_check
    _
  $region43: #{multi_scale_block.3} parent=0 // pred_check_branch
    %38 = sbr.rel (0) target = $region45
  $region44: #{multi_scale_block.3} parent=0 // pred_region
    _
  $region45: #{multi_scale_block.3} parent=0 // pred_fallthru
    _
  // Predicated region
  $region46: #{multi_scale_block.3} parent=0 // pred_check
    _
  $region47: #{multi_scale_block.3} parent=0 // pred_check_branch
    %40 = sbr.rel (0) target = $region49
  $region48: #{multi_scale_block.3} parent=0 // pred_region
    _
  $region49: #{multi_scale_block.3} parent=0 // pred_fallthru
    _
  %v42 = vld [vmem:[%s0] sm:$0xff]
  %v43 = vld [vmem:[%s0 + $0x8] sm:$0xff]
  %v44 = vld [vmem:[%s0 + $0x10] sm:$0xff]
  %v45 = vld [vmem:[%s0 + $0x18] sm:$0xff]
  %v46 = vld [vmem:[%s0 + $0x20] sm:$0xff]
  %v47 = vld [vmem:[%s0 + $0x28] sm:$0xff]
  %v48 = vld [vmem:[%s0 + $0x30] sm:$0xff]
  %v49 = vld [vmem:[%s0 + $0x38] sm:$0xff]
  %v50 = vld [vmem:[%s0 + $0x40] sm:$0xff]
  %v51 = vld [vmem:[%s0 + $0x48] sm:$0xff]
  %v52 = vld [vmem:[%s0 + $0x50] sm:$0xff]
  %v53 = vld [vmem:[%s0 + $0x58] sm:$0xff]
  %v54 = vld [vmem:[%s0 + $0x60] sm:$0xff]
  %v55 = vld [vmem:[%s0 + $0x68] sm:$0xff]
  %v56 = vld [vmem:[%s0 + $0x70] sm:$0xff]
  %v57 = vld [vmem:[%s0 + $0x78] sm:$0xff]
  %v58 = vld [vmem:[%s0 + $0x80] sm:$0xff]
  %v59 = vld [vmem:[%s0 + $0x88] sm:$0xff]
  %v60 = vld [vmem:[%s0 + $0x90] sm:$0xff]
  %v61 = vld [vmem:[%s0 + $0x98] sm:$0xff]
  %v62 = vld [vmem:[%s0 + $0xa0] sm:$0xff]
  %v63 = vld [vmem:[%s0 + $0xa8] sm:$0xff]
  %v64 = vld [vmem:[%s0 + $0xb0] sm:$0xff]
  %v65 = vld [vmem:[%s0 + $0xb8] sm:$0xff]
  %v66 = vld [vmem:[%s0 + $0xc0] sm:$0xff]
  %v67 = vld [vmem:[%s0 + $0xc8] sm:$0xff]
  %v68 = vld [vmem:[%s0 + $0xd0] sm:$0xff]
  %v69 = vld [vmem:[%s0 + $0xd8] sm:$0xff]
  %v70 = vld [vmem:[%s0 + $0xe0] sm:$0xff]
  %v71 = vld [vmem:[%s0 + $0xe8] sm:$0xff]
  %v72 = vld [vmem:[%s0 + $0xf0] sm:$0xff]
  %v73 = vld [vmem:[%s0 + $0xf8] sm:$0xff]
  %v74 = vld [vmem:[%s0 + $0x100] sm:$0xff]
  %v75 = vld [vmem:[%s0 + $0x108] sm:$0xff]
  %v76 = vld [vmem:[%s0 + $0x110] sm:$0xff]
  %v77 = vld [vmem:[%s0 + $0x118] sm:$0xff]
  %v78 = vld [vmem:[%s0 + $0x120] sm:$0xff]
  %v79 = vld [vmem:[%s0 + $0x128] sm:$0xff]
  %v80 = vld [vmem:[%s0 + $0x130] sm:$0xff]
  %v81 = vld [vmem:[%s0 + $0x138] sm:$0xff]
  %v82 = vld [vmem:[%s0 + $0x140] sm:$0xff]
  %v83 = vld [vmem:[%s0 + $0x148] sm:$0xff]
  %v84 = vld [vmem:[%s0 + $0x150] sm:$0xff]
  %v85 = vld [vmem:[%s0 + $0x158] sm:$0xff]
  %v86 = vld [vmem:[%s0 + $0x160] sm:$0xff]
  %v87 = vld [vmem:[%s0 + $0x168] sm:$0xff]
  %v88 = vld [vmem:[%s0 + $0x170] sm:$0xff]
  %v89 = vld [vmem:[%s0 + $0x178] sm:$0xff]
  %v90 = vld [vmem:[%s0 + $0x180] sm:$0xff]
  %v91 = vld [vmem:[%s0 + $0x188] sm:$0xff]
  %v92 = vld [vmem:[%s0 + $0x190] sm:$0xff]
  %v93 = vld [vmem:[%s0 + $0x198] sm:$0xff]
  %v94 = vld [vmem:[%s0 + $0x1a0] sm:$0xff]
  %v95 = vld [vmem:[%s0 + $0x1a8] sm:$0xff]
  %v96 = vld [vmem:[%s0 + $0x1b0] sm:$0xff]
  %v97 = vld [vmem:[%s0 + $0x1b8] sm:$0xff]
  %v98 = vld [vmem:[%s0 + $0x1c0] sm:$0xff]
  %v99 = vld [vmem:[%s0 + $0x1c8] sm:$0xff]
  %v100 = vld [vmem:[%s0 + $0x1d0] sm:$0xff]
  %v101 = vld [vmem:[%s0 + $0x1d8] sm:$0xff]
  %v102 = vld [vmem:[%s0 + $0x1e0] sm:$0xff]
  %v103 = vld [vmem:[%s0 + $0x1e8] sm:$0xff]
  %v104 = vld [vmem:[%s0 + $0x1f0] sm:$0xff]
  %v105 = vld [vmem:[%s0 + $0x1f8] sm:$0xff]
  %v106 = vld [vmem:[%s0 + $0x200] sm:$0xff]
  %v107 = vld [vmem:[%s0 + $0x208] sm:$0xff]
  %v108 = vld [vmem:[%s0 + $0x210] sm:$0xff]
  %v109 = vld [vmem:[%s0 + $0x218] sm:$0xff]
  %v110 = vld [vmem:[%s0 + $0x220] sm:$0xff]
  %v111 = vld [vmem:[%s0 + $0x228] sm:$0xff]
  %v112 = vld [vmem:[%s0 + $0x230] sm:$0xff]
  %v113 = vld [vmem:[%s0 + $0x238] sm:$0xff]
  %v114 = vld [vmem:[%s0 + $0x240] sm:$0xff]
  %v115 = vld [vmem:[%s0 + $0x248] sm:$0xff]
  %v116 = vld [vmem:[%s0 + $0x250] sm:$0xff]
  %v117 = vld [vmem:[%s0 + $0x258] sm:$0xff]
  %v118 = vld [vmem:[%s0 + $0x260] sm:$0xff]
  %v119 = vld [vmem:[%s0 + $0x268] sm:$0xff]
  %v120 = vld [vmem:[%s0 + $0x270] sm:$0xff]
  %v121 = vld [vmem:[%s0 + $0x278] sm:$0xff]
  %v122 = vld [vmem:[%s0 + $0x280] sm:$0xff]
  %v123 = vld [vmem:[%s0 + $0x288] sm:$0xff]
  %v124 = vld [vmem:[%s0 + $0x290] sm:$0xff]
  %v125 = vld [vmem:[%s0 + $0x298] sm:$0xff]
  %v126 = vld [vmem:[%s0 + $0x2a0] sm:$0xff]
  %v127 = vld [vmem:[%s0 + $0x2a8] sm:$0xff]
  %v128 = vld [vmem:[%s0 + $0x2b0] sm:$0xff]
  %v129 = vld [vmem:[%s0 + $0x2b8] sm:$0xff]
  %v130 = vld [vmem:[%s0 + $0x2c0] sm:$0xff]
  %v131 = vld [vmem:[%s0 + $0x2c8] sm:$0xff]
  %v132 = vld [vmem:[%s0 + $0x2d0] sm:$0xff]
  %v133 = vld [vmem:[%s0 + $0x2d8] sm:$0xff]
  %v134 = vld [vmem:[%s0 + $0x2e0] sm:$0xff]
  %v135 = vld [vmem:[%s0 + $0x2e8] sm:$0xff]
  %v136 = vld [vmem:[%s0 + $0x2f0] sm:$0xff]
  %v137 = vld [vmem:[%s0 + $0x2f8] sm:$0xff]
  %v138 = vld [vmem:[%s0 + $0x300] sm:$0xff]
  %v139 = vld [vmem:[%s0 + $0x308] sm:$0xff]
  %v140 = vld [vmem:[%s0 + $0x310] sm:$0xff]
  %v141 = vld [vmem:[%s0 + $0x318] sm:$0xff]
  %v142 = vld [vmem:[%s0 + $0x320] sm:$0xff]
  %v143 = vld [vmem:[%s0 + $0x328] sm:$0xff]
  %v144 = vld [vmem:[%s0 + $0x330] sm:$0xff]
  %v145 = vld [vmem:[%s0 + $0x338] sm:$0xff]
  %v146 = vld [vmem:[%s0 + $0x340] sm:$0xff]
  %v147 = vld [vmem:[%s0 + $0x348] sm:$0xff]
  %v148 = vld [vmem:[%s0 + $0x350] sm:$0xff]
  %v149 = vld [vmem:[%s0 + $0x358] sm:$0xff]
  %v150 = vld [vmem:[%s0 + $0x360] sm:$0xff]
  %v151 = vld [vmem:[%s0 + $0x368] sm:$0xff]
  %v152 = vld [vmem:[%s0 + $0x370] sm:$0xff]
  %v153 = vld [vmem:[%s0 + $0x378] sm:$0xff]
  %v154 = vld [vmem:[%s0 + $0x380] sm:$0xff]
  %v155 = vld [vmem:[%s0 + $0x388] sm:$0xff]
  %v156 = vld [vmem:[%s0 + $0x390] sm:$0xff]
  %v157 = vld [vmem:[%s0 + $0x398] sm:$0xff]
  %v158 = vld [vmem:[%s0 + $0x3a0] sm:$0xff]
  %v159 = vld [vmem:[%s0 + $0x3a8] sm:$0xff]
  %v160 = vld [vmem:[%s0 + $0x3b0] sm:$0xff]
  %v161 = vld [vmem:[%s0 + $0x3b8] sm:$0xff]
  %v162 = vld [vmem:[%s0 + $0x3c0] sm:$0xff]
  %v163 = vld [vmem:[%s0 + $0x3c8] sm:$0xff]
  %v164 = vld [vmem:[%s0 + $0x3d0] sm:$0xff]
  %v165 = vld [vmem:[%s0 + $0x3d8] sm:$0xff]
  %v166 = vld [vmem:[%s0 + $0x3e0] sm:$0xff]
  %v167 = vld [vmem:[%s0 + $0x3e8] sm:$0xff]
  %v168 = vld [vmem:[%s0 + $0x3f0] sm:$0xff]
  %v169 = vld [vmem:[%s0 + $0x3f8] sm:$0xff]
  %v170 = vmax.f32 %v42, %v44
  %v171 = vmax.f32 %v43, %v45
  %v172 = vmax.f32 %v50, %v52
  %v173 = vmax.f32 %v51, %v53
  %v174 = vmax.f32 %v58, %v60
  %v175 = vmax.f32 %v59, %v61
  %v176 = vmax.f32 %v66, %v68
  %v177 = vmax.f32 %v67, %v69
  %v178 = vmax.f32 %v74, %v76
  %v179 = vmax.f32 %v75, %v77
  %v180 = vmax.f32 %v82, %v84
  %v181 = vmax.f32 %v83, %v85
  %v182 = vmax.f32 %v90, %v92
  %v183 = vmax.f32 %v91, %v93
  %v184 = vmax.f32 %v98, %v100
  %v185 = vmax.f32 %v99, %v101
  %v186 = vmax.f32 %v106, %v108
  %v187 = vmax.f32 %v107, %v109
  %v188 = vmax.f32 %v114, %v116
  %v189 = vmax.f32 %v115, %v117
  %v190 = vmax.f32 %v122, %v124
  %v191 = vmax.f32 %v123, %v125
  %v192 = vmax.f32 %v130, %v132
  %v193 = vmax.f32 %v131, %v133
  %v194 = vmax.f32 %v138, %v140
  %v195 = vmax.f32 %v139, %v141
  %v196 = vmax.f32 %v146, %v148
  %v197 = vmax.f32 %v147, %v149
  %v198 = vmax.f32 %v154, %v156
  %v199 = vmax.f32 %v155, %v157
  %v200 = vmax.f32 %v162, %v164
  %v201 = vmax.f32 %v163, %v165
  %v202 = vmax.f32 %v170, %v46
  %v203 = vmax.f32 %v171, %v47
  %v204 = vmax.f32 %v172, %v54
  %v205 = vmax.f32 %v173, %v55
  %v206 = vmax.f32 %v174, %v62
  %v207 = vmax.f32 %v175, %v63
  %v208 = vmax.f32 %v176, %v70
  %v209 = vmax.f32 %v177, %v71
  %v210 = vmax.f32 %v178, %v78
  %v211 = vmax.f32 %v179, %v79
  %v212 = vmax.f32 %v180, %v86
  %v213 = vmax.f32 %v181, %v87
  %v214 = vmax.f32 %v182, %v94
  %v215 = vmax.f32 %v183, %v95
  %v216 = vmax.f32 %v184, %v102
  %v217 = vmax.f32 %v185, %v103
  %v218 = vmax.f32 %v186, %v110
  %v219 = vmax.f32 %v187, %v111
  %v220 = vmax.f32 %v188, %v118
  %v221 = vmax.f32 %v189, %v119
  %v222 = vmax.f32 %v190, %v126
  %v223 = vmax.f32 %v191, %v127
  %v224 = vmax.f32 %v192, %v134
  %v225 = vmax.f32 %v193, %v135
  %v226 = vmax.f32 %v194, %v142
  %v227 = vmax.f32 %v195, %v143
  %v228 = vmax.f32 %v196, %v150
  %v229 = vmax.f32 %v197, %v151
  %v230 = vmax.f32 %v198, %v158
  %v231 = vmax.f32 %v199, %v159
  %v232 = vmax.f32 %v200, %v166
  %v233 = vmax.f32 %v201, %v167
  %v234 = vmax.f32 %v202, %v48
  %v235 = vmax.f32 %v203, %v49
  %v236 = vmax.f32 %v204, %v56
  %v237 = vmax.f32 %v205, %v57
  %v238 = vmax.f32 %v206, %v64
  %v239 = vmax.f32 %v207, %v65
  %v240 = vmax.f32 %v208, %v72
  %v241 = vmax.f32 %v209, %v73
  %v242 = vmax.f32 %v210, %v80
  %v243 = vmax.f32 %v211, %v81
  %v244 = vmax.f32 %v212, %v88
  %v245 = vmax.f32 %v213, %v89
  %v246 = vmax.f32 %v214, %v96
  %v247 = vmax.f32 %v215, %v97
  %v248 = vmax.f32 %v216, %v104
  %v249 = vmax.f32 %v217, %v105
  %v250 = vmax.f32 %v218, %v112
  %v251 = vmax.f32 %v219, %v113
  %v252 = vmax.f32 %v220, %v120
  %v253 = vmax.f32 %v221, %v121
  %v254 = vmax.f32 %v222, %v128
  %v255 = vmax.f32 %v223, %v129
  %v256 = vmax.f32 %v224, %v136
  %v257 = vmax.f32 %v225, %v137
  %v258 = vmax.f32 %v226, %v144
  %v259 = vmax.f32 %v227, %v145
  %v260 = vmax.f32 %v228, %v152
  %v261 = vmax.f32 %v229, %v153
  %v262 = vmax.f32 %v230, %v160
  %v263 = vmax.f32 %v231, %v161
  %v264 = vmax.f32 %v232, %v168
  %v265 = vmax.f32 %v233, %v169
  %v266 = vmul.f32 %v234, 0.17677669
  %v267 = vmul.f32 %v235, 0.17677669
  %v268 = vmul.f32 %v236, 0.17677669
  %v269 = vmul.f32 %v237, 0.17677669
  %v270 = vmul.f32 %v238, 0.17677669
  %v271 = vmul.f32 %v239, 0.17677669
  %v272 = vmul.f32 %v240, 0.17677669
  %v273 = vmul.f32 %v241, 0.17677669
  %v274 = vmul.f32 %v242, 0.17677669
  %v275 = vmul.f32 %v243, 0.17677669
  %v276 = vmul.f32 %v244, 0.17677669
  %v277 = vmul.f32 %v245, 0.17677669
  %v278 = vmul.f32 %v246, 0.17677669
  %v279 = vmul.f32 %v247, 0.17677669
  %v280 = vmul.f32 %v248, 0.17677669
  %v281 = vmul.f32 %v249, 0.17677669
  %v282 = vmul.f32 %v250, 0.17677669
  %v283 = vmul.f32 %v251, 0.17677669
  %v284 = vmul.f32 %v252, 0.17677669
  %v285 = vmul.f32 %v253, 0.17677669
  %v286 = vmul.f32 %v254, 0.17677669
  %v287 = vmul.f32 %v255, 0.17677669
  %v288 = vmul.f32 %v256, 0.17677669
  %v289 = vmul.f32 %v257, 0.17677669
  %v290 = vmul.f32 %v258, 0.17677669
  %v291 = vmul.f32 %v259, 0.17677669
  %v292 = vmul.f32 %v260, 0.17677669
  %v293 = vmul.f32 %v261, 0.17677669
  %v294 = vmul.f32 %v262, 0.17677669
  %v295 = vmul.f32 %v263, 0.17677669
  %v296 = vmul.f32 %v264, 0.17677669
  %v297 = vmul.f32 %v265, 0.17677669
  %v298 = vpack.c.bf16 %v267, %v266
  %v299 = vpack.c.bf16 %v269, %v268
  %v300 = vpack.c.bf16 %v271, %v270
  %v301 = vpack.c.bf16 %v273, %v272
  %v302 = vpack.c.bf16 %v275, %v274
  %v303 = vpack.c.bf16 %v277, %v276
  %v304 = vpack.c.bf16 %v279, %v278
  %v305 = vpack.c.bf16 %v281, %v280
  %v306 = vpack.c.bf16 %v283, %v282
  %v307 = vpack.c.bf16 %v285, %v284
  %v308 = vpack.c.bf16 %v287, %v286
  %v309 = vpack.c.bf16 %v289, %v288
  %v310 = vpack.c.bf16 %v291, %v290
  %v311 = vpack.c.bf16 %v293, %v292
  %v312 = vpack.c.bf16 %v295, %v294
  %v313 = vpack.c.bf16 %v297, %v296
  %v314 = vld [vmem:[%s1] sm:$0xff]
  %v315 = vld [vmem:[%s1 + $0x8] sm:$0xff]
  %v316 = vld [vmem:[%s1 + $0x10] sm:$0xff]
  %v317 = vld [vmem:[%s1 + $0x18] sm:$0xff]
  %v318 = vld [vmem:[%s1 + $0x20] sm:$0xff]
  %v319 = vld [vmem:[%s1 + $0x28] sm:$0xff]
  %v320 = vld [vmem:[%s1 + $0x30] sm:$0xff]
  %v321 = vld [vmem:[%s1 + $0x38] sm:$0xff]
  %v322 = vld [vmem:[%s1 + $0x40] sm:$0xff]
  %v323 = vld [vmem:[%s1 + $0x48] sm:$0xff]
  %v324 = vld [vmem:[%s1 + $0x50] sm:$0xff]
  %v325 = vld [vmem:[%s1 + $0x58] sm:$0xff]
  %v326 = vld [vmem:[%s1 + $0x60] sm:$0xff]
  %v327 = vld [vmem:[%s1 + $0x68] sm:$0xff]
  %v328 = vld [vmem:[%s1 + $0x70] sm:$0xff]
  %v329 = vld [vmem:[%s1 + $0x78] sm:$0xff]
  %v330 = vld [vmem:[%s1 + $0x80] sm:$0xff]
  %v331 = vld [vmem:[%s1 + $0x88] sm:$0xff]
  %v332 = vld [vmem:[%s1 + $0x90] sm:$0xff]
  %v333 = vld [vmem:[%s1 + $0x98] sm:$0xff]
  %v334 = vld [vmem:[%s1 + $0xa0] sm:$0xff]
  %v335 = vld [vmem:[%s1 + $0xa8] sm:$0xff]
  %v336 = vld [vmem:[%s1 + $0xb0] sm:$0xff]
  %v337 = vld [vmem:[%s1 + $0xb8] sm:$0xff]
  %v338 = vld [vmem:[%s1 + $0xc0] sm:$0xff]
  %v339 = vld [vmem:[%s1 + $0xc8] sm:$0xff]
  %v340 = vld [vmem:[%s1 + $0xd0] sm:$0xff]
  %v341 = vld [vmem:[%s1 + $0xd8] sm:$0xff]
  %v342 = vld [vmem:[%s1 + $0xe0] sm:$0xff]
  %v343 = vld [vmem:[%s1 + $0xe8] sm:$0xff]
  %v344 = vld [vmem:[%s1 + $0xf0] sm:$0xff]
  %v345 = vld [vmem:[%s1 + $0xf8] sm:$0xff]
  %v346 = vld [vmem:[%s1 + $0x100] sm:$0xff]
  %v347 = vld [vmem:[%s1 + $0x108] sm:$0xff]
  %v348 = vld [vmem:[%s1 + $0x110] sm:$0xff]
  %v349 = vld [vmem:[%s1 + $0x118] sm:$0xff]
  %v350 = vld [vmem:[%s1 + $0x120] sm:$0xff]
  %v351 = vld [vmem:[%s1 + $0x128] sm:$0xff]
  %v352 = vld [vmem:[%s1 + $0x130] sm:$0xff]
  %v353 = vld [vmem:[%s1 + $0x138] sm:$0xff]
  %v354 = vld [vmem:[%s1 + $0x140] sm:$0xff]
  %v355 = vld [vmem:[%s1 + $0x148] sm:$0xff]
  %v356 = vld [vmem:[%s1 + $0x150] sm:$0xff]
  %v357 = vld [vmem:[%s1 + $0x158] sm:$0xff]
  %v358 = vld [vmem:[%s1 + $0x160] sm:$0xff]
  %v359 = vld [vmem:[%s1 + $0x168] sm:$0xff]
  %v360 = vld [vmem:[%s1 + $0x170] sm:$0xff]
  %v361 = vld [vmem:[%s1 + $0x178] sm:$0xff]
  %v362 = vld [vmem:[%s1 + $0x180] sm:$0xff]
  %v363 = vld [vmem:[%s1 + $0x188] sm:$0xff]
  %v364 = vld [vmem:[%s1 + $0x190] sm:$0xff]
  %v365 = vld [vmem:[%s1 + $0x198] sm:$0xff]
  %v366 = vld [vmem:[%s1 + $0x1a0] sm:$0xff]
  %v367 = vld [vmem:[%s1 + $0x1a8] sm:$0xff]
  %v368 = vld [vmem:[%s1 + $0x1b0] sm:$0xff]
  %v369 = vld [vmem:[%s1 + $0x1b8] sm:$0xff]
  %v370 = vld [vmem:[%s1 + $0x1c0] sm:$0xff]
  %v371 = vld [vmem:[%s1 + $0x1c8] sm:$0xff]
  %v372 = vld [vmem:[%s1 + $0x1d0] sm:$0xff]
  %v373 = vld [vmem:[%s1 + $0x1d8] sm:$0xff]
  %v374 = vld [vmem:[%s1 + $0x1e0] sm:$0xff]
  %v375 = vld [vmem:[%s1 + $0x1e8] sm:$0xff]
  %v376 = vld [vmem:[%s1 + $0x1f0] sm:$0xff]
  %v377 = vld [vmem:[%s1 + $0x1f8] sm:$0xff]
  %v378 = vld [vmem:[%s1 + $0x200] sm:$0xff]
  %v379 = vld [vmem:[%s1 + $0x208] sm:$0xff]
  %v380 = vld [vmem:[%s1 + $0x210] sm:$0xff]
  %v381 = vld [vmem:[%s1 + $0x218] sm:$0xff]
  %v382 = vld [vmem:[%s1 + $0x220] sm:$0xff]
  %v383 = vld [vmem:[%s1 + $0x228] sm:$0xff]
  %v384 = vld [vmem:[%s1 + $0x230] sm:$0xff]
  %v385 = vld [vmem:[%s1 + $0x238] sm:$0xff]
  %v386 = vld [vmem:[%s1 + $0x240] sm:$0xff]
  %v387 = vld [vmem:[%s1 + $0x248] sm:$0xff]
  %v388 = vld [vmem:[%s1 + $0x250] sm:$0xff]
  %v389 = vld [vmem:[%s1 + $0x258] sm:$0xff]
  %v390 = vld [vmem:[%s1 + $0x260] sm:$0xff]
  %v391 = vld [vmem:[%s1 + $0x268] sm:$0xff]
  %v392 = vld [vmem:[%s1 + $0x270] sm:$0xff]
  %v393 = vld [vmem:[%s1 + $0x278] sm:$0xff]
  %v394 = vld [vmem:[%s1 + $0x280] sm:$0xff]
  %v395 = vld [vmem:[%s1 + $0x288] sm:$0xff]
  %v396 = vld [vmem:[%s1 + $0x290] sm:$0xff]
  %v397 = vld [vmem:[%s1 + $0x298] sm:$0xff]
  %v398 = vld [vmem:[%s1 + $0x2a0] sm:$0xff]
  %v399 = vld [vmem:[%s1 + $0x2a8] sm:$0xff]
  %v400 = vld [vmem:[%s1 + $0x2b0] sm:$0xff]
  %v401 = vld [vmem:[%s1 + $0x2b8] sm:$0xff]
  %v402 = vld [vmem:[%s1 + $0x2c0] sm:$0xff]
  %v403 = vld [vmem:[%s1 + $0x2c8] sm:$0xff]
  %v404 = vld [vmem:[%s1 + $0x2d0] sm:$0xff]
  %v405 = vld [vmem:[%s1 + $0x2d8] sm:$0xff]
  %v406 = vld [vmem:[%s1 + $0x2e0] sm:$0xff]
  %v407 = vld [vmem:[%s1 + $0x2e8] sm:$0xff]
  %v408 = vld [vmem:[%s1 + $0x2f0] sm:$0xff]
  %v409 = vld [vmem:[%s1 + $0x2f8] sm:$0xff]
  %v410 = vld [vmem:[%s1 + $0x300] sm:$0xff]
  %v411 = vld [vmem:[%s1 + $0x308] sm:$0xff]
  %v412 = vld [vmem:[%s1 + $0x310] sm:$0xff]
  %v413 = vld [vmem:[%s1 + $0x318] sm:$0xff]
  %v414 = vld [vmem:[%s1 + $0x320] sm:$0xff]
  %v415 = vld [vmem:[%s1 + $0x328] sm:$0xff]
  %v416 = vld [vmem:[%s1 + $0x330] sm:$0xff]
  %v417 = vld [vmem:[%s1 + $0x338] sm:$0xff]
  %v418 = vld [vmem:[%s1 + $0x340] sm:$0xff]
  %v419 = vld [vmem:[%s1 + $0x348] sm:$0xff]
  %v420 = vld [vmem:[%s1 + $0x350] sm:$0xff]
  %v421 = vld [vmem:[%s1 + $0x358] sm:$0xff]
  %v422 = vld [vmem:[%s1 + $0x360] sm:$0xff]
  %v423 = vld [vmem:[%s1 + $0x368] sm:$0xff]
  %v424 = vld [vmem:[%s1 + $0x370] sm:$0xff]
  %v425 = vld [vmem:[%s1 + $0x378] sm:$0xff]
  %v426 = vld [vmem:[%s1 + $0x380] sm:$0xff]
  %v427 = vld [vmem:[%s1 + $0x388] sm:$0xff]
  %v428 = vld [vmem:[%s1 + $0x390] sm:$0xff]
  %v429 = vld [vmem:[%s1 + $0x398] sm:$0xff]
  %v430 = vld [vmem:[%s1 + $0x3a0] sm:$0xff]
  %v431 = vld [vmem:[%s1 + $0x3a8] sm:$0xff]
  %v432 = vld [vmem:[%s1 + $0x3b0] sm:$0xff]
  %v433 = vld [vmem:[%s1 + $0x3b8] sm:$0xff]
  %v434 = vld [vmem:[%s1 + $0x3c0] sm:$0xff]
  %v435 = vld [vmem:[%s1 + $0x3c8] sm:$0xff]
  %v436 = vld [vmem:[%s1 + $0x3d0] sm:$0xff]
  %v437 = vld [vmem:[%s1 + $0x3d8] sm:$0xff]
  %v438 = vld [vmem:[%s1 + $0x3e0] sm:$0xff]
  %v439 = vld [vmem:[%s1 + $0x3e8] sm:$0xff]
  %v440 = vld [vmem:[%s1 + $0x3f0] sm:$0xff]
  %v441 = vld [vmem:[%s1 + $0x3f8] sm:$0xff]
  %v442 = vpack.c.bf16 %v315, %v314
  %v443 = vpack.c.bf16 %v317, %v316
  %v444 = vpack.c.bf16 %v319, %v318
  %v445 = vpack.c.bf16 %v321, %v320
  %v446 = vpack.c.bf16 %v323, %v322
  %v447 = vpack.c.bf16 %v325, %v324
  %v448 = vpack.c.bf16 %v327, %v326
  %v449 = vpack.c.bf16 %v329, %v328
  %v450 = vpack.c.bf16 %v331, %v330
  %v451 = vpack.c.bf16 %v333, %v332
  %v452 = vpack.c.bf16 %v335, %v334
  %v453 = vpack.c.bf16 %v337, %v336
  %v454 = vpack.c.bf16 %v339, %v338
  %v455 = vpack.c.bf16 %v341, %v340
  %v456 = vpack.c.bf16 %v343, %v342
  %v457 = vpack.c.bf16 %v345, %v344
  %v458 = vpack.c.bf16 %v347, %v346
  %v459 = vpack.c.bf16 %v349, %v348
  %v460 = vpack.c.bf16 %v351, %v350
  %v461 = vpack.c.bf16 %v353, %v352
  %v462 = vpack.c.bf16 %v355, %v354
  %v463 = vpack.c.bf16 %v357, %v356
  %v464 = vpack.c.bf16 %v359, %v358
  %v465 = vpack.c.bf16 %v361, %v360
  %v466 = vpack.c.bf16 %v363, %v362
  %v467 = vpack.c.bf16 %v365, %v364
  %v468 = vpack.c.bf16 %v367, %v366
  %v469 = vpack.c.bf16 %v369, %v368
  %v470 = vpack.c.bf16 %v371, %v370
  %v471 = vpack.c.bf16 %v373, %v372
  %v472 = vpack.c.bf16 %v375, %v374
  %v473 = vpack.c.bf16 %v377, %v376
  %v474 = vpack.c.bf16 %v379, %v378
  %v475 = vpack.c.bf16 %v381, %v380
  %v476 = vpack.c.bf16 %v383, %v382
  %v477 = vpack.c.bf16 %v385, %v384
  %v478 = vpack.c.bf16 %v387, %v386
  %v479 = vpack.c.bf16 %v389, %v388
  %v480 = vpack.c.bf16 %v391, %v390
  %v481 = vpack.c.bf16 %v393, %v392
  %v482 = vpack.c.bf16 %v395, %v394
  %v483 = vpack.c.bf16 %v397, %v396
  %v484 = vpack.c.bf16 %v399, %v398
  %v485 = vpack.c.bf16 %v401, %v400
  %v486 = vpack.c.bf16 %v403, %v402
  %v487 = vpack.c.bf16 %v405, %v404
  %v488 = vpack.c.bf16 %v407, %v406
  %v489 = vpack.c.bf16 %v409, %v408
  %v490 = vpack.c.bf16 %v411, %v410
  %v491 = vpack.c.bf16 %v413, %v412
  %v492 = vpack.c.bf16 %v415, %v414
  %v493 = vpack.c.bf16 %v417, %v416
  %v494 = vpack.c.bf16 %v419, %v418
  %v495 = vpack.c.bf16 %v421, %v420
  %v496 = vpack.c.bf16 %v423, %v422
  %v497 = vpack.c.bf16 %v425, %v424
  %v498 = vpack.c.bf16 %v427, %v426
  %v499 = vpack.c.bf16 %v429, %v428
  %v500 = vpack.c.bf16 %v431, %v430
  %v501 = vpack.c.bf16 %v433, %v432
  %v502 = vpack.c.bf16 %v435, %v434
  %v503 = vpack.c.bf16 %v437, %v436
  %v504 = vpack.c.bf16 %v439, %v438
  %v505 = vpack.c.bf16 %v441, %v440
  %v506 = vld [vmem:[%s2] sm:$0xff]
  %v507 = vld [vmem:[%s2 + $0x8] sm:$0xff]
  %v508 = vld [vmem:[%s2 + $0x10] sm:$0xff]
  %v509 = vld [vmem:[%s2 + $0x18] sm:$0xff]
  %v510 = vld [vmem:[%s2 + $0x20] sm:$0xff]
  %v511 = vld [vmem:[%s2 + $0x28] sm:$0xff]
  %v512 = vld [vmem:[%s2 + $0x30] sm:$0xff]
  %v513 = vld [vmem:[%s2 + $0x38] sm:$0xff]
  %v514 = vld [vmem:[%s2 + $0x40] sm:$0xff]
  %v515 = vld [vmem:[%s2 + $0x48] sm:$0xff]
  %v516 = vld [vmem:[%s2 + $0x50] sm:$0xff]
  %v517 = vld [vmem:[%s2 + $0x58] sm:$0xff]
  %v518 = vld [vmem:[%s2 + $0x60] sm:$0xff]
  %v519 = vld [vmem:[%s2 + $0x68] sm:$0xff]
  %v520 = vld [vmem:[%s2 + $0x70] sm:$0xff]
  %v521 = vld [vmem:[%s2 + $0x78] sm:$0xff]
  %v522 = vld [vmem:[%s2 + $0x80] sm:$0xff]
  %v523 = vld [vmem:[%s2 + $0x88] sm:$0xff]
  %v524 = vld [vmem:[%s2 + $0x90] sm:$0xff]
  %v525 = vld [vmem:[%s2 + $0x98] sm:$0xff]
  %v526 = vld [vmem:[%s2 + $0xa0] sm:$0xff]
  %v527 = vld [vmem:[%s2 + $0xa8] sm:$0xff]
  %v528 = vld [vmem:[%s2 + $0xb0] sm:$0xff]
  %v529 = vld [vmem:[%s2 + $0xb8] sm:$0xff]
  %v530 = vld [vmem:[%s2 + $0xc0] sm:$0xff]
  %v531 = vld [vmem:[%s2 + $0xc8] sm:$0xff]
  %v532 = vld [vmem:[%s2 + $0xd0] sm:$0xff]
  %v533 = vld [vmem:[%s2 + $0xd8] sm:$0xff]
  %v534 = vld [vmem:[%s2 + $0xe0] sm:$0xff]
  %v535 = vld [vmem:[%s2 + $0xe8] sm:$0xff]
  %v536 = vld [vmem:[%s2 + $0xf0] sm:$0xff]
  %v537 = vld [vmem:[%s2 + $0xf8] sm:$0xff]
  %v538 = vld [vmem:[%s2 + $0x100] sm:$0xff]
  %v539 = vld [vmem:[%s2 + $0x108] sm:$0xff]
  %v540 = vld [vmem:[%s2 + $0x110] sm:$0xff]
  %v541 = vld [vmem:[%s2 + $0x118] sm:$0xff]
  %v542 = vld [vmem:[%s2 + $0x120] sm:$0xff]
  %v543 = vld [vmem:[%s2 + $0x128] sm:$0xff]
  %v544 = vld [vmem:[%s2 + $0x130] sm:$0xff]
  %v545 = vld [vmem:[%s2 + $0x138] sm:$0xff]
  %v546 = vld [vmem:[%s2 + $0x140] sm:$0xff]
  %v547 = vld [vmem:[%s2 + $0x148] sm:$0xff]
  %v548 = vld [vmem:[%s2 + $0x150] sm:$0xff]
  %v549 = vld [vmem:[%s2 + $0x158] sm:$0xff]
  %v550 = vld [vmem:[%s2 + $0x160] sm:$0xff]
  %v551 = vld [vmem:[%s2 + $0x168] sm:$0xff]
  %v552 = vld [vmem:[%s2 + $0x170] sm:$0xff]
  %v553 = vld [vmem:[%s2 + $0x178] sm:$0xff]
  %v554 = vld [vmem:[%s2 + $0x180] sm:$0xff]
  %v555 = vld [vmem:[%s2 + $0x188] sm:$0xff]
  %v556 = vld [vmem:[%s2 + $0x190] sm:$0xff]
  %v557 = vld [vmem:[%s2 + $0x198] sm:$0xff]
  %v558 = vld [vmem:[%s2 + $0x1a0] sm:$0xff]
  %v559 = vld [vmem:[%s2 + $0x1a8] sm:$0xff]
  %v560 = vld [vmem:[%s2 + $0x1b0] sm:$0xff]
  %v561 = vld [vmem:[%s2 + $0x1b8] sm:$0xff]
  %v562 = vld [vmem:[%s2 + $0x1c0] sm:$0xff]
  %v563 = vld [vmem:[%s2 + $0x1c8] sm:$0xff]
  %v564 = vld [vmem:[%s2 + $0x1d0] sm:$0xff]
  %v565 = vld [vmem:[%s2 + $0x1d8] sm:$0xff]
  %v566 = vld [vmem:[%s2 + $0x1e0] sm:$0xff]
  %v567 = vld [vmem:[%s2 + $0x1e8] sm:$0xff]
  %v568 = vld [vmem:[%s2 + $0x1f0] sm:$0xff]
  %v569 = vld [vmem:[%s2 + $0x1f8] sm:$0xff]
  %v570 = vld [vmem:[%s2 + $0x200] sm:$0xff]
  %v571 = vld [vmem:[%s2 + $0x208] sm:$0xff]
  %v572 = vld [vmem:[%s2 + $0x210] sm:$0xff]
  %v573 = vld [vmem:[%s2 + $0x218] sm:$0xff]
  %v574 = vld [vmem:[%s2 + $0x220] sm:$0xff]
  %v575 = vld [vmem:[%s2 + $0x228] sm:$0xff]
  %v576 = vld [vmem:[%s2 + $0x230] sm:$0xff]
  %v577 = vld [vmem:[%s2 + $0x238] sm:$0xff]
  %v578 = vld [vmem:[%s2 + $0x240] sm:$0xff]
  %v579 = vld [vmem:[%s2 + $0x248] sm:$0xff]
  %v580 = vld [vmem:[%s2 + $0x250] sm:$0xff]
  %v581 = vld [vmem:[%s2 + $0x258] sm:$0xff]
  %v582 = vld [vmem:[%s2 + $0x260] sm:$0xff]
  %v583 = vld [vmem:[%s2 + $0x268] sm:$0xff]
  %v584 = vld [vmem:[%s2 + $0x270] sm:$0xff]
  %v585 = vld [vmem:[%s2 + $0x278] sm:$0xff]
  %v586 = vld [vmem:[%s2 + $0x280] sm:$0xff]
  %v587 = vld [vmem:[%s2 + $0x288] sm:$0xff]
  %v588 = vld [vmem:[%s2 + $0x290] sm:$0xff]
  %v589 = vld [vmem:[%s2 + $0x298] sm:$0xff]
  %v590 = vld [vmem:[%s2 + $0x2a0] sm:$0xff]
  %v591 = vld [vmem:[%s2 + $0x2a8] sm:$0xff]
  %v592 = vld [vmem:[%s2 + $0x2b0] sm:$0xff]
  %v593 = vld [vmem:[%s2 + $0x2b8] sm:$0xff]
  %v594 = vld [vmem:[%s2 + $0x2c0] sm:$0xff]
  %v595 = vld [vmem:[%s2 + $0x2c8] sm:$0xff]
  %v596 = vld [vmem:[%s2 + $0x2d0] sm:$0xff]
  %v597 = vld [vmem:[%s2 + $0x2d8] sm:$0xff]
  %v598 = vld [vmem:[%s2 + $0x2e0] sm:$0xff]
  %v599 = vld [vmem:[%s2 + $0x2e8] sm:$0xff]
  %v600 = vld [vmem:[%s2 + $0x2f0] sm:$0xff]
  %v601 = vld [vmem:[%s2 + $0x2f8] sm:$0xff]
  %v602 = vld [vmem:[%s2 + $0x300] sm:$0xff]
  %v603 = vld [vmem:[%s2 + $0x308] sm:$0xff]
  %v604 = vld [vmem:[%s2 + $0x310] sm:$0xff]
  %v605 = vld [vmem:[%s2 + $0x318] sm:$0xff]
  %v606 = vld [vmem:[%s2 + $0x320] sm:$0xff]
  %v607 = vld [vmem:[%s2 + $0x328] sm:$0xff]
  %v608 = vld [vmem:[%s2 + $0x330] sm:$0xff]
  %v609 = vld [vmem:[%s2 + $0x338] sm:$0xff]
  %v610 = vld [vmem:[%s2 + $0x340] sm:$0xff]
  %v611 = vld [vmem:[%s2 + $0x348] sm:$0xff]
  %v612 = vld [vmem:[%s2 + $0x350] sm:$0xff]
  %v613 = vld [vmem:[%s2 + $0x358] sm:$0xff]
  %v614 = vld [vmem:[%s2 + $0x360] sm:$0xff]
  %v615 = vld [vmem:[%s2 + $0x368] sm:$0xff]
  %v616 = vld [vmem:[%s2 + $0x370] sm:$0xff]
  %v617 = vld [vmem:[%s2 + $0x378] sm:$0xff]
  %v618 = vld [vmem:[%s2 + $0x380] sm:$0xff]
  %v619 = vld [vmem:[%s2 + $0x388] sm:$0xff]
  %v620 = vld [vmem:[%s2 + $0x390] sm:$0xff]
  %v621 = vld [vmem:[%s2 + $0x398] sm:$0xff]
  %v622 = vld [vmem:[%s2 + $0x3a0] sm:$0xff]
  %v623 = vld [vmem:[%s2 + $0x3a8] sm:$0xff]
  %v624 = vld [vmem:[%s2 + $0x3b0] sm:$0xff]
  %v625 = vld [vmem:[%s2 + $0x3b8] sm:$0xff]
  %v626 = vld [vmem:[%s2 + $0x3c0] sm:$0xff]
  %v627 = vld [vmem:[%s2 + $0x3c8] sm:$0xff]
  %v628 = vld [vmem:[%s2 + $0x3d0] sm:$0xff]
  %v629 = vld [vmem:[%s2 + $0x3d8] sm:$0xff]
  %v630 = vld [vmem:[%s2 + $0x3e0] sm:$0xff]
  %v631 = vld [vmem:[%s2 + $0x3e8] sm:$0xff]
  %v632 = vld [vmem:[%s2 + $0x3f0] sm:$0xff]
  %v633 = vld [vmem:[%s2 + $0x3f8] sm:$0xff]
  %v634 = vpack.c.bf16 %v507, %v506
  %v635 = vpack.c.bf16 %v509, %v508
  %v636 = vpack.c.bf16 %v511, %v510
  %v637 = vpack.c.bf16 %v513, %v512
  %v638 = vpack.c.bf16 %v515, %v514
  %v639 = vpack.c.bf16 %v517, %v516
  %v640 = vpack.c.bf16 %v519, %v518
  %v641 = vpack.c.bf16 %v521, %v520
  %v642 = vpack.c.bf16 %v523, %v522
  %v643 = vpack.c.bf16 %v525, %v524
  %v644 = vpack.c.bf16 %v527, %v526
  %v645 = vpack.c.bf16 %v529, %v528
  %v646 = vpack.c.bf16 %v531, %v530
  %v647 = vpack.c.bf16 %v533, %v532
  %v648 = vpack.c.bf16 %v535, %v534
  %v649 = vpack.c.bf16 %v537, %v536
  %v650 = vpack.c.bf16 %v539, %v538
  %v651 = vpack.c.bf16 %v541, %v540
  %v652 = vpack.c.bf16 %v543, %v542
  %v653 = vpack.c.bf16 %v545, %v544
  %v654 = vpack.c.bf16 %v547, %v546
  %v655 = vpack.c.bf16 %v549, %v548
  %v656 = vpack.c.bf16 %v551, %v550
  %v657 = vpack.c.bf16 %v553, %v552
  %v658 = vpack.c.bf16 %v555, %v554
  %v659 = vpack.c.bf16 %v557, %v556
  %v660 = vpack.c.bf16 %v559, %v558
  %v661 = vpack.c.bf16 %v561, %v560
  %v662 = vpack.c.bf16 %v563, %v562
  %v663 = vpack.c.bf16 %v565, %v564
  %v664 = vpack.c.bf16 %v567, %v566
  %v665 = vpack.c.bf16 %v569, %v568
  %v666 = vpack.c.bf16 %v571, %v570
  %v667 = vpack.c.bf16 %v573, %v572
  %v668 = vpack.c.bf16 %v575, %v574
  %v669 = vpack.c.bf16 %v577, %v576
  %v670 = vpack.c.bf16 %v579, %v578
  %v671 = vpack.c.bf16 %v581, %v580
  %v672 = vpack.c.bf16 %v583, %v582
  %v673 = vpack.c.bf16 %v585, %v584
  %v674 = vpack.c.bf16 %v587, %v586
  %v675 = vpack.c.bf16 %v589, %v588
  %v676 = vpack.c.bf16 %v591, %v590
  %v677 = vpack.c.bf16 %v593, %v592
  %v678 = vpack.c.bf16 %v595, %v594
  %v679 = vpack.c.bf16 %v597, %v596
  %v680 = vpack.c.bf16 %v599, %v598
  %v681 = vpack.c.bf16 %v601, %v600
  %v682 = vpack.c.bf16 %v603, %v602
  %v683 = vpack.c.bf16 %v605, %v604
  %v684 = vpack.c.bf16 %v607, %v606
  %v685 = vpack.c.bf16 %v609, %v608
  %v686 = vpack.c.bf16 %v611, %v610
  %v687 = vpack.c.bf16 %v613, %v612
  %v688 = vpack.c.bf16 %v615, %v614
  %v689 = vpack.c.bf16 %v617, %v616
  %v690 = vpack.c.bf16 %v619, %v618
  %v691 = vpack.c.bf16 %v621, %v620
  %v692 = vpack.c.bf16 %v623, %v622
  %v693 = vpack.c.bf16 %v625, %v624
  %v694 = vpack.c.bf16 %v627, %v626
  %v695 = vpack.c.bf16 %v629, %v628
  %v696 = vpack.c.bf16 %v631, %v630
  %v697 = vpack.c.bf16 %v633, %v632
  %vm698 = vcmask 261120
  %v700 = vsel %vm698, %v298, 0
  %v703 = vsel %vm698, %v442, 0
  %v706 = vsel %vm698, %v443, 0
  %v709 = vsel %vm698, %v444, 0
  %v712 = vsel %vm698, %v445, 0
  %714 = vmatprep.subr.bf16.mxu0 0
  %715 = vmatpush1.bf16.xpose.msra.mxu0 %v703
  %716 = vmatprep.subr.bf16.mxu0 0
  %717 = vmatpush1.bf16.xpose.msra.mxu0 %v706
  %718 = vmatprep.subr.bf16.mxu0 0
  %719 = vmatpush1.bf16.xpose.msra.mxu0 %v709
  %720 = vmatprep.subr.bf16.mxu0 0
  %721 = vmatpush1.bf16.xpose.msra.mxu0 %v712
  %722 = vmatprep.subr.bf16.mxu0 0
  %723 = vmatpush1.bf16.xpose.msra.mxu0 0
  %724 = vmatprep.subr.bf16.mxu0 0
  %725 = vmatpush1.bf16.xpose.msra.mxu0 0
  %726 = vmatprep.subr.bf16.mxu0 0
  %727 = vmatpush1.bf16.xpose.msra.mxu0 0
  %728 = vmatprep.subr.bf16.mxu0 0
  %729 = vmatpush1.bf16.xpose.msra.mxu0 0
  %730 = vmatprep.subr.bf16.mxu0 0
  %731 = vmatpush1.bf16.xpose.msra.mxu0 0
  %732 = vmatprep.subr.bf16.mxu0 0
  %733 = vmatpush1.bf16.xpose.msra.mxu0 0
  %734 = vmatprep.subr.bf16.mxu0 0
  %735 = vmatpush1.bf16.xpose.msra.mxu0 0
  %736 = vmatprep.subr.bf16.mxu0 0
  %737 = vmatpush1.bf16.xpose.msra.mxu0 0
  %738 = vmatprep.subr.bf16.mxu0 0
  %739 = vmatpush1.bf16.xpose.msra.mxu0 0
  %740 = vmatprep.subr.bf16.mxu0 0
  %741 = vmatpush1.bf16.xpose.msra.mxu0 0
  %742 = vmatprep.subr.bf16.mxu0 0
  %743 = vmatpush1.bf16.xpose.msra.mxu0 0
  %744 = vmatprep.subr.bf16.mxu0 0
  %745 = vmatpush1.bf16.xpose.msra.mxu0 0
  %746 = vmatprep.mubr.bf16.mxu0 0
  %747 = vmatmul.mubr.bf16.gmra.mrb[0].mxu0 %v700
  %v748 = vpop.f32.mrb[0].mxu0
  %v749 = vadd.f32 0.0, %v748
  %v750 = vpop.f32.mrb[0].mxu0
  %v751 = vpop.f32.mrb[0].mxu0
  %v752 = vadd.f32 0.0, %v751
  %v753 = vpop.f32.mrb[0].mxu0
  %754 = vdwg.mxu0
  %v756 = vsel %vm698, %v299, 0
  %v759 = vsel %vm698, %v446, 0
  %v762 = vsel %vm698, %v447, 0
  %v765 = vsel %vm698, %v448, 0
  %v768 = vsel %vm698, %v449, 0
  %770 = vmatprep.subr.bf16.mxu0 0
  %771 = vmatpush1.bf16.xpose.msra.mxu0 %v759
  %772 = vmatprep.subr.bf16.mxu0 0
  %773 = vmatpush1.bf16.xpose.msra.mxu0 %v762
  %774 = vmatprep.subr.bf16.mxu0 0
  %775 = vmatpush1.bf16.xpose.msra.mxu0 %v765
  %776 = vmatprep.subr.bf16.mxu0 0
  %777 = vmatpush1.bf16.xpose.msra.mxu0 %v768
  %778 = vmatprep.subr.bf16.mxu0 0
  %779 = vmatpush1.bf16.xpose.msra.mxu0 0
  %780 = vmatprep.subr.bf16.mxu0 0
  %781 = vmatpush1.bf16.xpose.msra.mxu0 0
  %782 = vmatprep.subr.bf16.mxu0 0
  %783 = vmatpush1.bf16.xpose.msra.mxu0 0
  %784 = vmatprep.subr.bf16.mxu0 0
  %785 = vmatpush1.bf16.xpose.msra.mxu0 0
  %786 = vmatprep.subr.bf16.mxu0 0
  %787 = vmatpush1.bf16.xpose.msra.mxu0 0
  %788 = vmatprep.subr.bf16.mxu0 0
  %789 = vmatpush1.bf16.xpose.msra.mxu0 0
  %790 = vmatprep.subr.bf16.mxu0 0
  %791 = vmatpush1.bf16.xpose.msra.mxu0 0
  %792 = vmatprep.subr.bf16.mxu0 0
  %793 = vmatpush1.bf16.xpose.msra.mxu0 0
  %794 = vmatprep.subr.bf16.mxu0 0
  %795 = vmatpush1.bf16.xpose.msra.mxu0 0
  %796 = vmatprep.subr.bf16.mxu0 0
  %797 = vmatpush1.bf16.xpose.msra.mxu0 0
  %798 = vmatprep.subr.bf16.mxu0 0
  %799 = vmatpush1.bf16.xpose.msra.mxu0 0
  %800 = vmatprep.subr.bf16.mxu0 0
  %801 = vmatpush1.bf16.xpose.msra.mxu0 0
  %802 = vmatprep.mubr.bf16.mxu0 0
  %803 = vmatmul.mubr.bf16.gmra.mrb[0].mxu0 %v756
  %v804 = vpop.f32.mrb[0].mxu0
  %v805 = vadd.f32 0.0, %v804
  %v806 = vpop.f32.mrb[0].mxu0
  %v807 = vpop.f32.mrb[0].mxu0
  %v808 = vadd.f32 0.0, %v807
  %v809 = vpop.f32.mrb[0].mxu0
  %810 = vdwg.mxu0
  %v812 = vsel %vm698, %v300, 0
  %v815 = vsel %vm698, %v450, 0
  %v818 = vsel %vm698, %v451, 0
  %v821 = vsel %vm698, %v452, 0
  %v824 = vsel %vm698, %v453, 0
  %826 = vmatprep.subr.bf16.mxu0 0
  %827 = vmatpush1.bf16.xpose.msra.mxu0 %v815
  %828 = vmatprep.subr.bf16.mxu0 0
  %829 = vmatpush1.bf16.xpose.msra.mxu0 %v818
  %830 = vmatprep.subr.bf16.mxu0 0
  %831 = vmatpush1.bf16.xpose.msra.mxu0 %v821
  %832 = vmatprep.subr.bf16.mxu0 0
  %833 = vmatpush1.bf16.xpose.msra.mxu0 %v824
  %834 = vmatprep.subr.bf16.mxu0 0
  %835 = vmatpush1.bf16.xpose.msra.mxu0 0
  %836 = vmatprep.subr.bf16.mxu0 0
  %837 = vmatpush1.bf16.xpose.msra.mxu0 0
  %838 = vmatprep.subr.bf16.mxu0 0
  %839 = vmatpush1.bf16.xpose.msra.mxu0 0
  %840 = vmatprep.subr.bf16.mxu0 0
  %841 = vmatpush1.bf16.xpose.msra.mxu0 0
  %842 = vmatprep.subr.bf16.mxu0 0
  %843 = vmatpush1.bf16.xpose.msra.mxu0 0
  %844 = vmatprep.subr.bf16.mxu0 0
  %845 = vmatpush1.bf16.xpose.msra.mxu0 0
  %846 = vmatprep.subr.bf16.mxu0 0
  %847 = vmatpush1.bf16.xpose.msra.mxu0 0
  %848 = vmatprep.subr.bf16.mxu0 0
  %849 = vmatpush1.bf16.xpose.msra.mxu0 0
  %850 = vmatprep.subr.bf16.mxu0 0
  %851 = vmatpush1.bf16.xpose.msra.mxu0 0
  %852 = vmatprep.subr.bf16.mxu0 0
  %853 = vmatpush1.bf16.xpose.msra.mxu0 0
  %854 = vmatprep.subr.bf16.mxu0 0
  %855 = vmatpush1.bf16.xpose.msra.mxu0 0
  %856 = vmatprep.subr.bf16.mxu0 0
  %857 = vmatpush1.bf16.xpose.msra.mxu0 0
  %858 = vmatprep.mubr.bf16.mxu0 0
  %859 = vmatmul.mubr.bf16.gmra.mrb[0].mxu0 %v812
  %v860 = vpop.f32.mrb[0].mxu0
  %v861 = vadd.f32 0.0, %v860
  %v862 = vpop.f32.mrb[0].mxu0
  %v863 = vpop.f32.mrb[0].mxu0
  %v864 = vadd.f32 0.0, %v863
  %v865 = vpop.f32.mrb[0].mxu0
  %866 = vdwg.mxu0
  %v868 = vsel %vm698, %v301, 0
  %v871 = vsel %vm698, %v454, 0
  %v874 = vsel %vm698, %v455, 0
  %v877 = vsel %vm698, %v456, 0
  %v880 = vsel %vm698, %v457, 0
  %882 = vmatprep.subr.bf16.mxu0 0
  %883 = vmatpush1.bf16.xpose.msra.mxu0 %v871
  %884 = vmatprep.subr.bf16.mxu0 0
  %885 = vmatpush1.bf16.xpose.msra.mxu0 %v874
  %886 = vmatprep.subr.bf16.mxu0 0
  %887 = vmatpush1.bf16.xpose.msra.mxu0 %v877
  %888 = vmatprep.subr.bf16.mxu0 0
  %889 = vmatpush1.bf16.xpose.msra.mxu0 %v880
  %890 = vmatprep.subr.bf16.mxu0 0
  %891 = vmatpush1.bf16.xpose.msra.mxu0 0
  %892 = vmatprep.subr.bf16.mxu0 0
  %893 = vmatpush1.bf16.xpose.msra.mxu0 0
  %894 = vmatprep.subr.bf16.mxu0 0
  %895 = vmatpush1.bf16.xpose.msra.mxu0 0
  %896 = vmatprep.subr.bf16.mxu0 0
  %897 = vmatpush1.bf16.xpose.msra.mxu0 0
  %898 = vmatprep.subr.bf16.mxu0 0
  %899 = vmatpush1.bf16.xpose.msra.mxu0 0
  %900 = vmatprep.subr.bf16.mxu0 0
  %901 = vmatpush1.bf16.xpose.msra.mxu0 0
  %902 = vmatprep.subr.bf16.mxu0 0
  %903 = vmatpush1.bf16.xpose.msra.mxu0 0
  %904 = vmatprep.subr.bf16.mxu0 0
  %905 = vmatpush1.bf16.xpose.msra.mxu0 0
  %906 = vmatprep.subr.bf16.mxu0 0
  %907 = vmatpush1.bf16.xpose.msra.mxu0 0
  %908 = vmatprep.subr.bf16.mxu0 0
  %909 = vmatpush1.bf16.xpose.msra.mxu0 0
  %910 = vmatprep.subr.bf16.mxu0 0
  %911 = vmatpush1.bf16.xpose.msra.mxu0 0
  %912 = vmatprep.subr.bf16.mxu0 0
  %913 = vmatpush1.bf16.xpose.msra.mxu0 0
  %914 = vmatprep.mubr.bf16.mxu0 0
  %915 = vmatmul.mubr.bf16.gmra.mrb[0].mxu0 %v868
  %v916 = vpop.f32.mrb[0].mxu0
  %v917 = vadd.f32 0.0, %v916
  %v918 = vpop.f32.mrb[0].mxu0
  %v919 = vpop.f32.mrb[0].mxu0
  %v920 = vadd.f32 0.0, %v919
  %v921 = vpop.f32.mrb[0].mxu0
  %922 = vdwg.mxu0
  %v924 = vsel %vm698, %v302, 0
  %v927 = vsel %vm698, %v458, 0
  %v930 = vsel %vm698, %v459, 0
  %v933 = vsel %vm698, %v460, 0
  %v936 = vsel %vm698, %v461, 0
  %938 = vmatprep.subr.bf16.mxu0 0
  %939 = vmatpush1.bf16.xpose.msra.mxu0 %v927
  %940 = vmatprep.subr.bf16.mxu0 0
  %941 = vmatpush1.bf16.xpose.msra.mxu0 %v930
  %942 = vmatprep.subr.bf16.mxu0 0
  %943 = vmatpush1.bf16.xpose.msra.mxu0 %v933
  %944 = vmatprep.subr.bf16.mxu0 0
  %945 = vmatpush1.bf16.xpose.msra.mxu0 %v936
  %946 = vmatprep.subr.bf16.mxu0 0
  %947 = vmatpush1.bf16.xpose.msra.mxu0 0
  %948 = vmatprep.subr.bf16.mxu0 0
  %949 = vmatpush1.bf16.xpose.msra.mxu0 0
  %950 = vmatprep.subr.bf16.mxu0 0
  %951 = vmatpush1.bf16.xpose.msra.mxu0 0
  %952 = vmatprep.subr.bf16.mxu0 0
  %953 = vmatpush1.bf16.xpose.msra.mxu0 0
  %954 = vmatprep.subr.bf16.mxu0 0
  %955 = vmatpush1.bf16.xpose.msra.mxu0 0
  %956 = vmatprep.subr.bf16.mxu0 0
  %957 = vmatpush1.bf16.xpose.msra.mxu0 0
  %958 = vmatprep.subr.bf16.mxu0 0
  %959 = vmatpush1.bf16.xpose.msra.mxu0 0
  %960 = vmatprep.subr.bf16.mxu0 0
  %961 = vmatpush1.bf16.xpose.msra.mxu0 0
  %962 = vmatprep.subr.bf16.mxu0 0
  %963 = vmatpush1.bf16.xpose.msra.mxu0 0
  %964 = vmatprep.subr.bf16.mxu0 0
  %965 = vmatpush1.bf16.xpose.msra.mxu0 0
  %966 = vmatprep.subr.bf16.mxu0 0
  %967 = vmatpush1.bf16.xpose.msra.mxu0 0
  %968 = vmatprep.subr.bf16.mxu0 0
  %969 = vmatpush1.bf16.xpose.msra.mxu0 0
  %970 = vmatprep.mubr.bf16.mxu0 0
  %971 = vmatmul.mubr.bf16.gmra.mrb[0].mxu0 %v924
  %v972 = vpop.f32.mrb[0].mxu0
  %v973 = vadd.f32 0.0, %v972
  %v974 = vpop.f32.mrb[0].mxu0
  %v975 = vpop.f32.mrb[0].mxu0
  %v976 = vadd.f32 0.0, %v975
  %v977 = vpop.f32.mrb[0].mxu0
  %978 = vdwg.mxu0
  %v980 = vsel %vm698, %v303, 0
  %v983 = vsel %vm698, %v462, 0
  %v986 = vsel %vm698, %v463, 0
  %v989 = vsel %vm698, %v464, 0
  %v992 = vsel %vm698, %v465, 0
  %994 = vmatprep.subr.bf16.mxu0 0
  %995 = vmatpush1.bf16.xpose.msra.mxu0 %v983
  %996 = vmatprep.subr.bf16.mxu0 0
  %997 = vmatpush1.bf16.xpose.msra.mxu0 %v986
  %998 = vmatprep.subr.bf16.mxu0 0
  %999 = vmatpush1.bf16.xpose.msra.mxu0 %v989
  %1000 = vmatprep.subr.bf16.mxu0 0
  %1001 = vmatpush1.bf16.xpose.msra.mxu0 %v992
  %1002 = vmatprep.subr.bf16.mxu0 0
  %1003 = vmatpush1.bf16.xpose.msra.mxu0 0
  %1004 = vmatprep.subr.bf16.mxu0 0
  %1005 = vmatpush1.bf16.xpose.msra.mxu0 0
  %1006 = vmatprep.subr.bf16.mxu0 0
  %1007 = vmatpush1.bf16.xpose.msra.mxu0 0
  %1008 = vmatprep.subr.bf16.mxu0 0
  %1009 = vmatpush1.bf16.xpose.msra.mxu0 0
  %1010 = vmatprep.subr.bf16.mxu0 0
  %1011 = vmatpush1.bf16.xpose.msra.mxu0 0
  %1012 = vmatprep.subr.bf16.mxu0 0
  %1013 = vmatpush1.bf16.xpose.msra.mxu0 0
  %1014 = vmatprep.subr.bf16.mxu0 0
  %1015 = vmatpush1.bf16.xpose.msra.mxu0 0
  %1016 = vmatprep.subr.bf16.mxu0 0
  %1017 = vmatpush1.bf16.xpose.msra.mxu0 0
  %1018 = vmatprep.subr.bf16.mxu0 0
  %1019 = vmatpush1.bf16.xpose.msra.mxu0 0
  %1020 = vmatprep.subr.bf16.mxu0 0
  %1021 = vmatpush1.bf16.xpose.msra.mxu0 0
  %1022 = vmatprep.subr.bf16.mxu0 0
  %1023 = vmatpush1.bf16.xpose.msra.mxu0 0
  %1024 = vmatprep.subr.bf16.mxu0 0
  %1025 = vmatpush1.bf16.xpose.msra.mxu0 0
  %1026 = vmatprep.mubr.bf16.mxu0 0
  %1027 = vmatmul.mubr.bf16.gmra.mrb[0].mxu0 %v980
  %v1028 = vpop.f32.mrb[0].mxu0
  %v1029 = vadd.f32 0.0, %v1028
  %v1030 = vpop.f32.mrb[0].mxu0
  %v1031 = vpop.f32.mrb[0].mxu0
  %v1032 = vadd.f32 0.0, %v1031
  %v1033 = vpop.f32.mrb[0].mxu0
  %1034 = vdwg.mxu0
  %v1036 = vsel %vm698, %v304, 0
  %v1039 = vsel %vm698, %v466, 0
  %v1042 = vsel %vm698, %v467, 0
  %v1045 = vsel %vm698, %v468, 0
  %v1048 = vsel %vm698, %v469, 0
  %1050 = vmatprep.subr.bf16.mxu0 0
  %1051 = vmatpush1.bf16.xpose.msra.mxu0 %v1039
  %1052 = vmatprep.subr.bf16.mxu0 0
  %1053 = vmatpush1.bf16.xpose.msra.mxu0 %v1042
  %1054 = vmatprep.subr.bf16.mxu0 0
  %1055 = vmatpush1.bf16.xpose.msra.mxu0 %v1045
  %1056 = vmatprep.subr.bf16.mxu0 0
  %1057 = vmatpush1.bf16.xpose.msra.mxu0 %v1048
  %1058 = vmatprep.subr.bf16.mxu0 0
  %1059 = vmatpush1.bf16.xpose.msra.mxu0 0
  %1060 = vmatprep.subr.bf16.mxu0 0
  %1061 = vmatpush1.bf16.xpose.msra.mxu0 0
  %1062 = vmatprep.subr.bf16.mxu0 0
  %1063 = vmatpush1.bf16.xpose.msra.mxu0 0
  %1064 = vmatprep.subr.bf16.mxu0 0
  %1065 = vmatpush1.bf16.xpose.msra.mxu0 0
  %1066 = vmatprep.subr.bf16.mxu0 0
  %1067 = vmatpush1.bf16.xpose.msra.mxu0 0
  %1068 = vmatprep.subr.bf16.mxu0 0
  %1069 = vmatpush1.bf16.xpose.msra.mxu0 0
  %1070 = vmatprep.subr.bf16.mxu0 0
  %1071 = vmatpush1.bf16.xpose.msra.mxu0 0
  %1072 = vmatprep.subr.bf16.mxu0 0
  %1073 = vmatpush1.bf16.xpose.msra.mxu0 0
  %1074 = vmatprep.subr.bf16.mxu0 0
  %1075 = vmatpush1.bf16.xpose.msra.mxu0 0
  %1076 = vmatprep.subr.bf16.mxu0 0
  %1077 = vmatpush1.bf16.xpose.msra.mxu0 0
  %1078 = vmatprep.subr.bf16.mxu0 0
  %1079 = vmatpush1.bf16.xpose.msra.mxu0 0
  %1080 = vmatprep.subr.bf16.mxu0 0
  %1081 = vmatpush1.bf16.xpose.msra.mxu0 0
  %1082 = vmatprep.mubr.bf16.mxu0 0
  %1083 = vmatmul.mubr.bf16.gmra.mrb[0].mxu0 %v1036
  %v1084 = vpop.f32.mrb[0].mxu0
  %v1085 = vadd.f32 0.0, %v1084
  %v1086 = vpop.f32.mrb[0].mxu0
  %v1087 = vpop.f32.mrb[0].mxu0
  %v1088 = vadd.f32 0.0, %v1087
  %v1089 = vpop.f32.mrb[0].mxu0
  %1090 = vdwg.mxu0
  %v1092 = vsel %vm698, %v305, 0
  %v1095 = vsel %vm698, %v470, 0
  %v1098 = vsel %vm698, %v471, 0
  %v1101 = vsel %vm698, %v472, 0
  %v1104 = vsel %vm698, %v473, 0
  %1106 = vmatprep.subr.bf16.mxu0 0
  %1107 = vmatpush1.bf16.xpose.msra.mxu0 %v1095
  %1108 = vmatprep.subr.bf16.mxu0 0
  %1109 = vmatpush1.bf16.xpose.msra.mxu0 %v1098
  %1110 = vmatprep.subr.bf16.mxu0 0
  %1111 = vmatpush1.bf16.xpose.msra.mxu0 %v1101
  %1112 = vmatprep.subr.bf16.mxu0 0
  %1113 = vmatpush1.bf16.xpose.msra.mxu0 %v1104
  %1114 = vmatprep.subr.bf16.mxu0 0
  %1115 = vmatpush1.bf16.xpose.msra.mxu0 0
  %1116 = vmatprep.subr.bf16.mxu0 0
  %1117 = vmatpush1.bf16.xpose.msra.mxu0 0
  %1118 = vmatprep.subr.bf16.mxu0 0
  %1119 = vmatpush1.bf16.xpose.msra.mxu0 0
  %1120 = vmatprep.subr.bf16.mxu0 0
  %1121 = vmatpush1.bf16.xpose.msra.mxu0 0
  %1122 = vmatprep.subr.bf16.mxu0 0
  %1123 = vmatpush1.bf16.xpose.msra.mxu0 0
  %1124 = vmatprep.subr.bf16.mxu0 0
  %1125 = vmatpush1.bf16.xpose.msra.mxu0 0
  %1126 = vmatprep.subr.bf16.mxu0 0
  %1127 = vmatpush1.bf16.xpose.msra.mxu0 0
  %1128 = vmatprep.subr.bf16.mxu0 0
  %1129 = vmatpush1.bf16.xpose.msra.mxu0 0
  %1130 = vmatprep.subr.bf16.mxu0 0
  %1131 = vmatpush1.bf16.xpose.msra.mxu0 0
  %1132 = vmatprep.subr.bf16.mxu0 0
  %1133 = vmatpush1.bf16.xpose.msra.mxu0 0
  %1134 = vmatprep.subr.bf16.mxu0 0
  %1135 = vmatpush1.bf16.xpose.msra.mxu0 0
  %1136 = vmatprep.subr.bf16.mxu0 0
  %1137 = vmatpush1.bf16.xpose.msra.mxu0 0
  %1138 = vmatprep.mubr.bf16.mxu0 0
  %1139 = vmatmul.mubr.bf16.gmra.mrb[0].mxu0 %v1092
  %v1140 = vpop.f32.mrb[0].mxu0
  %v1141 = vadd.f32 0.0, %v1140
  %v1142 = vpop.f32.mrb[0].mxu0
  %v1143 = vpop.f32.mrb[0].mxu0
  %v1144 = vadd.f32 0.0, %v1143
  %v1145 = vpop.f32.mrb[0].mxu0
  %1146 = vdwg.mxu0
  %v1148 = vsel %vm698, %v306, 0
  %v1151 = vsel %vm698, %v474, 0
  %v1154 = vsel %vm698, %v475, 0
  %v1157 = vsel %vm698, %v476, 0
  %v1160 = vsel %vm698, %v477, 0
  %1162 = vmatprep.subr.bf16.mxu0 0
  %1163 = vmatpush1.bf16.xpose.msra.mxu0 %v1151
  %1164 = vmatprep.subr.bf16.mxu0 0
  %1165 = vmatpush1.bf16.xpose.msra.mxu0 %v1154
  %1166 = vmatprep.subr.bf16.mxu0 0
  %1167 = vmatpush1.bf16.xpose.msra.mxu0 %v1157
  %1168 = vmatprep.subr.bf16.mxu0 0
  %1169 = vmatpush1.bf16.xpose.msra.mxu0 %v1160
  %1170 = vmatprep.subr.bf16.mxu0 0
  %1171 = vmatpush1.bf16.xpose.msra.mxu0 0
  %1172 = vmatprep.subr.bf16.mxu0 0
  %1173 = vmatpush1.bf16.xpose.msra.mxu0 0
  %1174 = vmatprep.subr.bf16.mxu0 0
  %1175 = vmatpush1.bf16.xpose.msra.mxu0 0
  %1176 = vmatprep.subr.bf16.mxu0 0
  %1177 = vmatpush1.bf16.xpose.msra.mxu0 0
  %1178 = vmatprep.subr.bf16.mxu0 0
  %1179 = vmatpush1.bf16.xpose.msra.mxu0 0
  %1180 = vmatprep.subr.bf16.mxu0 0
  %1181 = vmatpush1.bf16.xpose.msra.mxu0 0
  %1182 = vmatprep.subr.bf16.mxu0 0
  %1183 = vmatpush1.bf16.xpose.msra.mxu0 0
  %1184 = vmatprep.subr.bf16.mxu0 0
  %1185 = vmatpush1.bf16.xpose.msra.mxu0 0
  %1186 = vmatprep.subr.bf16.mxu0 0
  %1187 = vmatpush1.bf16.xpose.msra.mxu0 0
  %1188 = vmatprep.subr.bf16.mxu0 0
  %1189 = vmatpush1.bf16.xpose.msra.mxu0 0
  %1190 = vmatprep.subr.bf16.mxu0 0
  %1191 = vmatpush1.bf16.xpose.msra.mxu0 0
  %1192 = vmatprep.subr.bf16.mxu0 0
  %1193 = vmatpush1.bf16.xpose.msra.mxu0 0
  %1194 = vmatprep.mubr.bf16.mxu0 0
  %1195 = vmatmul.mubr.bf16.gmra.mrb[0].mxu0 %v1148
  %v1196 = vpop.f32.mrb[0].mxu0
  %v1197 = vadd.f32 0.0, %v1196
  %v1198 = vpop.f32.mrb[0].mxu0
  %v1199 = vpop.f32.mrb[0].mxu0
  %v1200 = vadd.f32 0.0, %v1199
  %v1201 = vpop.f32.mrb[0].mxu0
  %1202 = vdwg.mxu0
  %v1204 = vsel %vm698, %v307, 0
  %v1207 = vsel %vm698, %v478, 0
  %v1210 = vsel %vm698, %v479, 0
  %v1213 = vsel %vm698, %v480, 0
  %v1216 = vsel %vm698, %v481, 0
  %1218 = vmatprep.subr.bf16.mxu0 0
  %1219 = vmatpush1.bf16.xpose.msra.mxu0 %v1207
  %1220 = vmatprep.subr.bf16.mxu0 0
  %1221 = vmatpush1.bf16.xpose.msra.mxu0 %v1210
  %1222 = vmatprep.subr.bf16.mxu0 0
  %1223 = vmatpush1.bf16.xpose.msra.mxu0 %v1213
  %1224 = vmatprep.subr.bf16.mxu0 0
  %1225 = vmatpush1.bf16.xpose.msra.mxu0 %v1216
  %1226 = vmatprep.subr.bf16.mxu0 0
  %1227 = vmatpush1.bf16.xpose.msra.mxu0 0
  %1228 = vmatprep.subr.bf16.mxu0 0
  %1229 = vmatpush1.bf16.xpose.msra.mxu0 0
  %1230 = vmatprep.subr.bf16.mxu0 0
  %1231 = vmatpush1.bf16.xpose.msra.mxu0 0
  %1232 = vmatprep.subr.bf16.mxu0 0
  %1233 = vmatpush1.bf16.xpose.msra.mxu0 0
  %1234 = vmatprep.subr.bf16.mxu0 0
  %1235 = vmatpush1.bf16.xpose.msra.mxu0 0
  %1236 = vmatprep.subr.bf16.mxu0 0
  %1237 = vmatpush1.bf16.xpose.msra.mxu0 0
  %1238 = vmatprep.subr.bf16.mxu0 0
  %1239 = vmatpush1.bf16.xpose.msra.mxu0 0
  %1240 = vmatprep.subr.bf16.mxu0 0
  %1241 = vmatpush1.bf16.xpose.msra.mxu0 0
  %1242 = vmatprep.subr.bf16.mxu0 0
  %1243 = vmatpush1.bf16.xpose.msra.mxu0 0
  %1244 = vmatprep.subr.bf16.mxu0 0
  %1245 = vmatpush1.bf16.xpose.msra.mxu0 0
  %1246 = vmatprep.subr.bf16.mxu0 0
  %1247 = vmatpush1.bf16.xpose.msra.mxu0 0
  %1248 = vmatprep.subr.bf16.mxu0 0
  %1249 = vmatpush1.bf16.xpose.msra.mxu0 0
  %1250 = vmatprep.mubr.bf16.mxu0 0
  %1251 = vmatmul.mubr.bf16.gmra.mrb[0].mxu0 %v1204
  %v1252 = vpop.f32.mrb[0].mxu0
  %v1253 = vadd.f32 0.0, %v1252
  %v1254 = vpop.f32.mrb[0].mxu0
  %v1255 = vpop.f32.mrb[0].mxu0
  %v1256 = vadd.f32 0.0, %v1255
  %v1257 = vpop.f32.mrb[0].mxu0
  %1258 = vdwg.mxu0
  %v1260 = vsel %vm698, %v308, 0
  %v1263 = vsel %vm698, %v482, 0
  %v1266 = vsel %vm698, %v483, 0
  %v1269 = vsel %vm698, %v484, 0
  %v1272 = vsel %vm698, %v485, 0
  %1274 = vmatprep.subr.bf16.mxu0 0
  %1275 = vmatpush1.bf16.xpose.msra.mxu0 %v1263
  %1276 = vmatprep.subr.bf16.mxu0 0
  %1277 = vmatpush1.bf16.xpose.msra.mxu0 %v1266
  %1278 = vmatprep.subr.bf16.mxu0 0
  %1279 = vmatpush1.bf16.xpose.msra.mxu0 %v1269
  %1280 = vmatprep.subr.bf16.mxu0 0
  %1281 = vmatpush1.bf16.xpose.msra.mxu0 %v1272
  %1282 = vmatprep.subr.bf16.mxu0 0
  %1283 = vmatpush1.bf16.xpose.msra.mxu0 0
  %1284 = vmatprep.subr.bf16.mxu0 0
  %1285 = vmatpush1.bf16.xpose.msra.mxu0 0
  %1286 = vmatprep.subr.bf16.mxu0 0
  %1287 = vmatpush1.bf16.xpose.msra.mxu0 0
  %1288 = vmatprep.subr.bf16.mxu0 0
  %1289 = vmatpush1.bf16.xpose.msra.mxu0 0
  %1290 = vmatprep.subr.bf16.mxu0 0
  %1291 = vmatpush1.bf16.xpose.msra.mxu0 0
  %1292 = vmatprep.subr.bf16.mxu0 0
  %1293 = vmatpush1.bf16.xpose.msra.mxu0 0
  %1294 = vmatprep.subr.bf16.mxu0 0
  %1295 = vmatpush1.bf16.xpose.msra.mxu0 0
  %1296 = vmatprep.subr.bf16.mxu0 0
  %1297 = vmatpush1.bf16.xpose.msra.mxu0 0
  %1298 = vmatprep.subr.bf16.mxu0 0
  %1299 = vmatpush1.bf16.xpose.msra.mxu0 0
  %1300 = vmatprep.subr.bf16.mxu0 0
  %1301 = vmatpush1.bf16.xpose.msra.mxu0 0
  %1302 = vmatprep.subr.bf16.mxu0 0
  %1303 = vmatpush1.bf16.xpose.msra.mxu0 0
  %1304 = vmatprep.subr.bf16.mxu0 0
  %1305 = vmatpush1.bf16.xpose.msra.mxu0 0
  %1306 = vmatprep.mubr.bf16.mxu0 0
  %1307 = vmatmul.mubr.bf16.gmra.mrb[0].mxu0 %v1260
  %v1308 = vpop.f32.mrb[0].mxu0
  %v1309 = vadd.f32 0.0, %v1308
  %v1310 = vpop.f32.mrb[0].mxu0
  %v1311 = vpop.f32.mrb[0].mxu0
  %v1312 = vadd.f32 0.0, %v1311
  %v1313 = vpop.f32.mrb[0].mxu0
  %1314 = vdwg.mxu0
  %v1316 = vsel %vm698, %v309, 0
  %v1319 = vsel %vm698, %v486, 0
  %v1322 = vsel %vm698, %v487, 0
  %v1325 = vsel %vm698, %v488, 0
  %v1328 = vsel %vm698, %v489, 0
  %1330 = vmatprep.subr.bf16.mxu0 0
  %1331 = vmatpush1.bf16.xpose.msra.mxu0 %v1319
  %1332 = vmatprep.subr.bf16.mxu0 0
  %1333 = vmatpush1.bf16.xpose.msra.mxu0 %v1322
  %1334 = vmatprep.subr.bf16.mxu0 0
  %1335 = vmatpush1.bf16.xpose.msra.mxu0 %v1325
  %1336 = vmatprep.subr.bf16.mxu0 0
  %1337 = vmatpush1.bf16.xpose.msra.mxu0 %v1328
  %1338 = vmatprep.subr.bf16.mxu0 0
  %1339 = vmatpush1.bf16.xpose.msra.mxu0 0
  %1340 = vmatprep.subr.bf16.mxu0 0
  %1341 = vmatpush1.bf16.xpose.msra.mxu0 0
  %1342 = vmatprep.subr.bf16.mxu0 0
  %1343 = vmatpush1.bf16.xpose.msra.mxu0 0
  %1344 = vmatprep.subr.bf16.mxu0 0
  %1345 = vmatpush1.bf16.xpose.msra.mxu0 0
  %1346 = vmatprep.subr.bf16.mxu0 0
  %1347 = vmatpush1.bf16.xpose.msra.mxu0 0
  %1348 = vmatprep.subr.bf16.mxu0 0
  %1349 = vmatpush1.bf16.xpose.msra.mxu0 0
  %1350 = vmatprep.subr.bf16.mxu0 0
  %1351 = vmatpush1.bf16.xpose.msra.mxu0 0
  %1352 = vmatprep.subr.bf16.mxu0 0
  %1353 = vmatpush1.bf16.xpose.msra.mxu0 0
  %1354 = vmatprep.subr.bf16.mxu0 0
  %1355 = vmatpush1.bf16.xpose.msra.mxu0 0
  %1356 = vmatprep.subr.bf16.mxu0 0
  %1357 = vmatpush1.bf16.xpose.msra.mxu0 0
  %1358 = vmatprep.subr.bf16.mxu0 0
  %1359 = vmatpush1.bf16.xpose.msra.mxu0 0
  %1360 = vmatprep.subr.bf16.mxu0 0
  %1361 = vmatpush1.bf16.xpose.msra.mxu0 0
  %1362 = vmatprep.mubr.bf16.mxu0 0
  %1363 = vmatmul.mubr.bf16.gmra.mrb[0].mxu0 %v1316
  %v1364 = vpop.f32.mrb[0].mxu0
  %v1365 = vadd.f32 0.0, %v1364
  %v1366 = vpop.f32.mrb[0].mxu0
  %v1367 = vpop.f32.mrb[0].mxu0
  %v1368 = vadd.f32 0.0, %v1367
  %v1369 = vpop.f32.mrb[0].mxu0
  %1370 = vdwg.mxu0
  %v1372 = vsel %vm698, %v310, 0
  %v1375 = vsel %vm698, %v490, 0
  %v1378 = vsel %vm698, %v491, 0
  %v1381 = vsel %vm698, %v492, 0
  %v1384 = vsel %vm698, %v493, 0
  %1386 = vmatprep.subr.bf16.mxu0 0
  %1387 = vmatpush1.bf16.xpose.msra.mxu0 %v1375
  %1388 = vmatprep.subr.bf16.mxu0 0
  %1389 = vmatpush1.bf16.xpose.msra.mxu0 %v1378
  %1390 = vmatprep.subr.bf16.mxu0 0
  %1391 = vmatpush1.bf16.xpose.msra.mxu0 %v1381
  %1392 = vmatprep.subr.bf16.mxu0 0
  %1393 = vmatpush1.bf16.xpose.msra.mxu0 %v1384
  %1394 = vmatprep.subr.bf16.mxu0 0
  %1395 = vmatpush1.bf16.xpose.msra.mxu0 0
  %1396 = vmatprep.subr.bf16.mxu0 0
  %1397 = vmatpush1.bf16.xpose.msra.mxu0 0
  %1398 = vmatprep.subr.bf16.mxu0 0
  %1399 = vmatpush1.bf16.xpose.msra.mxu0 0
  %1400 = vmatprep.subr.bf16.mxu0 0
  %1401 = vmatpush1.bf16.xpose.msra.mxu0 0
  %1402 = vmatprep.subr.bf16.mxu0 0
  %1403 = vmatpush1.bf16.xpose.msra.mxu0 0
  %1404 = vmatprep.subr.bf16.mxu0 0
  %1405 = vmatpush1.bf16.xpose.msra.mxu0 0
  %1406 = vmatprep.subr.bf16.mxu0 0
  %1407 = vmatpush1.bf16.xpose.msra.mxu0 0
  %1408 = vmatprep.subr.bf16.mxu0 0
  %1409 = vmatpush1.bf16.xpose.msra.mxu0 0
  %1410 = vmatprep.subr.bf16.mxu0 0
  %1411 = vmatpush1.bf16.xpose.msra.mxu0 0
  %1412 = vmatprep.subr.bf16.mxu0 0
  %1413 = vmatpush1.bf16.xpose.msra.mxu0 0
  %1414 = vmatprep.subr.bf16.mxu0 0
  %1415 = vmatpush1.bf16.xpose.msra.mxu0 0
  %1416 = vmatprep.subr.bf16.mxu0 0
  %1417 = vmatpush1.bf16.xpose.msra.mxu0 0
  %1418 = vmatprep.mubr.bf16.mxu0 0
  %1419 = vmatmul.mubr.bf16.gmra.mrb[0].mxu0 %v1372
  %v1420 = vpop.f32.mrb[0].mxu0
  %v1421 = vadd.f32 0.0, %v1420
  %v1422 = vpop.f32.mrb[0].mxu0
  %v1423 = vpop.f32.mrb[0].mxu0
  %v1424 = vadd.f32 0.0, %v1423
  %v1425 = vpop.f32.mrb[0].mxu0
  %1426 = vdwg.mxu0
  %v1428 = vsel %vm698, %v311, 0
  %v1431 = vsel %vm698, %v494, 0
  %v1434 = vsel %vm698, %v495, 0
  %v1437 = vsel %vm698, %v496, 0
  %v1440 = vsel %vm698, %v497, 0
  %1442 = vmatprep.subr.bf16.mxu0 0
  %1443 = vmatpush1.bf16.xpose.msra.mxu0 %v1431
  %1444 = vmatprep.subr.bf16.mxu0 0
  %1445 = vmatpush1.bf16.xpose.msra.mxu0 %v1434
  %1446 = vmatprep.subr.bf16.mxu0 0
  %1447 = vmatpush1.bf16.xpose.msra.mxu0 %v1437
  %1448 = vmatprep.subr.bf16.mxu0 0
  %1449 = vmatpush1.bf16.xpose.msra.mxu0 %v1440
  %1450 = vmatprep.subr.bf16.mxu0 0
  %1451 = vmatpush1.bf16.xpose.msra.mxu0 0
  %1452 = vmatprep.subr.bf16.mxu0 0
  %1453 = vmatpush1.bf16.xpose.msra.mxu0 0
  %1454 = vmatprep.subr.bf16.mxu0 0
  %1455 = vmatpush1.bf16.xpose.msra.mxu0 0
  %1456 = vmatprep.subr.bf16.mxu0 0
  %1457 = vmatpush1.bf16.xpose.msra.mxu0 0
  %1458 = vmatprep.subr.bf16.mxu0 0
  %1459 = vmatpush1.bf16.xpose.msra.mxu0 0
  %1460 = vmatprep.subr.bf16.mxu0 0
  %1461 = vmatpush1.bf16.xpose.msra.mxu0 0
  %1462 = vmatprep.subr.bf16.mxu0 0
  %1463 = vmatpush1.bf16.xpose.msra.mxu0 0
  %1464 = vmatprep.subr.bf16.mxu0 0
  %1465 = vmatpush1.bf16.xpose.msra.mxu0 0
  %1466 = vmatprep.subr.bf16.mxu0 0
  %1467 = vmatpush1.bf16.xpose.msra.mxu0 0
  %1468 = vmatprep.subr.bf16.mxu0 0
  %1469 = vmatpush1.bf16.xpose.msra.mxu0 0
  %1470 = vmatprep.subr.bf16.mxu0 0
  %1471 = vmatpush1.bf16.xpose.msra.mxu0 0
  %1472 = vmatprep.subr.bf16.mxu0 0
  %1473 = vmatpush1.bf16.xpose.msra.mxu0 0
  %1474 = vmatprep.mubr.bf16.mxu0 0
  %1475 = vmatmul.mubr.bf16.gmra.mrb[0].mxu0 %v1428
  %v1476 = vpop.f32.mrb[0].mxu0
  %v1477 = vadd.f32 0.0, %v1476
  %v1478 = vpop.f32.mrb[0].mxu0
  %v1479 = vpop.f32.mrb[0].mxu0
  %v1480 = vadd.f32 0.0, %v1479
  %v1481 = vpop.f32.mrb[0].mxu0
  %1482 = vdwg.mxu0
  %v1484 = vsel %vm698, %v312, 0
  %v1487 = vsel %vm698, %v498, 0
  %v1490 = vsel %vm698, %v499, 0
  %v1493 = vsel %vm698, %v500, 0
  %v1496 = vsel %vm698, %v501, 0
  %1498 = vmatprep.subr.bf16.mxu0 0
  %1499 = vmatpush1.bf16.xpose.msra.mxu0 %v1487
  %1500 = vmatprep.subr.bf16.mxu0 0
  %1501 = vmatpush1.bf16.xpose.msra.mxu0 %v1490
  %1502 = vmatprep.subr.bf16.mxu0 0
  %1503 = vmatpush1.bf16.xpose.msra.mxu0 %v1493
  %1504 = vmatprep.subr.bf16.mxu0 0
  %1505 = vmatpush1.bf16.xpose.msra.mxu0 %v1496
  %1506 = vmatprep.subr.bf16.mxu0 0
  %1507 = vmatpush1.bf16.xpose.msra.mxu0 0
  %1508 = vmatprep.subr.bf16.mxu0 0
  %1509 = vmatpush1.bf16.xpose.msra.mxu0 0
  %1510 = vmatprep.subr.bf16.mxu0 0
  %1511 = vmatpush1.bf16.xpose.msra.mxu0 0
  %1512 = vmatprep.subr.bf16.mxu0 0
  %1513 = vmatpush1.bf16.xpose.msra.mxu0 0
  %1514 = vmatprep.subr.bf16.mxu0 0
  %1515 = vmatpush1.bf16.xpose.msra.mxu0 0
  %1516 = vmatprep.subr.bf16.mxu0 0
  %1517 = vmatpush1.bf16.xpose.msra.mxu0 0
  %1518 = vmatprep.subr.bf16.mxu0 0
  %1519 = vmatpush1.bf16.xpose.msra.mxu0 0
  %1520 = vmatprep.subr.bf16.mxu0 0
  %1521 = vmatpush1.bf16.xpose.msra.mxu0 0
  %1522 = vmatprep.subr.bf16.mxu0 0
  %1523 = vmatpush1.bf16.xpose.msra.mxu0 0
  %1524 = vmatprep.subr.bf16.mxu0 0
  %1525 = vmatpush1.bf16.xpose.msra.mxu0 0
  %1526 = vmatprep.subr.bf16.mxu0 0
  %1527 = vmatpush1.bf16.xpose.msra.mxu0 0
  %1528 = vmatprep.subr.bf16.mxu0 0
  %1529 = vmatpush1.bf16.xpose.msra.mxu0 0
  %1530 = vmatprep.mubr.bf16.mxu0 0
  %1531 = vmatmul.mubr.bf16.gmra.mrb[0].mxu0 %v1484
  %v1532 = vpop.f32.mrb[0].mxu0
  %v1533 = vadd.f32 0.0, %v1532
  %v1534 = vpop.f32.mrb[0].mxu0
  %v1535 = vpop.f32.mrb[0].mxu0
  %v1536 = vadd.f32 0.0, %v1535
  %v1537 = vpop.f32.mrb[0].mxu0
  %1538 = vdwg.mxu0
  %v1540 = vsel %vm698, %v313, 0
  %v1543 = vsel %vm698, %v502, 0
  %v1546 = vsel %vm698, %v503, 0
  %v1549 = vsel %vm698, %v504, 0
  %v1552 = vsel %vm698, %v505, 0
  %1554 = vmatprep.subr.bf16.mxu0 0
  %1555 = vmatpush1.bf16.xpose.msra.mxu0 %v1543
  %1556 = vmatprep.subr.bf16.mxu0 0
  %1557 = vmatpush1.bf16.xpose.msra.mxu0 %v1546
  %1558 = vmatprep.subr.bf16.mxu0 0
  %1559 = vmatpush1.bf16.xpose.msra.mxu0 %v1549
  %1560 = vmatprep.subr.bf16.mxu0 0
  %1561 = vmatpush1.bf16.xpose.msra.mxu0 %v1552
  %1562 = vmatprep.subr.bf16.mxu0 0
  %1563 = vmatpush1.bf16.xpose.msra.mxu0 0
  %1564 = vmatprep.subr.bf16.mxu0 0
  %1565 = vmatpush1.bf16.xpose.msra.mxu0 0
  %1566 = vmatprep.subr.bf16.mxu0 0
  %1567 = vmatpush1.bf16.xpose.msra.mxu0 0
  %1568 = vmatprep.subr.bf16.mxu0 0
  %1569 = vmatpush1.bf16.xpose.msra.mxu0 0
  %1570 = vmatprep.subr.bf16.mxu0 0
  %1571 = vmatpush1.bf16.xpose.msra.mxu0 0
  %1572 = vmatprep.subr.bf16.mxu0 0
  %1573 = vmatpush1.bf16.xpose.msra.mxu0 0
  %1574 = vmatprep.subr.bf16.mxu0 0
  %1575 = vmatpush1.bf16.xpose.msra.mxu0 0
  %1576 = vmatprep.subr.bf16.mxu0 0
  %1577 = vmatpush1.bf16.xpose.msra.mxu0 0
  %1578 = vmatprep.subr.bf16.mxu0 0
  %1579 = vmatpush1.bf16.xpose.msra.mxu0 0
  %1580 = vmatprep.subr.bf16.mxu0 0
  %1581 = vmatpush1.bf16.xpose.msra.mxu0 0
  %1582 = vmatprep.subr.bf16.mxu0 0
  %1583 = vmatpush1.bf16.xpose.msra.mxu0 0
  %1584 = vmatprep.subr.bf16.mxu0 0
  %1585 = vmatpush1.bf16.xpose.msra.mxu0 0
  %1586 = vmatprep.mubr.bf16.mxu0 0
  %1587 = vmatmul.mubr.bf16.gmra.mrb[0].mxu0 %v1540
  %v1588 = vpop.f32.mrb[0].mxu0
  %v1589 = vadd.f32 0.0, %v1588
  %v1590 = vpop.f32.mrb[0].mxu0
  %v1591 = vpop.f32.mrb[0].mxu0
  %v1592 = vadd.f32 0.0, %v1591
  %v1593 = vpop.f32.mrb[0].mxu0
  %1594 = vdwg.mxu0
  %vm1595 = vcmask 523264
  %v1596 = vsel %vm1595, %v749, -inf
  %1597 = vmax.xlane.f32.xlu0 %v1596
  %v1598 = vpop.xlane.xlu0 %1597
  %v1599 = vsel %vm1595, %v752, -inf
  %1600 = vmax.xlane.f32.xlu0 %v1599
  %v1601 = vpop.xlane.xlu0 %1600
  %v1602 = vsel %vm1595, %v805, -inf
  %1603 = vmax.xlane.f32.xlu0 %v1602
  %v1604 = vpop.xlane.xlu0 %1603
  %v1605 = vsel %vm1595, %v808, -inf
  %1606 = vmax.xlane.f32.xlu0 %v1605
  %v1607 = vpop.xlane.xlu0 %1606
  %v1608 = vsel %vm1595, %v861, -inf
  %1609 = vmax.xlane.f32.xlu0 %v1608
  %v1610 = vpop.xlane.xlu0 %1609
  %v1611 = vsel %vm1595, %v864, -inf
  %1612 = vmax.xlane.f32.xlu0 %v1611
  %v1613 = vpop.xlane.xlu0 %1612
  %v1614 = vsel %vm1595, %v917, -inf
  %1615 = vmax.xlane.f32.xlu0 %v1614
  %v1616 = vpop.xlane.xlu0 %1615
  %v1617 = vsel %vm1595, %v920, -inf
  %1618 = vmax.xlane.f32.xlu0 %v1617
  %v1619 = vpop.xlane.xlu0 %1618
  %v1620 = vsel %vm1595, %v973, -inf
  %1621 = vmax.xlane.f32.xlu0 %v1620
  %v1622 = vpop.xlane.xlu0 %1621
  %v1623 = vsel %vm1595, %v976, -inf
  %1624 = vmax.xlane.f32.xlu0 %v1623
  %v1625 = vpop.xlane.xlu0 %1624
  %v1626 = vsel %vm1595, %v1029, -inf
  %1627 = vmax.xlane.f32.xlu0 %v1626
  %v1628 = vpop.xlane.xlu0 %1627
  %v1629 = vsel %vm1595, %v1032, -inf
  %1630 = vmax.xlane.f32.xlu0 %v1629
  %v1631 = vpop.xlane.xlu0 %1630
  %v1632 = vsel %vm1595, %v1085, -inf
  %1633 = vmax.xlane.f32.xlu0 %v1632
  %v1634 = vpop.xlane.xlu0 %1633
  %v1635 = vsel %vm1595, %v1088, -inf
  %1636 = vmax.xlane.f32.xlu0 %v1635
  %v1637 = vpop.xlane.xlu0 %1636
  %v1638 = vsel %vm1595, %v1141, -inf
  %1639 = vmax.xlane.f32.xlu0 %v1638
  %v1640 = vpop.xlane.xlu0 %1639
  %v1641 = vsel %vm1595, %v1144, -inf
  %1642 = vmax.xlane.f32.xlu0 %v1641
  %v1643 = vpop.xlane.xlu0 %1642
  %v1644 = vsel %vm1595, %v1197, -inf
  %1645 = vmax.xlane.f32.xlu0 %v1644
  %v1646 = vpop.xlane.xlu0 %1645
  %v1647 = vsel %vm1595, %v1200, -inf
  %1648 = vmax.xlane.f32.xlu0 %v1647
  %v1649 = vpop.xlane.xlu0 %1648
  %v1650 = vsel %vm1595, %v1253, -inf
  %1651 = vmax.xlane.f32.xlu0 %v1650
  %v1652 = vpop.xlane.xlu0 %1651
  %v1653 = vsel %vm1595, %v1256, -inf
  %1654 = vmax.xlane.f32.xlu0 %v1653
  %v1655 = vpop.xlane.xlu0 %1654
  %v1656 = vsel %vm1595, %v1309, -inf
  %1657 = vmax.xlane.f32.xlu0 %v1656
  %v1658 = vpop.xlane.xlu0 %1657
  %v1659 = vsel %vm1595, %v1312, -inf
  %1660 = vmax.xlane.f32.xlu0 %v1659
  %v1661 = vpop.xlane.xlu0 %1660
  %v1662 = vsel %vm1595, %v1365, -inf
  %1663 = vmax.xlane.f32.xlu0 %v1662
  %v1664 = vpop.xlane.xlu0 %1663
  %v1665 = vsel %vm1595, %v1368, -inf
  %1666 = vmax.xlane.f32.xlu0 %v1665
  %v1667 = vpop.xlane.xlu0 %1666
  %v1668 = vsel %vm1595, %v1421, -inf
  %1669 = vmax.xlane.f32.xlu0 %v1668
  %v1670 = vpop.xlane.xlu0 %1669
  %v1671 = vsel %vm1595, %v1424, -inf
  %1672 = vmax.xlane.f32.xlu0 %v1671
  %v1673 = vpop.xlane.xlu0 %1672
  %v1674 = vsel %vm1595, %v1477, -inf
  %1675 = vmax.xlane.f32.xlu0 %v1674
  %v1676 = vpop.xlane.xlu0 %1675
  %v1677 = vsel %vm1595, %v1480, -inf
  %1678 = vmax.xlane.f32.xlu0 %v1677
  %v1679 = vpop.xlane.xlu0 %1678
  %v1680 = vsel %vm1595, %v1533, -inf
  %1681 = vmax.xlane.f32.xlu0 %v1680
  %v1682 = vpop.xlane.xlu0 %1681
  %v1683 = vsel %vm1595, %v1536, -inf
  %1684 = vmax.xlane.f32.xlu0 %v1683
  %v1685 = vpop.xlane.xlu0 %1684
  %v1686 = vsel %vm1595, %v1589, -inf
  %1687 = vmax.xlane.f32.xlu0 %v1686
  %v1688 = vpop.xlane.xlu0 %1687
  %v1689 = vsel %vm1595, %v1592, -inf
  %1690 = vmax.xlane.f32.xlu0 %v1689
  %v1691 = vpop.xlane.xlu0 %1690
  %v1692 = vsub.f32 %v749, %v1598
  %v1693 = vsub.f32 %v752, %v1601
  %v1694 = vsub.f32 %v805, %v1604
  %v1695 = vsub.f32 %v808, %v1607
  %v1696 = vsub.f32 %v861, %v1610
  %v1697 = vsub.f32 %v864, %v1613
  %v1698 = vsub.f32 %v917, %v1616
  %v1699 = vsub.f32 %v920, %v1619
  %v1700 = vsub.f32 %v973, %v1622
  %v1701 = vsub.f32 %v976, %v1625
  %v1702 = vsub.f32 %v1029, %v1628
  %v1703 = vsub.f32 %v1032, %v1631
  %v1704 = vsub.f32 %v1085, %v1634
  %v1705 = vsub.f32 %v1088, %v1637
  %v1706 = vsub.f32 %v1141, %v1640
  %v1707 = vsub.f32 %v1144, %v1643
  %v1708 = vsub.f32 %v1197, %v1646
  %v1709 = vsub.f32 %v1200, %v1649
  %v1710 = vsub.f32 %v1253, %v1652
  %v1711 = vsub.f32 %v1256, %v1655
  %v1712 = vsub.f32 %v1309, %v1658
  %v1713 = vsub.f32 %v1312, %v1661
  %v1714 = vsub.f32 %v1365, %v1664
  %v1715 = vsub.f32 %v1368, %v1667
  %v1716 = vsub.f32 %v1421, %v1670
  %v1717 = vsub.f32 %v1424, %v1673
  %v1718 = vsub.f32 %v1477, %v1676
  %v1719 = vsub.f32 %v1480, %v1679
  %v1720 = vsub.f32 %v1533, %v1682
  %v1721 = vsub.f32 %v1536, %v1685
  %v1722 = vsub.f32 %v1589, %v1688
  %v1723 = vsub.f32 %v1592, %v1691
  %v1724 = vmul.f32 %v1692, 1.442695
  %v1725 = vpow.pop %v1724
  %v1726 = vmul.f32 %v1693, 1.442695
  %v1727 = vpow.pop %v1726
  %v1728 = vmul.f32 %v1694, 1.442695
  %v1729 = vpow.pop %v1728
  %v1730 = vmul.f32 %v1695, 1.442695
  %v1731 = vpow.pop %v1730
  %v1732 = vmul.f32 %v1696, 1.442695
  %v1733 = vpow.pop %v1732
  %v1734 = vmul.f32 %v1697, 1.442695
  %v1735 = vpow.pop %v1734
  %v1736 = vmul.f32 %v1698, 1.442695
  %v1737 = vpow.pop %v1736
  %v1738 = vmul.f32 %v1699, 1.442695
  %v1739 = vpow.pop %v1738
  %v1740 = vmul.f32 %v1700, 1.442695
  %v1741 = vpow.pop %v1740
  %v1742 = vmul.f32 %v1701, 1.442695
  %v1743 = vpow.pop %v1742
  %v1744 = vmul.f32 %v1702, 1.442695
  %v1745 = vpow.pop %v1744
  %v1746 = vmul.f32 %v1703, 1.442695
  %v1747 = vpow.pop %v1746
  %v1748 = vmul.f32 %v1704, 1.442695
  %v1749 = vpow.pop %v1748
  %v1750 = vmul.f32 %v1705, 1.442695
  %v1751 = vpow.pop %v1750
  %v1752 = vmul.f32 %v1706, 1.442695
  %v1753 = vpow.pop %v1752
  %v1754 = vmul.f32 %v1707, 1.442695
  %v1755 = vpow.pop %v1754
  %v1756 = vmul.f32 %v1708, 1.442695
  %v1757 = vpow.pop %v1756
  %v1758 = vmul.f32 %v1709, 1.442695
  %v1759 = vpow.pop %v1758
  %v1760 = vmul.f32 %v1710, 1.442695
  %v1761 = vpow.pop %v1760
  %v1762 = vmul.f32 %v1711, 1.442695
  %v1763 = vpow.pop %v1762
  %v1764 = vmul.f32 %v1712, 1.442695
  %v1765 = vpow.pop %v1764
  %v1766 = vmul.f32 %v1713, 1.442695
  %v1767 = vpow.pop %v1766
  %v1768 = vmul.f32 %v1714, 1.442695
  %v1769 = vpow.pop %v1768
  %v1770 = vmul.f32 %v1715, 1.442695
  %v1771 = vpow.pop %v1770
  %v1772 = vmul.f32 %v1716, 1.442695
  %v1773 = vpow.pop %v1772
  %v1774 = vmul.f32 %v1717, 1.442695
  %v1775 = vpow.pop %v1774
  %v1776 = vmul.f32 %v1718, 1.442695
  %v1777 = vpow.pop %v1776
  %v1778 = vmul.f32 %v1719, 1.442695
  %v1779 = vpow.pop %v1778
  %v1780 = vmul.f32 %v1720, 1.442695
  %v1781 = vpow.pop %v1780
  %v1782 = vmul.f32 %v1721, 1.442695
  %v1783 = vpow.pop %v1782
  %v1784 = vmul.f32 %v1722, 1.442695
  %v1785 = vpow.pop %v1784
  %v1786 = vmul.f32 %v1723, 1.442695
  %v1787 = vpow.pop %v1786
  %v1788 = vsel %vm1595, %v1725, 0.0
  %1789 = vadd.xlane.f32.xlu0 %v1788
  %v1790 = vpop.xlane.xlu0 %1789
  %v1791 = vsel %vm1595, %v1727, 0.0
  %1792 = vadd.xlane.f32.xlu0 %v1791
  %v1793 = vpop.xlane.xlu0 %1792
  %v1794 = vsel %vm1595, %v1729, 0.0
  %1795 = vadd.xlane.f32.xlu0 %v1794
  %v1796 = vpop.xlane.xlu0 %1795
  %v1797 = vsel %vm1595, %v1731, 0.0
  %1798 = vadd.xlane.f32.xlu0 %v1797
  %v1799 = vpop.xlane.xlu0 %1798
  %v1800 = vsel %vm1595, %v1733, 0.0
  %1801 = vadd.xlane.f32.xlu0 %v1800
  %v1802 = vpop.xlane.xlu0 %1801
  %v1803 = vsel %vm1595, %v1735, 0.0
  %1804 = vadd.xlane.f32.xlu0 %v1803
  %v1805 = vpop.xlane.xlu0 %1804
  %v1806 = vsel %vm1595, %v1737, 0.0
  %1807 = vadd.xlane.f32.xlu0 %v1806
  %v1808 = vpop.xlane.xlu0 %1807
  %v1809 = vsel %vm1595, %v1739, 0.0
  %1810 = vadd.xlane.f32.xlu0 %v1809
  %v1811 = vpop.xlane.xlu0 %1810
  %v1812 = vsel %vm1595, %v1741, 0.0
  %1813 = vadd.xlane.f32.xlu0 %v1812
  %v1814 = vpop.xlane.xlu0 %1813
  %v1815 = vsel %vm1595, %v1743, 0.0
  %1816 = vadd.xlane.f32.xlu0 %v1815
  %v1817 = vpop.xlane.xlu0 %1816
  %v1818 = vsel %vm1595, %v1745, 0.0
  %1819 = vadd.xlane.f32.xlu0 %v1818
  %v1820 = vpop.xlane.xlu0 %1819
  %v1821 = vsel %vm1595, %v1747, 0.0
  %1822 = vadd.xlane.f32.xlu0 %v1821
  %v1823 = vpop.xlane.xlu0 %1822
  %v1824 = vsel %vm1595, %v1749, 0.0
  %1825 = vadd.xlane.f32.xlu0 %v1824
  %v1826 = vpop.xlane.xlu0 %1825
  %v1827 = vsel %vm1595, %v1751, 0.0
  %1828 = vadd.xlane.f32.xlu0 %v1827
  %v1829 = vpop.xlane.xlu0 %1828
  %v1830 = vsel %vm1595, %v1753, 0.0
  %1831 = vadd.xlane.f32.xlu0 %v1830
  %v1832 = vpop.xlane.xlu0 %1831
  %v1833 = vsel %vm1595, %v1755, 0.0
  %1834 = vadd.xlane.f32.xlu0 %v1833
  %v1835 = vpop.xlane.xlu0 %1834
  %v1836 = vsel %vm1595, %v1757, 0.0
  %1837 = vadd.xlane.f32.xlu0 %v1836
  %v1838 = vpop.xlane.xlu0 %1837
  %v1839 = vsel %vm1595, %v1759, 0.0
  %1840 = vadd.xlane.f32.xlu0 %v1839
  %v1841 = vpop.xlane.xlu0 %1840
  %v1842 = vsel %vm1595, %v1761, 0.0
  %1843 = vadd.xlane.f32.xlu0 %v1842
  %v1844 = vpop.xlane.xlu0 %1843
  %v1845 = vsel %vm1595, %v1763, 0.0
  %1846 = vadd.xlane.f32.xlu0 %v1845
  %v1847 = vpop.xlane.xlu0 %1846
  %v1848 = vsel %vm1595, %v1765, 0.0
  %1849 = vadd.xlane.f32.xlu0 %v1848
  %v1850 = vpop.xlane.xlu0 %1849
  %v1851 = vsel %vm1595, %v1767, 0.0
  %1852 = vadd.xlane.f32.xlu0 %v1851
  %v1853 = vpop.xlane.xlu0 %1852
  %v1854 = vsel %vm1595, %v1769, 0.0
  %1855 = vadd.xlane.f32.xlu0 %v1854
  %v1856 = vpop.xlane.xlu0 %1855
  %v1857 = vsel %vm1595, %v1771, 0.0
  %1858 = vadd.xlane.f32.xlu0 %v1857
  %v1859 = vpop.xlane.xlu0 %1858
  %v1860 = vsel %vm1595, %v1773, 0.0
  %1861 = vadd.xlane.f32.xlu0 %v1860
  %v1862 = vpop.xlane.xlu0 %1861
  %v1863 = vsel %vm1595, %v1775, 0.0
  %1864 = vadd.xlane.f32.xlu0 %v1863
  %v1865 = vpop.xlane.xlu0 %1864
  %v1866 = vsel %vm1595, %v1777, 0.0
  %1867 = vadd.xlane.f32.xlu0 %v1866
  %v1868 = vpop.xlane.xlu0 %1867
  %v1869 = vsel %vm1595, %v1779, 0.0
  %1870 = vadd.xlane.f32.xlu0 %v1869
  %v1871 = vpop.xlane.xlu0 %1870
  %v1872 = vsel %vm1595, %v1781, 0.0
  %1873 = vadd.xlane.f32.xlu0 %v1872
  %v1874 = vpop.xlane.xlu0 %1873
  %v1875 = vsel %vm1595, %v1783, 0.0
  %1876 = vadd.xlane.f32.xlu0 %v1875
  %v1877 = vpop.xlane.xlu0 %1876
  %v1878 = vsel %vm1595, %v1785, 0.0
  %1879 = vadd.xlane.f32.xlu0 %v1878
  %v1880 = vpop.xlane.xlu0 %1879
  %v1881 = vsel %vm1595, %v1787, 0.0
  %1882 = vadd.xlane.f32.xlu0 %v1881
  %v1883 = vpop.xlane.xlu0 %1882
  %v1884 = vpack.c.bf16 %v1727, %v1725
  %v1885 = vpack.c.bf16 %v1731, %v1729
  %v1886 = vpack.c.bf16 %v1735, %v1733
  %v1887 = vpack.c.bf16 %v1739, %v1737
  %v1888 = vpack.c.bf16 %v1743, %v1741
  %v1889 = vpack.c.bf16 %v1747, %v1745
  %v1890 = vpack.c.bf16 %v1751, %v1749
  %v1891 = vpack.c.bf16 %v1755, %v1753
  %v1892 = vpack.c.bf16 %v1759, %v1757
  %v1893 = vpack.c.bf16 %v1763, %v1761
  %v1894 = vpack.c.bf16 %v1767, %v1765
  %v1895 = vpack.c.bf16 %v1771, %v1769
  %v1896 = vpack.c.bf16 %v1775, %v1773
  %v1897 = vpack.c.bf16 %v1779, %v1777
  %v1898 = vpack.c.bf16 %v1783, %v1781
  %v1899 = vpack.c.bf16 %v1787, %v1785
  %v1901 = vsel %vm1595, %v1884, 0
  %1903 = vmatprep.subr.bf16.mxu0 0
  %1904 = vmatpush1.bf16.msra.mxu0 %v634
  %1905 = vmatprep.subr.bf16.mxu0 0
  %1906 = vmatpush1.bf16.msra.mxu0 %v635
  %1907 = vmatprep.subr.bf16.mxu0 0
  %1908 = vmatpush1.bf16.msra.mxu0 %v636
  %1909 = vmatprep.subr.bf16.mxu0 0
  %1910 = vmatpush1.bf16.msra.mxu0 %v637
  %1911 = vmatprep.subr.bf16.mxu0 0
  %1912 = vmatpush1.bf16.msra.mxu0 0
  %1913 = vmatprep.subr.bf16.mxu0 0
  %1914 = vmatpush1.bf16.msra.mxu0 0
  %1915 = vmatprep.subr.bf16.mxu0 0
  %1916 = vmatpush1.bf16.msra.mxu0 0
  %1917 = vmatprep.subr.bf16.mxu0 0
  %1918 = vmatpush1.bf16.msra.mxu0 0
  %1919 = vmatprep.subr.bf16.mxu0 0
  %1920 = vmatpush1.bf16.msra.mxu0 0
  %1921 = vmatprep.subr.bf16.mxu0 0
  %1922 = vmatpush1.bf16.msra.mxu0 0
  %1923 = vmatprep.subr.bf16.mxu0 0
  %1924 = vmatpush1.bf16.msra.mxu0 0
  %1925 = vmatprep.subr.bf16.mxu0 0
  %1926 = vmatpush1.bf16.msra.mxu0 0
  %1927 = vmatprep.subr.bf16.mxu0 0
  %1928 = vmatpush1.bf16.msra.mxu0 0
  %1929 = vmatprep.subr.bf16.mxu0 0
  %1930 = vmatpush1.bf16.msra.mxu0 0
  %1931 = vmatprep.subr.bf16.mxu0 0
  %1932 = vmatpush1.bf16.msra.mxu0 0
  %1933 = vmatprep.subr.bf16.mxu0 0
  %1934 = vmatpush1.bf16.msra.mxu0 0
  %1935 = vmatprep.mubr.bf16.mxu0 0
  %1936 = vmatmul.mubr.bf16.gmra.mrb[0].mxu0 %v1901
  %v1937 = vpop.f32.mrb[0].mxu0
  %v1938 = vadd.f32 0.0, %v1937
  %v1939 = vpop.f32.mrb[0].mxu0
  %v1940 = vpop.f32.mrb[0].mxu0
  %v1941 = vadd.f32 0.0, %v1940
  %v1942 = vpop.f32.mrb[0].mxu0
  %1943 = vdwg.mxu0
  %v1945 = vsel %vm1595, %v1885, 0
  %1947 = vmatprep.subr.bf16.mxu0 0
  %1948 = vmatpush1.bf16.msra.mxu0 %v638
  %1949 = vmatprep.subr.bf16.mxu0 0
  %1950 = vmatpush1.bf16.msra.mxu0 %v639
  %1951 = vmatprep.subr.bf16.mxu0 0
  %1952 = vmatpush1.bf16.msra.mxu0 %v640
  %1953 = vmatprep.subr.bf16.mxu0 0
  %1954 = vmatpush1.bf16.msra.mxu0 %v641
  %1955 = vmatprep.subr.bf16.mxu0 0
  %1956 = vmatpush1.bf16.msra.mxu0 0
  %1957 = vmatprep.subr.bf16.mxu0 0
  %1958 = vmatpush1.bf16.msra.mxu0 0
  %1959 = vmatprep.subr.bf16.mxu0 0
  %1960 = vmatpush1.bf16.msra.mxu0 0
  %1961 = vmatprep.subr.bf16.mxu0 0
  %1962 = vmatpush1.bf16.msra.mxu0 0
  %1963 = vmatprep.subr.bf16.mxu0 0
  %1964 = vmatpush1.bf16.msra.mxu0 0
  %1965 = vmatprep.subr.bf16.mxu0 0
  %1966 = vmatpush1.bf16.msra.mxu0 0
  %1967 = vmatprep.subr.bf16.mxu0 0
  %1968 = vmatpush1.bf16.msra.mxu0 0
  %1969 = vmatprep.subr.bf16.mxu0 0
  %1970 = vmatpush1.bf16.msra.mxu0 0
  %1971 = vmatprep.subr.bf16.mxu0 0
  %1972 = vmatpush1.bf16.msra.mxu0 0
  %1973 = vmatprep.subr.bf16.mxu0 0
  %1974 = vmatpush1.bf16.msra.mxu0 0
  %1975 = vmatprep.subr.bf16.mxu0 0
  %1976 = vmatpush1.bf16.msra.mxu0 0
  %1977 = vmatprep.subr.bf16.mxu0 0
  %1978 = vmatpush1.bf16.msra.mxu0 0
  %1979 = vmatprep.mubr.bf16.mxu0 0
  %1980 = vmatmul.mubr.bf16.gmra.mrb[0].mxu0 %v1945
  %v1981 = vpop.f32.mrb[0].mxu0
  %v1982 = vadd.f32 0.0, %v1981
  %v1983 = vpop.f32.mrb[0].mxu0
  %v1984 = vpop.f32.mrb[0].mxu0
  %v1985 = vadd.f32 0.0, %v1984
  %v1986 = vpop.f32.mrb[0].mxu0
  %1987 = vdwg.mxu0
  %v1989 = vsel %vm1595, %v1886, 0
  %1991 = vmatprep.subr.bf16.mxu0 0
  %1992 = vmatpush1.bf16.msra.mxu0 %v642
  %1993 = vmatprep.subr.bf16.mxu0 0
  %1994 = vmatpush1.bf16.msra.mxu0 %v643
  %1995 = vmatprep.subr.bf16.mxu0 0
  %1996 = vmatpush1.bf16.msra.mxu0 %v644
  %1997 = vmatprep.subr.bf16.mxu0 0
  %1998 = vmatpush1.bf16.msra.mxu0 %v645
  %1999 = vmatprep.subr.bf16.mxu0 0
  %2000 = vmatpush1.bf16.msra.mxu0 0
  %2001 = vmatprep.subr.bf16.mxu0 0
  %2002 = vmatpush1.bf16.msra.mxu0 0
  %2003 = vmatprep.subr.bf16.mxu0 0
  %2004 = vmatpush1.bf16.msra.mxu0 0
  %2005 = vmatprep.subr.bf16.mxu0 0
  %2006 = vmatpush1.bf16.msra.mxu0 0
  %2007 = vmatprep.subr.bf16.mxu0 0
  %2008 = vmatpush1.bf16.msra.mxu0 0
  %2009 = vmatprep.subr.bf16.mxu0 0
  %2010 = vmatpush1.bf16.msra.mxu0 0
  %2011 = vmatprep.subr.bf16.mxu0 0
  %2012 = vmatpush1.bf16.msra.mxu0 0
  %2013 = vmatprep.subr.bf16.mxu0 0
  %2014 = vmatpush1.bf16.msra.mxu0 0
  %2015 = vmatprep.subr.bf16.mxu0 0
  %2016 = vmatpush1.bf16.msra.mxu0 0
  %2017 = vmatprep.subr.bf16.mxu0 0
  %2018 = vmatpush1.bf16.msra.mxu0 0
  %2019 = vmatprep.subr.bf16.mxu0 0
  %2020 = vmatpush1.bf16.msra.mxu0 0
  %2021 = vmatprep.subr.bf16.mxu0 0
  %2022 = vmatpush1.bf16.msra.mxu0 0
  %2023 = vmatprep.mubr.bf16.mxu0 0
  %2024 = vmatmul.mubr.bf16.gmra.mrb[0].mxu0 %v1989
  %v2025 = vpop.f32.mrb[0].mxu0
  %v2026 = vadd.f32 0.0, %v2025
  %v2027 = vpop.f32.mrb[0].mxu0
  %v2028 = vpop.f32.mrb[0].mxu0
  %v2029 = vadd.f32 0.0, %v2028
  %v2030 = vpop.f32.mrb[0].mxu0
  %2031 = vdwg.mxu0
  %v2033 = vsel %vm1595, %v1887, 0
  %2035 = vmatprep.subr.bf16.mxu0 0
  %2036 = vmatpush1.bf16.msra.mxu0 %v646
  %2037 = vmatprep.subr.bf16.mxu0 0
  %2038 = vmatpush1.bf16.msra.mxu0 %v647
  %2039 = vmatprep.subr.bf16.mxu0 0
  %2040 = vmatpush1.bf16.msra.mxu0 %v648
  %2041 = vmatprep.subr.bf16.mxu0 0
  %2042 = vmatpush1.bf16.msra.mxu0 %v649
  %2043 = vmatprep.subr.bf16.mxu0 0
  %2044 = vmatpush1.bf16.msra.mxu0 0
  %2045 = vmatprep.subr.bf16.mxu0 0
  %2046 = vmatpush1.bf16.msra.mxu0 0
  %2047 = vmatprep.subr.bf16.mxu0 0
  %2048 = vmatpush1.bf16.msra.mxu0 0
  %2049 = vmatprep.subr.bf16.mxu0 0
  %2050 = vmatpush1.bf16.msra.mxu0 0
  %2051 = vmatprep.subr.bf16.mxu0 0
  %2052 = vmatpush1.bf16.msra.mxu0 0
  %2053 = vmatprep.subr.bf16.mxu0 0
  %2054 = vmatpush1.bf16.msra.mxu0 0
  %2055 = vmatprep.subr.bf16.mxu0 0
  %2056 = vmatpush1.bf16.msra.mxu0 0
  %2057 = vmatprep.subr.bf16.mxu0 0
  %2058 = vmatpush1.bf16.msra.mxu0 0
  %2059 = vmatprep.subr.bf16.mxu0 0
  %2060 = vmatpush1.bf16.msra.mxu0 0
  %2061 = vmatprep.subr.bf16.mxu0 0
  %2062 = vmatpush1.bf16.msra.mxu0 0
  %2063 = vmatprep.subr.bf16.mxu0 0
  %2064 = vmatpush1.bf16.msra.mxu0 0
  %2065 = vmatprep.subr.bf16.mxu0 0
  %2066 = vmatpush1.bf16.msra.mxu0 0
  %2067 = vmatprep.mubr.bf16.mxu0 0
  %2068 = vmatmul.mubr.bf16.gmra.mrb[0].mxu0 %v2033
  %v2069 = vpop.f32.mrb[0].mxu0
  %v2070 = vadd.f32 0.0, %v2069
  %v2071 = vpop.f32.mrb[0].mxu0
  %v2072 = vpop.f32.mrb[0].mxu0
  %v2073 = vadd.f32 0.0, %v2072
  %v2074 = vpop.f32.mrb[0].mxu0
  %2075 = vdwg.mxu0
  %v2077 = vsel %vm1595, %v1888, 0
  %2079 = vmatprep.subr.bf16.mxu0 0
  %2080 = vmatpush1.bf16.msra.mxu0 %v650
  %2081 = vmatprep.subr.bf16.mxu0 0
  %2082 = vmatpush1.bf16.msra.mxu0 %v651
  %2083 = vmatprep.subr.bf16.mxu0 0
  %2084 = vmatpush1.bf16.msra.mxu0 %v652
  %2085 = vmatprep.subr.bf16.mxu0 0
  %2086 = vmatpush1.bf16.msra.mxu0 %v653
  %2087 = vmatprep.subr.bf16.mxu0 0
  %2088 = vmatpush1.bf16.msra.mxu0 0
  %2089 = vmatprep.subr.bf16.mxu0 0
  %2090 = vmatpush1.bf16.msra.mxu0 0
  %2091 = vmatprep.subr.bf16.mxu0 0
  %2092 = vmatpush1.bf16.msra.mxu0 0
  %2093 = vmatprep.subr.bf16.mxu0 0
  %2094 = vmatpush1.bf16.msra.mxu0 0
  %2095 = vmatprep.subr.bf16.mxu0 0
  %2096 = vmatpush1.bf16.msra.mxu0 0
  %2097 = vmatprep.subr.bf16.mxu0 0
  %2098 = vmatpush1.bf16.msra.mxu0 0
  %2099 = vmatprep.subr.bf16.mxu0 0
  %2100 = vmatpush1.bf16.msra.mxu0 0
  %2101 = vmatprep.subr.bf16.mxu0 0
  %2102 = vmatpush1.bf16.msra.mxu0 0
  %2103 = vmatprep.subr.bf16.mxu0 0
  %2104 = vmatpush1.bf16.msra.mxu0 0
  %2105 = vmatprep.subr.bf16.mxu0 0
  %2106 = vmatpush1.bf16.msra.mxu0 0
  %2107 = vmatprep.subr.bf16.mxu0 0
  %2108 = vmatpush1.bf16.msra.mxu0 0
  %2109 = vmatprep.subr.bf16.mxu0 0
  %2110 = vmatpush1.bf16.msra.mxu0 0
  %2111 = vmatprep.mubr.bf16.mxu0 0
  %2112 = vmatmul.mubr.bf16.gmra.mrb[0].mxu0 %v2077
  %v2113 = vpop.f32.mrb[0].mxu0
  %v2114 = vadd.f32 0.0, %v2113
  %v2115 = vpop.f32.mrb[0].mxu0
  %v2116 = vpop.f32.mrb[0].mxu0
  %v2117 = vadd.f32 0.0, %v2116
  %v2118 = vpop.f32.mrb[0].mxu0
  %2119 = vdwg.mxu0
  %v2121 = vsel %vm1595, %v1889, 0
  %2123 = vmatprep.subr.bf16.mxu0 0
  %2124 = vmatpush1.bf16.msra.mxu0 %v654
  %2125 = vmatprep.subr.bf16.mxu0 0
  %2126 = vmatpush1.bf16.msra.mxu0 %v655
  %2127 = vmatprep.subr.bf16.mxu0 0
  %2128 = vmatpush1.bf16.msra.mxu0 %v656
  %2129 = vmatprep.subr.bf16.mxu0 0
  %2130 = vmatpush1.bf16.msra.mxu0 %v657
  %2131 = vmatprep.subr.bf16.mxu0 0
  %2132 = vmatpush1.bf16.msra.mxu0 0
  %2133 = vmatprep.subr.bf16.mxu0 0
  %2134 = vmatpush1.bf16.msra.mxu0 0
  %2135 = vmatprep.subr.bf16.mxu0 0
  %2136 = vmatpush1.bf16.msra.mxu0 0
  %2137 = vmatprep.subr.bf16.mxu0 0
  %2138 = vmatpush1.bf16.msra.mxu0 0
  %2139 = vmatprep.subr.bf16.mxu0 0
  %2140 = vmatpush1.bf16.msra.mxu0 0
  %2141 = vmatprep.subr.bf16.mxu0 0
  %2142 = vmatpush1.bf16.msra.mxu0 0
  %2143 = vmatprep.subr.bf16.mxu0 0
  %2144 = vmatpush1.bf16.msra.mxu0 0
  %2145 = vmatprep.subr.bf16.mxu0 0
  %2146 = vmatpush1.bf16.msra.mxu0 0
  %2147 = vmatprep.subr.bf16.mxu0 0
  %2148 = vmatpush1.bf16.msra.mxu0 0
  %2149 = vmatprep.subr.bf16.mxu0 0
  %2150 = vmatpush1.bf16.msra.mxu0 0
  %2151 = vmatprep.subr.bf16.mxu0 0
  %2152 = vmatpush1.bf16.msra.mxu0 0
  %2153 = vmatprep.subr.bf16.mxu0 0
  %2154 = vmatpush1.bf16.msra.mxu0 0
  %2155 = vmatprep.mubr.bf16.mxu0 0
  %2156 = vmatmul.mubr.bf16.gmra.mrb[0].mxu0 %v2121
  %v2157 = vpop.f32.mrb[0].mxu0
  %v2158 = vadd.f32 0.0, %v2157
  %v2159 = vpop.f32.mrb[0].mxu0
  %v2160 = vpop.f32.mrb[0].mxu0
  %v2161 = vadd.f32 0.0, %v2160
  %v2162 = vpop.f32.mrb[0].mxu0
  %2163 = vdwg.mxu0
  %v2165 = vsel %vm1595, %v1890, 0
  %2167 = vmatprep.subr.bf16.mxu0 0
  %2168 = vmatpush1.bf16.msra.mxu0 %v658
  %2169 = vmatprep.subr.bf16.mxu0 0
  %2170 = vmatpush1.bf16.msra.mxu0 %v659
  %2171 = vmatprep.subr.bf16.mxu0 0
  %2172 = vmatpush1.bf16.msra.mxu0 %v660
  %2173 = vmatprep.subr.bf16.mxu0 0
  %2174 = vmatpush1.bf16.msra.mxu0 %v661
  %2175 = vmatprep.subr.bf16.mxu0 0
  %2176 = vmatpush1.bf16.msra.mxu0 0
  %2177 = vmatprep.subr.bf16.mxu0 0
  %2178 = vmatpush1.bf16.msra.mxu0 0
  %2179 = vmatprep.subr.bf16.mxu0 0
  %2180 = vmatpush1.bf16.msra.mxu0 0
  %2181 = vmatprep.subr.bf16.mxu0 0
  %2182 = vmatpush1.bf16.msra.mxu0 0
  %2183 = vmatprep.subr.bf16.mxu0 0
  %2184 = vmatpush1.bf16.msra.mxu0 0
  %2185 = vmatprep.subr.bf16.mxu0 0
  %2186 = vmatpush1.bf16.msra.mxu0 0
  %2187 = vmatprep.subr.bf16.mxu0 0
  %2188 = vmatpush1.bf16.msra.mxu0 0
  %2189 = vmatprep.subr.bf16.mxu0 0
  %2190 = vmatpush1.bf16.msra.mxu0 0
  %2191 = vmatprep.subr.bf16.mxu0 0
  %2192 = vmatpush1.bf16.msra.mxu0 0
  %2193 = vmatprep.subr.bf16.mxu0 0
  %2194 = vmatpush1.bf16.msra.mxu0 0
  %2195 = vmatprep.subr.bf16.mxu0 0
  %2196 = vmatpush1.bf16.msra.mxu0 0
  %2197 = vmatprep.subr.bf16.mxu0 0
  %2198 = vmatpush1.bf16.msra.mxu0 0
  %2199 = vmatprep.mubr.bf16.mxu0 0
  %2200 = vmatmul.mubr.bf16.gmra.mrb[0].mxu0 %v2165
  %v2201 = vpop.f32.mrb[0].mxu0
  %v2202 = vadd.f32 0.0, %v2201
  %v2203 = vpop.f32.mrb[0].mxu0
  %v2204 = vpop.f32.mrb[0].mxu0
  %v2205 = vadd.f32 0.0, %v2204
  %v2206 = vpop.f32.mrb[0].mxu0
  %2207 = vdwg.mxu0
  %v2209 = vsel %vm1595, %v1891, 0
  %2211 = vmatprep.subr.bf16.mxu0 0
  %2212 = vmatpush1.bf16.msra.mxu0 %v662
  %2213 = vmatprep.subr.bf16.mxu0 0
  %2214 = vmatpush1.bf16.msra.mxu0 %v663
  %2215 = vmatprep.subr.bf16.mxu0 0
  %2216 = vmatpush1.bf16.msra.mxu0 %v664
  %2217 = vmatprep.subr.bf16.mxu0 0
  %2218 = vmatpush1.bf16.msra.mxu0 %v665
  %2219 = vmatprep.subr.bf16.mxu0 0
  %2220 = vmatpush1.bf16.msra.mxu0 0
  %2221 = vmatprep.subr.bf16.mxu0 0
  %2222 = vmatpush1.bf16.msra.mxu0 0
  %2223 = vmatprep.subr.bf16.mxu0 0
  %2224 = vmatpush1.bf16.msra.mxu0 0
  %2225 = vmatprep.subr.bf16.mxu0 0
  %2226 = vmatpush1.bf16.msra.mxu0 0
  %2227 = vmatprep.subr.bf16.mxu0 0
  %2228 = vmatpush1.bf16.msra.mxu0 0
  %2229 = vmatprep.subr.bf16.mxu0 0
  %2230 = vmatpush1.bf16.msra.mxu0 0
  %2231 = vmatprep.subr.bf16.mxu0 0
  %2232 = vmatpush1.bf16.msra.mxu0 0
  %2233 = vmatprep.subr.bf16.mxu0 0
  %2234 = vmatpush1.bf16.msra.mxu0 0
  %2235 = vmatprep.subr.bf16.mxu0 0
  %2236 = vmatpush1.bf16.msra.mxu0 0
  %2237 = vmatprep.subr.bf16.mxu0 0
  %2238 = vmatpush1.bf16.msra.mxu0 0
  %2239 = vmatprep.subr.bf16.mxu0 0
  %2240 = vmatpush1.bf16.msra.mxu0 0
  %2241 = vmatprep.subr.bf16.mxu0 0
  %2242 = vmatpush1.bf16.msra.mxu0 0
  %2243 = vmatprep.mubr.bf16.mxu0 0
  %2244 = vmatmul.mubr.bf16.gmra.mrb[0].mxu0 %v2209
  %v2245 = vpop.f32.mrb[0].mxu0
  %v2246 = vadd.f32 0.0, %v2245
  %v2247 = vpop.f32.mrb[0].mxu0
  %v2248 = vpop.f32.mrb[0].mxu0
  %v2249 = vadd.f32 0.0, %v2248
  %v2250 = vpop.f32.mrb[0].mxu0
  %2251 = vdwg.mxu0
  %v2253 = vsel %vm1595, %v1892, 0
  %2255 = vmatprep.subr.bf16.mxu0 0
  %2256 = vmatpush1.bf16.msra.mxu0 %v666
  %2257 = vmatprep.subr.bf16.mxu0 0
  %2258 = vmatpush1.bf16.msra.mxu0 %v667
  %2259 = vmatprep.subr.bf16.mxu0 0
  %2260 = vmatpush1.bf16.msra.mxu0 %v668
  %2261 = vmatprep.subr.bf16.mxu0 0
  %2262 = vmatpush1.bf16.msra.mxu0 %v669
  %2263 = vmatprep.subr.bf16.mxu0 0
  %2264 = vmatpush1.bf16.msra.mxu0 0
  %2265 = vmatprep.subr.bf16.mxu0 0
  %2266 = vmatpush1.bf16.msra.mxu0 0
  %2267 = vmatprep.subr.bf16.mxu0 0
  %2268 = vmatpush1.bf16.msra.mxu0 0
  %2269 = vmatprep.subr.bf16.mxu0 0
  %2270 = vmatpush1.bf16.msra.mxu0 0
  %2271 = vmatprep.subr.bf16.mxu0 0
  %2272 = vmatpush1.bf16.msra.mxu0 0
  %2273 = vmatprep.subr.bf16.mxu0 0
  %2274 = vmatpush1.bf16.msra.mxu0 0
  %2275 = vmatprep.subr.bf16.mxu0 0
  %2276 = vmatpush1.bf16.msra.mxu0 0
  %2277 = vmatprep.subr.bf16.mxu0 0
  %2278 = vmatpush1.bf16.msra.mxu0 0
  %2279 = vmatprep.subr.bf16.mxu0 0
  %2280 = vmatpush1.bf16.msra.mxu0 0
  %2281 = vmatprep.subr.bf16.mxu0 0
  %2282 = vmatpush1.bf16.msra.mxu0 0
  %2283 = vmatprep.subr.bf16.mxu0 0
  %2284 = vmatpush1.bf16.msra.mxu0 0
  %2285 = vmatprep.subr.bf16.mxu0 0
  %2286 = vmatpush1.bf16.msra.mxu0 0
  %2287 = vmatprep.mubr.bf16.mxu0 0
  %2288 = vmatmul.mubr.bf16.gmra.mrb[0].mxu0 %v2253
  %v2289 = vpop.f32.mrb[0].mxu0
  %v2290 = vadd.f32 0.0, %v2289
  %v2291 = vpop.f32.mrb[0].mxu0
  %v2292 = vpop.f32.mrb[0].mxu0
  %v2293 = vadd.f32 0.0, %v2292
  %v2294 = vpop.f32.mrb[0].mxu0
  %2295 = vdwg.mxu0
  %v2297 = vsel %vm1595, %v1893, 0
  %2299 = vmatprep.subr.bf16.mxu0 0
  %2300 = vmatpush1.bf16.msra.mxu0 %v670
  %2301 = vmatprep.subr.bf16.mxu0 0
  %2302 = vmatpush1.bf16.msra.mxu0 %v671
  %2303 = vmatprep.subr.bf16.mxu0 0
  %2304 = vmatpush1.bf16.msra.mxu0 %v672
  %2305 = vmatprep.subr.bf16.mxu0 0
  %2306 = vmatpush1.bf16.msra.mxu0 %v673
  %2307 = vmatprep.subr.bf16.mxu0 0
  %2308 = vmatpush1.bf16.msra.mxu0 0
  %2309 = vmatprep.subr.bf16.mxu0 0
  %2310 = vmatpush1.bf16.msra.mxu0 0
  %2311 = vmatprep.subr.bf16.mxu0 0
  %2312 = vmatpush1.bf16.msra.mxu0 0
  %2313 = vmatprep.subr.bf16.mxu0 0
  %2314 = vmatpush1.bf16.msra.mxu0 0
  %2315 = vmatprep.subr.bf16.mxu0 0
  %2316 = vmatpush1.bf16.msra.mxu0 0
  %2317 = vmatprep.subr.bf16.mxu0 0
  %2318 = vmatpush1.bf16.msra.mxu0 0
  %2319 = vmatprep.subr.bf16.mxu0 0
  %2320 = vmatpush1.bf16.msra.mxu0 0
  %2321 = vmatprep.subr.bf16.mxu0 0
  %2322 = vmatpush1.bf16.msra.mxu0 0
  %2323 = vmatprep.subr.bf16.mxu0 0
  %2324 = vmatpush1.bf16.msra.mxu0 0
  %2325 = vmatprep.subr.bf16.mxu0 0
  %2326 = vmatpush1.bf16.msra.mxu0 0
  %2327 = vmatprep.subr.bf16.mxu0 0
  %2328 = vmatpush1.bf16.msra.mxu0 0
  %2329 = vmatprep.subr.bf16.mxu0 0
  %2330 = vmatpush1.bf16.msra.mxu0 0
  %2331 = vmatprep.mubr.bf16.mxu0 0
  %2332 = vmatmul.mubr.bf16.gmra.mrb[0].mxu0 %v2297
  %v2333 = vpop.f32.mrb[0].mxu0
  %v2334 = vadd.f32 0.0, %v2333
  %v2335 = vpop.f32.mrb[0].mxu0
  %v2336 = vpop.f32.mrb[0].mxu0
  %v2337 = vadd.f32 0.0, %v2336
  %v2338 = vpop.f32.mrb[0].mxu0
  %2339 = vdwg.mxu0
  %v2341 = vsel %vm1595, %v1894, 0
  %2343 = vmatprep.subr.bf16.mxu0 0
  %2344 = vmatpush1.bf16.msra.mxu0 %v674
  %2345 = vmatprep.subr.bf16.mxu0 0
  %2346 = vmatpush1.bf16.msra.mxu0 %v675
  %2347 = vmatprep.subr.bf16.mxu0 0
  %2348 = vmatpush1.bf16.msra.mxu0 %v676
  %2349 = vmatprep.subr.bf16.mxu0 0
  %2350 = vmatpush1.bf16.msra.mxu0 %v677
  %2351 = vmatprep.subr.bf16.mxu0 0
  %2352 = vmatpush1.bf16.msra.mxu0 0
  %2353 = vmatprep.subr.bf16.mxu0 0
  %2354 = vmatpush1.bf16.msra.mxu0 0
  %2355 = vmatprep.subr.bf16.mxu0 0
  %2356 = vmatpush1.bf16.msra.mxu0 0
  %2357 = vmatprep.subr.bf16.mxu0 0
  %2358 = vmatpush1.bf16.msra.mxu0 0
  %2359 = vmatprep.subr.bf16.mxu0 0
  %2360 = vmatpush1.bf16.msra.mxu0 0
  %2361 = vmatprep.subr.bf16.mxu0 0
  %2362 = vmatpush1.bf16.msra.mxu0 0
  %2363 = vmatprep.subr.bf16.mxu0 0
  %2364 = vmatpush1.bf16.msra.mxu0 0
  %2365 = vmatprep.subr.bf16.mxu0 0
  %2366 = vmatpush1.bf16.msra.mxu0 0
  %2367 = vmatprep.subr.bf16.mxu0 0
  %2368 = vmatpush1.bf16.msra.mxu0 0
  %2369 = vmatprep.subr.bf16.mxu0 0
  %2370 = vmatpush1.bf16.msra.mxu0 0
  %2371 = vmatprep.subr.bf16.mxu0 0
  %2372 = vmatpush1.bf16.msra.mxu0 0
  %2373 = vmatprep.subr.bf16.mxu0 0
  %2374 = vmatpush1.bf16.msra.mxu0 0
  %2375 = vmatprep.mubr.bf16.mxu0 0
  %2376 = vmatmul.mubr.bf16.gmra.mrb[0].mxu0 %v2341
  %v2377 = vpop.f32.mrb[0].mxu0
  %v2378 = vadd.f32 0.0, %v2377
  %v2379 = vpop.f32.mrb[0].mxu0
  %v2380 = vpop.f32.mrb[0].mxu0
  %v2381 = vadd.f32 0.0, %v2380
  %v2382 = vpop.f32.mrb[0].mxu0
  %2383 = vdwg.mxu0
  %v2385 = vsel %vm1595, %v1895, 0
  %2387 = vmatprep.subr.bf16.mxu0 0
  %2388 = vmatpush1.bf16.msra.mxu0 %v678
  %2389 = vmatprep.subr.bf16.mxu0 0
  %2390 = vmatpush1.bf16.msra.mxu0 %v679
  %2391 = vmatprep.subr.bf16.mxu0 0
  %2392 = vmatpush1.bf16.msra.mxu0 %v680
  %2393 = vmatprep.subr.bf16.mxu0 0
  %2394 = vmatpush1.bf16.msra.mxu0 %v681
  %2395 = vmatprep.subr.bf16.mxu0 0
  %2396 = vmatpush1.bf16.msra.mxu0 0
  %2397 = vmatprep.subr.bf16.mxu0 0
  %2398 = vmatpush1.bf16.msra.mxu0 0
  %2399 = vmatprep.subr.bf16.mxu0 0
  %2400 = vmatpush1.bf16.msra.mxu0 0
  %2401 = vmatprep.subr.bf16.mxu0 0
  %2402 = vmatpush1.bf16.msra.mxu0 0
  %2403 = vmatprep.subr.bf16.mxu0 0
  %2404 = vmatpush1.bf16.msra.mxu0 0
  %2405 = vmatprep.subr.bf16.mxu0 0
  %2406 = vmatpush1.bf16.msra.mxu0 0
  %2407 = vmatprep.subr.bf16.mxu0 0
  %2408 = vmatpush1.bf16.msra.mxu0 0
  %2409 = vmatprep.subr.bf16.mxu0 0
  %2410 = vmatpush1.bf16.msra.mxu0 0
  %2411 = vmatprep.subr.bf16.mxu0 0
  %2412 = vmatpush1.bf16.msra.mxu0 0
  %2413 = vmatprep.subr.bf16.mxu0 0
  %2414 = vmatpush1.bf16.msra.mxu0 0
  %2415 = vmatprep.subr.bf16.mxu0 0
  %2416 = vmatpush1.bf16.msra.mxu0 0
  %2417 = vmatprep.subr.bf16.mxu0 0
  %2418 = vmatpush1.bf16.msra.mxu0 0
  %2419 = vmatprep.mubr.bf16.mxu0 0
  %2420 = vmatmul.mubr.bf16.gmra.mrb[0].mxu0 %v2385
  %v2421 = vpop.f32.mrb[0].mxu0
  %v2422 = vadd.f32 0.0, %v2421
  %v2423 = vpop.f32.mrb[0].mxu0
  %v2424 = vpop.f32.mrb[0].mxu0
  %v2425 = vadd.f32 0.0, %v2424
  %v2426 = vpop.f32.mrb[0].mxu0
  %2427 = vdwg.mxu0
  %v2429 = vsel %vm1595, %v1896, 0
  %2431 = vmatprep.subr.bf16.mxu0 0
  %2432 = vmatpush1.bf16.msra.mxu0 %v682
  %2433 = vmatprep.subr.bf16.mxu0 0
  %2434 = vmatpush1.bf16.msra.mxu0 %v683
  %2435 = vmatprep.subr.bf16.mxu0 0
  %2436 = vmatpush1.bf16.msra.mxu0 %v684
  %2437 = vmatprep.subr.bf16.mxu0 0
  %2438 = vmatpush1.bf16.msra.mxu0 %v685
  %2439 = vmatprep.subr.bf16.mxu0 0
  %2440 = vmatpush1.bf16.msra.mxu0 0
  %2441 = vmatprep.subr.bf16.mxu0 0
  %2442 = vmatpush1.bf16.msra.mxu0 0
  %2443 = vmatprep.subr.bf16.mxu0 0
  %2444 = vmatpush1.bf16.msra.mxu0 0
  %2445 = vmatprep.subr.bf16.mxu0 0
  %2446 = vmatpush1.bf16.msra.mxu0 0
  %2447 = vmatprep.subr.bf16.mxu0 0
  %2448 = vmatpush1.bf16.msra.mxu0 0
  %2449 = vmatprep.subr.bf16.mxu0 0
  %2450 = vmatpush1.bf16.msra.mxu0 0
  %2451 = vmatprep.subr.bf16.mxu0 0
  %2452 = vmatpush1.bf16.msra.mxu0 0
  %2453 = vmatprep.subr.bf16.mxu0 0
  %2454 = vmatpush1.bf16.msra.mxu0 0
  %2455 = vmatprep.subr.bf16.mxu0 0
  %2456 = vmatpush1.bf16.msra.mxu0 0
  %2457 = vmatprep.subr.bf16.mxu0 0
  %2458 = vmatpush1.bf16.msra.mxu0 0
  %2459 = vmatprep.subr.bf16.mxu0 0
  %2460 = vmatpush1.bf16.msra.mxu0 0
  %2461 = vmatprep.subr.bf16.mxu0 0
  %2462 = vmatpush1.bf16.msra.mxu0 0
  %2463 = vmatprep.mubr.bf16.mxu0 0
  %2464 = vmatmul.mubr.bf16.gmra.mrb[0].mxu0 %v2429
  %v2465 = vpop.f32.mrb[0].mxu0
  %v2466 = vadd.f32 0.0, %v2465
  %v2467 = vpop.f32.mrb[0].mxu0
  %v2468 = vpop.f32.mrb[0].mxu0
  %v2469 = vadd.f32 0.0, %v2468
  %v2470 = vpop.f32.mrb[0].mxu0
  %2471 = vdwg.mxu0
  %v2473 = vsel %vm1595, %v1897, 0
  %2475 = vmatprep.subr.bf16.mxu0 0
  %2476 = vmatpush1.bf16.msra.mxu0 %v686
  %2477 = vmatprep.subr.bf16.mxu0 0
  %2478 = vmatpush1.bf16.msra.mxu0 %v687
  %2479 = vmatprep.subr.bf16.mxu0 0
  %2480 = vmatpush1.bf16.msra.mxu0 %v688
  %2481 = vmatprep.subr.bf16.mxu0 0
  %2482 = vmatpush1.bf16.msra.mxu0 %v689
  %2483 = vmatprep.subr.bf16.mxu0 0
  %2484 = vmatpush1.bf16.msra.mxu0 0
  %2485 = vmatprep.subr.bf16.mxu0 0
  %2486 = vmatpush1.bf16.msra.mxu0 0
  %2487 = vmatprep.subr.bf16.mxu0 0
  %2488 = vmatpush1.bf16.msra.mxu0 0
  %2489 = vmatprep.subr.bf16.mxu0 0
  %2490 = vmatpush1.bf16.msra.mxu0 0
  %2491 = vmatprep.subr.bf16.mxu0 0
  %2492 = vmatpush1.bf16.msra.mxu0 0
  %2493 = vmatprep.subr.bf16.mxu0 0
  %2494 = vmatpush1.bf16.msra.mxu0 0
  %2495 = vmatprep.subr.bf16.mxu0 0
  %2496 = vmatpush1.bf16.msra.mxu0 0
  %2497 = vmatprep.subr.bf16.mxu0 0
  %2498 = vmatpush1.bf16.msra.mxu0 0
  %2499 = vmatprep.subr.bf16.mxu0 0
  %2500 = vmatpush1.bf16.msra.mxu0 0
  %2501 = vmatprep.subr.bf16.mxu0 0
  %2502 = vmatpush1.bf16.msra.mxu0 0
  %2503 = vmatprep.subr.bf16.mxu0 0
  %2504 = vmatpush1.bf16.msra.mxu0 0
  %2505 = vmatprep.subr.bf16.mxu0 0
  %2506 = vmatpush1.bf16.msra.mxu0 0
  %2507 = vmatprep.mubr.bf16.mxu0 0
  %2508 = vmatmul.mubr.bf16.gmra.mrb[0].mxu0 %v2473
  %v2509 = vpop.f32.mrb[0].mxu0
  %v2510 = vadd.f32 0.0, %v2509
  %v2511 = vpop.f32.mrb[0].mxu0
  %v2512 = vpop.f32.mrb[0].mxu0
  %v2513 = vadd.f32 0.0, %v2512
  %v2514 = vpop.f32.mrb[0].mxu0
  %2515 = vdwg.mxu0
  %v2517 = vsel %vm1595, %v1898, 0
  %2519 = vmatprep.subr.bf16.mxu0 0
  %2520 = vmatpush1.bf16.msra.mxu0 %v690
  %2521 = vmatprep.subr.bf16.mxu0 0
  %2522 = vmatpush1.bf16.msra.mxu0 %v691
  %2523 = vmatprep.subr.bf16.mxu0 0
  %2524 = vmatpush1.bf16.msra.mxu0 %v692
  %2525 = vmatprep.subr.bf16.mxu0 0
  %2526 = vmatpush1.bf16.msra.mxu0 %v693
  %2527 = vmatprep.subr.bf16.mxu0 0
  %2528 = vmatpush1.bf16.msra.mxu0 0
  %2529 = vmatprep.subr.bf16.mxu0 0
  %2530 = vmatpush1.bf16.msra.mxu0 0
  %2531 = vmatprep.subr.bf16.mxu0 0
  %2532 = vmatpush1.bf16.msra.mxu0 0
  %2533 = vmatprep.subr.bf16.mxu0 0
  %2534 = vmatpush1.bf16.msra.mxu0 0
  %2535 = vmatprep.subr.bf16.mxu0 0
  %2536 = vmatpush1.bf16.msra.mxu0 0
  %2537 = vmatprep.subr.bf16.mxu0 0
  %2538 = vmatpush1.bf16.msra.mxu0 0
  %2539 = vmatprep.subr.bf16.mxu0 0
  %2540 = vmatpush1.bf16.msra.mxu0 0
  %2541 = vmatprep.subr.bf16.mxu0 0
  %2542 = vmatpush1.bf16.msra.mxu0 0
  %2543 = vmatprep.subr.bf16.mxu0 0
  %2544 = vmatpush1.bf16.msra.mxu0 0
  %2545 = vmatprep.subr.bf16.mxu0 0
  %2546 = vmatpush1.bf16.msra.mxu0 0
  %2547 = vmatprep.subr.bf16.mxu0 0
  %2548 = vmatpush1.bf16.msra.mxu0 0
  %2549 = vmatprep.subr.bf16.mxu0 0
  %2550 = vmatpush1.bf16.msra.mxu0 0
  %2551 = vmatprep.mubr.bf16.mxu0 0
  %2552 = vmatmul.mubr.bf16.gmra.mrb[0].mxu0 %v2517
  %v2553 = vpop.f32.mrb[0].mxu0
  %v2554 = vadd.f32 0.0, %v2553
  %v2555 = vpop.f32.mrb[0].mxu0
  %v2556 = vpop.f32.mrb[0].mxu0
  %v2557 = vadd.f32 0.0, %v2556
  %v2558 = vpop.f32.mrb[0].mxu0
  %2559 = vdwg.mxu0
  %v2561 = vsel %vm1595, %v1899, 0
  %2563 = vmatprep.subr.bf16.mxu0 0
  %2564 = vmatpush1.bf16.msra.mxu0 %v694
  %2565 = vmatprep.subr.bf16.mxu0 0
  %2566 = vmatpush1.bf16.msra.mxu0 %v695
  %2567 = vmatprep.subr.bf16.mxu0 0
  %2568 = vmatpush1.bf16.msra.mxu0 %v696
  %2569 = vmatprep.subr.bf16.mxu0 0
  %2570 = vmatpush1.bf16.msra.mxu0 %v697
  %2571 = vmatprep.subr.bf16.mxu0 0
  %2572 = vmatpush1.bf16.msra.mxu0 0
  %2573 = vmatprep.subr.bf16.mxu0 0
  %2574 = vmatpush1.bf16.msra.mxu0 0
  %2575 = vmatprep.subr.bf16.mxu0 0
  %2576 = vmatpush1.bf16.msra.mxu0 0
  %2577 = vmatprep.subr.bf16.mxu0 0
  %2578 = vmatpush1.bf16.msra.mxu0 0
  %2579 = vmatprep.subr.bf16.mxu0 0
  %2580 = vmatpush1.bf16.msra.mxu0 0
  %2581 = vmatprep.subr.bf16.mxu0 0
  %2582 = vmatpush1.bf16.msra.mxu0 0
  %2583 = vmatprep.subr.bf16.mxu0 0
  %2584 = vmatpush1.bf16.msra.mxu0 0
  %2585 = vmatprep.subr.bf16.mxu0 0
  %2586 = vmatpush1.bf16.msra.mxu0 0
  %2587 = vmatprep.subr.bf16.mxu0 0
  %2588 = vmatpush1.bf16.msra.mxu0 0
  %2589 = vmatprep.subr.bf16.mxu0 0
  %2590 = vmatpush1.bf16.msra.mxu0 0
  %2591 = vmatprep.subr.bf16.mxu0 0
  %2592 = vmatpush1.bf16.msra.mxu0 0
  %2593 = vmatprep.subr.bf16.mxu0 0
  %2594 = vmatpush1.bf16.msra.mxu0 0
  %2595 = vmatprep.mubr.bf16.mxu0 0
  %2596 = vmatmul.mubr.bf16.gmra.mrb[0].mxu0 %v2561
  %v2597 = vpop.f32.mrb[0].mxu0
  %v2598 = vadd.f32 0.0, %v2597
  %v2599 = vpop.f32.mrb[0].mxu0
  %v2600 = vpop.f32.mrb[0].mxu0
  %v2601 = vadd.f32 0.0, %v2600
  %v2602 = vpop.f32.mrb[0].mxu0
  %2603 = vdwg.mxu0
  %v2604 = vrcp.pop %v1790
  %v2605 = vrcp.pop %v1793
  %v2606 = vrcp.pop %v1796
  %v2607 = vrcp.pop %v1799
  %v2608 = vrcp.pop %v1802
  %v2609 = vrcp.pop %v1805
  %v2610 = vrcp.pop %v1808
  %v2611 = vrcp.pop %v1811
  %v2612 = vrcp.pop %v1814
  %v2613 = vrcp.pop %v1817
  %v2614 = vrcp.pop %v1820
  %v2615 = vrcp.pop %v1823
  %v2616 = vrcp.pop %v1826
  %v2617 = vrcp.pop %v1829
  %v2618 = vrcp.pop %v1832
  %v2619 = vrcp.pop %v1835
  %v2620 = vrcp.pop %v1838
  %v2621 = vrcp.pop %v1841
  %v2622 = vrcp.pop %v1844
  %v2623 = vrcp.pop %v1847
  %v2624 = vrcp.pop %v1850
  %v2625 = vrcp.pop %v1853
  %v2626 = vrcp.pop %v1856
  %v2627 = vrcp.pop %v1859
  %v2628 = vrcp.pop %v1862
  %v2629 = vrcp.pop %v1865
  %v2630 = vrcp.pop %v1868
  %v2631 = vrcp.pop %v1871
  %v2632 = vrcp.pop %v1874
  %v2633 = vrcp.pop %v1877
  %v2634 = vrcp.pop %v1880
  %v2635 = vrcp.pop %v1883
  %v2636 = vmul.f32 %v1938, %v2604
  %v2637 = vmul.f32 %v1941, %v2605
  %v2638 = vmul.f32 %v1982, %v2606
  %v2639 = vmul.f32 %v1985, %v2607
  %v2640 = vmul.f32 %v2026, %v2608
  %v2641 = vmul.f32 %v2029, %v2609
  %v2642 = vmul.f32 %v2070, %v2610
  %v2643 = vmul.f32 %v2073, %v2611
  %v2644 = vmul.f32 %v2114, %v2612
  %v2645 = vmul.f32 %v2117, %v2613
  %v2646 = vmul.f32 %v2158, %v2614
  %v2647 = vmul.f32 %v2161, %v2615
  %v2648 = vmul.f32 %v2202, %v2616
  %v2649 = vmul.f32 %v2205, %v2617
  %v2650 = vmul.f32 %v2246, %v2618
  %v2651 = vmul.f32 %v2249, %v2619
  %v2652 = vmul.f32 %v2290, %v2620
  %v2653 = vmul.f32 %v2293, %v2621
  %v2654 = vmul.f32 %v2334, %v2622
  %v2655 = vmul.f32 %v2337, %v2623
  %v2656 = vmul.f32 %v2378, %v2624
  %v2657 = vmul.f32 %v2381, %v2625
  %v2658 = vmul.f32 %v2422, %v2626
  %v2659 = vmul.f32 %v2425, %v2627
  %v2660 = vmul.f32 %v2466, %v2628
  %v2661 = vmul.f32 %v2469, %v2629
  %v2662 = vmul.f32 %v2510, %v2630
  %v2663 = vmul.f32 %v2513, %v2631
  %v2664 = vmul.f32 %v2554, %v2632
  %v2665 = vmul.f32 %v2557, %v2633
  %v2666 = vmul.f32 %v2598, %v2634
  %v2667 = vmul.f32 %v2601, %v2635
  %v2668 = vld [vmem:[%s5] sm:$0x1]
  %v2669 = vld [vmem:[%s3] sm:$0xff]
  %v2670 = vld [vmem:[%s3 + $0x8] sm:$0xff]
  %v2671 = vld [vmem:[%s3 + $0x10] sm:$0xff]
  %v2672 = vld [vmem:[%s3 + $0x18] sm:$0xff]
  %v2673 = vld [vmem:[%s3 + $0x20] sm:$0xff]
  %v2674 = vld [vmem:[%s3 + $0x28] sm:$0xff]
  %v2675 = vld [vmem:[%s3 + $0x30] sm:$0xff]
  %v2676 = vld [vmem:[%s3 + $0x38] sm:$0xff]
  %v2677 = vld [vmem:[%s3 + $0x40] sm:$0xff]
  %v2678 = vld [vmem:[%s3 + $0x48] sm:$0xff]
  %v2679 = vld [vmem:[%s3 + $0x50] sm:$0xff]
  %v2680 = vld [vmem:[%s3 + $0x58] sm:$0xff]
  %v2681 = vld [vmem:[%s3 + $0x60] sm:$0xff]
  %v2682 = vld [vmem:[%s3 + $0x68] sm:$0xff]
  %v2683 = vld [vmem:[%s3 + $0x70] sm:$0xff]
  %v2684 = vld [vmem:[%s3 + $0x78] sm:$0xff]
  %v2686 = vlaneseq
  %v2687 = vshrl.u32 %v2686, 7
  %v2688 = vsub.s32 0, %v2687
  %v2689 = vrot.slane %v2668, %v2688
  %v2691 = vadd.f32 %v2689, %v2669
  %v2692 = vadd.f32 %v2689, %v2670
  %v2693 = vadd.f32 %v2689, %v2671
  %v2694 = vadd.f32 %v2689, %v2672
  %v2695 = vadd.f32 %v2689, %v2673
  %v2696 = vadd.f32 %v2689, %v2674
  %v2697 = vadd.f32 %v2689, %v2675
  %v2698 = vadd.f32 %v2689, %v2676
  %v2699 = vadd.f32 %v2689, %v2677
  %v2700 = vadd.f32 %v2689, %v2678
  %v2701 = vadd.f32 %v2689, %v2679
  %v2702 = vadd.f32 %v2689, %v2680
  %v2703 = vadd.f32 %v2689, %v2681
  %v2704 = vadd.f32 %v2689, %v2682
  %v2705 = vadd.f32 %v2689, %v2683
  %v2706 = vadd.f32 %v2689, %v2684
  %v2707 = vpack.c.bf16 %v2637, %v2636
  %v2708 = vpack.c.bf16 %v2639, %v2638
  %v2709 = vpack.c.bf16 %v2641, %v2640
  %v2710 = vpack.c.bf16 %v2643, %v2642
  %v2711 = vpack.c.bf16 %v2645, %v2644
  %v2712 = vpack.c.bf16 %v2647, %v2646
  %v2713 = vpack.c.bf16 %v2649, %v2648
  %v2714 = vpack.c.bf16 %v2651, %v2650
  %v2715 = vld [vmem:[%s4] sm:$0xff]
  %v2716 = vld [vmem:[%s4 + $0x8] sm:$0xff]
  %v2717 = vld [vmem:[%s4 + $0x10] sm:$0xff]
  %v2718 = vld [vmem:[%s4 + $0x18] sm:$0xff]
  %v2719 = vpack.c.bf16 %v2716, %v2715
  %v2720 = vpack.c.bf16 %v2718, %v2717
  %v2722 = vsel %vm698, %v2707, 0
  %v2725 = vsel %vm698, %v2708, 0
  %v2728 = vsel %vm698, %v2709, 0
  %v2731 = vsel %vm698, %v2710, 0
  %v2734 = vsel %vm698, %v2711, 0
  %v2737 = vsel %vm698, %v2712, 0
  %v2740 = vsel %vm698, %v2713, 0
  %v2743 = vsel %vm698, %v2714, 0
  %2745 = vmatprep.subr.bf16.mxu0 0
  %2746 = vmatpush1.bf16.msra.mxu0 %v2719
  %2747 = vmatprep.subr.bf16.mxu0 0
  %2748 = vmatpush1.bf16.msra.mxu0 %v2720
  %2749 = vmatprep.subr.bf16.mxu0 0
  %2750 = vmatpush1.bf16.msra.mxu0 0
  %2751 = vmatprep.subr.bf16.mxu0 0
  %2752 = vmatpush1.bf16.msra.mxu0 0
  %2753 = vmatprep.subr.bf16.mxu0 0
  %2754 = vmatpush1.bf16.msra.mxu0 0
  %2755 = vmatprep.subr.bf16.mxu0 0
  %2756 = vmatpush1.bf16.msra.mxu0 0
  %2757 = vmatprep.subr.bf16.mxu0 0
  %2758 = vmatpush1.bf16.msra.mxu0 0
  %2759 = vmatprep.subr.bf16.mxu0 0
  %2760 = vmatpush1.bf16.msra.mxu0 0
  %2761 = vmatprep.subr.bf16.mxu0 0
  %2762 = vmatpush1.bf16.msra.mxu0 0
  %2763 = vmatprep.subr.bf16.mxu0 0
  %2764 = vmatpush1.bf16.msra.mxu0 0
  %2765 = vmatprep.subr.bf16.mxu0 0
  %2766 = vmatpush1.bf16.msra.mxu0 0
  %2767 = vmatprep.subr.bf16.mxu0 0
  %2768 = vmatpush1.bf16.msra.mxu0 0
  %2769 = vmatprep.subr.bf16.mxu0 0
  %2770 = vmatpush1.bf16.msra.mxu0 0
  %2771 = vmatprep.subr.bf16.mxu0 0
  %2772 = vmatpush1.bf16.msra.mxu0 0
  %2773 = vmatprep.subr.bf16.mxu0 0
  %2774 = vmatpush1.bf16.msra.mxu0 0
  %2775 = vmatprep.subr.bf16.mxu0 0
  %2776 = vmatpush1.bf16.msra.mxu0 0
  %2777 = vmatprep.mubr.bf16.mxu0 0
  %2778 = vmatmul.mubr.bf16.gmra.mrb[0].mxu0 %v2722
  %v2779 = vpop.f32.mrb[0].mxu0
  %v2780 = vadd.f32 0.0, %v2779
  %v2781 = vpop.f32.mrb[0].mxu0
  %v2782 = vpop.f32.mrb[0].mxu0
  %v2783 = vadd.f32 0.0, %v2782
  %v2784 = vpop.f32.mrb[0].mxu0
  %2785 = vmatprep.mubr.bf16.mxu0 0
  %2786 = vmatmul.mubr.bf16.gmra.mrb[0].mxu0 %v2725
  %v2787 = vpop.f32.mrb[0].mxu0
  %v2788 = vadd.f32 0.0, %v2787
  %v2789 = vpop.f32.mrb[0].mxu0
  %v2790 = vpop.f32.mrb[0].mxu0
  %v2791 = vadd.f32 0.0, %v2790
  %v2792 = vpop.f32.mrb[0].mxu0
  %2793 = vmatprep.mubr.bf16.mxu0 0
  %2794 = vmatmul.mubr.bf16.gmra.mrb[0].mxu0 %v2728
  %v2795 = vpop.f32.mrb[0].mxu0
  %v2796 = vadd.f32 0.0, %v2795
  %v2797 = vpop.f32.mrb[0].mxu0
  %v2798 = vpop.f32.mrb[0].mxu0
  %v2799 = vadd.f32 0.0, %v2798
  %v2800 = vpop.f32.mrb[0].mxu0
  %2801 = vmatprep.mubr.bf16.mxu0 0
  %2802 = vmatmul.mubr.bf16.gmra.mrb[0].mxu0 %v2731
  %v2803 = vpop.f32.mrb[0].mxu0
  %v2804 = vadd.f32 0.0, %v2803
  %v2805 = vpop.f32.mrb[0].mxu0
  %v2806 = vpop.f32.mrb[0].mxu0
  %v2807 = vadd.f32 0.0, %v2806
  %v2808 = vpop.f32.mrb[0].mxu0
  %2809 = vmatprep.mubr.bf16.mxu0 0
  %2810 = vmatmul.mubr.bf16.gmra.mrb[0].mxu0 %v2734
  %v2811 = vpop.f32.mrb[0].mxu0
  %v2812 = vadd.f32 0.0, %v2811
  %v2813 = vpop.f32.mrb[0].mxu0
  %v2814 = vpop.f32.mrb[0].mxu0
  %v2815 = vadd.f32 0.0, %v2814
  %v2816 = vpop.f32.mrb[0].mxu0
  %2817 = vmatprep.mubr.bf16.mxu0 0
  %2818 = vmatmul.mubr.bf16.gmra.mrb[0].mxu0 %v2737
  %v2819 = vpop.f32.mrb[0].mxu0
  %v2820 = vadd.f32 0.0, %v2819
  %v2821 = vpop.f32.mrb[0].mxu0
  %v2822 = vpop.f32.mrb[0].mxu0
  %v2823 = vadd.f32 0.0, %v2822
  %v2824 = vpop.f32.mrb[0].mxu0
  %2825 = vmatprep.mubr.bf16.mxu0 0
  %2826 = vmatmul.mubr.bf16.gmra.mrb[0].mxu0 %v2740
  %v2827 = vpop.f32.mrb[0].mxu0
  %v2828 = vadd.f32 0.0, %v2827
  %v2829 = vpop.f32.mrb[0].mxu0
  %v2830 = vpop.f32.mrb[0].mxu0
  %v2831 = vadd.f32 0.0, %v2830
  %v2832 = vpop.f32.mrb[0].mxu0
  %2833 = vmatprep.mubr.bf16.mxu0 0
  %2834 = vmatmul.mubr.bf16.gmra.mrb[0].mxu0 %v2743
  %v2835 = vpop.f32.mrb[0].mxu0
  %v2836 = vadd.f32 0.0, %v2835
  %v2837 = vpop.f32.mrb[0].mxu0
  %v2838 = vpop.f32.mrb[0].mxu0
  %v2839 = vadd.f32 0.0, %v2838
  %v2840 = vpop.f32.mrb[0].mxu0
  %2841 = vdwg.mxu0
  %v2842 = vadd.f32 %v2691, %v2780
  %v2843 = vadd.f32 %v2692, %v2783
  %v2844 = vadd.f32 %v2693, %v2788
  %v2845 = vadd.f32 %v2694, %v2791
  %v2846 = vadd.f32 %v2695, %v2796
  %v2847 = vadd.f32 %v2696, %v2799
  %v2848 = vadd.f32 %v2697, %v2804
  %v2849 = vadd.f32 %v2698, %v2807
  %v2850 = vadd.f32 %v2699, %v2812
  %v2851 = vadd.f32 %v2700, %v2815
  %v2852 = vadd.f32 %v2701, %v2820
  %v2853 = vadd.f32 %v2702, %v2823
  %v2854 = vadd.f32 %v2703, %v2828
  %v2855 = vadd.f32 %v2704, %v2831
  %v2856 = vadd.f32 %v2705, %v2836
  %v2857 = vadd.f32 %v2706, %v2839
  %v2858 = vpack.c.bf16 %v2653, %v2652
  %v2859 = vpack.c.bf16 %v2655, %v2654
  %v2860 = vpack.c.bf16 %v2657, %v2656
  %v2861 = vpack.c.bf16 %v2659, %v2658
  %v2862 = vpack.c.bf16 %v2661, %v2660
  %v2863 = vpack.c.bf16 %v2663, %v2662
  %v2864 = vpack.c.bf16 %v2665, %v2664
  %v2865 = vpack.c.bf16 %v2667, %v2666
  %s2866 = scalar_lea.vmem %s4, 32
  %v2867 = vld [vmem:[%s2866] sm:$0xff]
  %v2868 = vld [vmem:[%s2866 + $0x8] sm:$0xff]
  %v2869 = vld [vmem:[%s2866 + $0x10] sm:$0xff]
  %v2870 = vld [vmem:[%s2866 + $0x18] sm:$0xff]
  %v2871 = vpack.c.bf16 %v2868, %v2867
  %v2872 = vpack.c.bf16 %v2870, %v2869
  %v2874 = vsel %vm698, %v2858, 0
  %v2877 = vsel %vm698, %v2859, 0
  %v2880 = vsel %vm698, %v2860, 0
  %v2883 = vsel %vm698, %v2861, 0
  %v2886 = vsel %vm698, %v2862, 0
  %v2889 = vsel %vm698, %v2863, 0
  %v2892 = vsel %vm698, %v2864, 0
  %v2895 = vsel %vm698, %v2865, 0
  %2897 = vmatprep.subr.bf16.mxu0 0
  %2898 = vmatpush1.bf16.msra.mxu0 %v2871
  %2899 = vmatprep.subr.bf16.mxu0 0
  %2900 = vmatpush1.bf16.msra.mxu0 %v2872
  %2901 = vmatprep.subr.bf16.mxu0 0
  %2902 = vmatpush1.bf16.msra.mxu0 0
  %2903 = vmatprep.subr.bf16.mxu0 0
  %2904 = vmatpush1.bf16.msra.mxu0 0
  %2905 = vmatprep.subr.bf16.mxu0 0
  %2906 = vmatpush1.bf16.msra.mxu0 0
  %2907 = vmatprep.subr.bf16.mxu0 0
  %2908 = vmatpush1.bf16.msra.mxu0 0
  %2909 = vmatprep.subr.bf16.mxu0 0
  %2910 = vmatpush1.bf16.msra.mxu0 0
  %2911 = vmatprep.subr.bf16.mxu0 0
  %2912 = vmatpush1.bf16.msra.mxu0 0
  %2913 = vmatprep.subr.bf16.mxu0 0
  %2914 = vmatpush1.bf16.msra.mxu0 0
  %2915 = vmatprep.subr.bf16.mxu0 0
  %2916 = vmatpush1.bf16.msra.mxu0 0
  %2917 = vmatprep.subr.bf16.mxu0 0
  %2918 = vmatpush1.bf16.msra.mxu0 0
  %2919 = vmatprep.subr.bf16.mxu0 0
  %2920 = vmatpush1.bf16.msra.mxu0 0
  %2921 = vmatprep.subr.bf16.mxu0 0
  %2922 = vmatpush1.bf16.msra.mxu0 0
  %2923 = vmatprep.subr.bf16.mxu0 0
  %2924 = vmatpush1.bf16.msra.mxu0 0
  %2925 = vmatprep.subr.bf16.mxu0 0
  %2926 = vmatpush1.bf16.msra.mxu0 0
  %2927 = vmatprep.subr.bf16.mxu0 0
  %2928 = vmatpush1.bf16.msra.mxu0 0
  %2929 = vmatprep.mubr.bf16.mxu0 0
  %2930 = vmatmul.mubr.bf16.gmra.mrb[0].mxu0 %v2874
  %v2931 = vpop.f32.mrb[0].mxu0
  %v2932 = vadd.f32 0.0, %v2931
  %v2933 = vpop.f32.mrb[0].mxu0
  %v2934 = vpop.f32.mrb[0].mxu0
  %v2935 = vadd.f32 0.0, %v2934
  %v2936 = vpop.f32.mrb[0].mxu0
  %2937 = vmatprep.mubr.bf16.mxu0 0
  %2938 = vmatmul.mubr.bf16.gmra.mrb[0].mxu0 %v2877
  %v2939 = vpop.f32.mrb[0].mxu0
  %v2940 = vadd.f32 0.0, %v2939
  %v2941 = vpop.f32.mrb[0].mxu0
  %v2942 = vpop.f32.mrb[0].mxu0
  %v2943 = vadd.f32 0.0, %v2942
  %v2944 = vpop.f32.mrb[0].mxu0
  %2945 = vmatprep.mubr.bf16.mxu0 0
  %2946 = vmatmul.mubr.bf16.gmra.mrb[0].mxu0 %v2880
  %v2947 = vpop.f32.mrb[0].mxu0
  %v2948 = vadd.f32 0.0, %v2947
  %v2949 = vpop.f32.mrb[0].mxu0
  %v2950 = vpop.f32.mrb[0].mxu0
  %v2951 = vadd.f32 0.0, %v2950
  %v2952 = vpop.f32.mrb[0].mxu0
  %2953 = vmatprep.mubr.bf16.mxu0 0
  %2954 = vmatmul.mubr.bf16.gmra.mrb[0].mxu0 %v2883
  %v2955 = vpop.f32.mrb[0].mxu0
  %v2956 = vadd.f32 0.0, %v2955
  %v2957 = vpop.f32.mrb[0].mxu0
  %v2958 = vpop.f32.mrb[0].mxu0
  %v2959 = vadd.f32 0.0, %v2958
  %v2960 = vpop.f32.mrb[0].mxu0
  %2961 = vmatprep.mubr.bf16.mxu0 0
  %2962 = vmatmul.mubr.bf16.gmra.mrb[0].mxu0 %v2886
  %v2963 = vpop.f32.mrb[0].mxu0
  %v2964 = vadd.f32 0.0, %v2963
  %v2965 = vpop.f32.mrb[0].mxu0
  %v2966 = vpop.f32.mrb[0].mxu0
  %v2967 = vadd.f32 0.0, %v2966
  %v2968 = vpop.f32.mrb[0].mxu0
  %2969 = vmatprep.mubr.bf16.mxu0 0
  %2970 = vmatmul.mubr.bf16.gmra.mrb[0].mxu0 %v2889
  %v2971 = vpop.f32.mrb[0].mxu0
  %v2972 = vadd.f32 0.0, %v2971
  %v2973 = vpop.f32.mrb[0].mxu0
  %v2974 = vpop.f32.mrb[0].mxu0
  %v2975 = vadd.f32 0.0, %v2974
  %v2976 = vpop.f32.mrb[0].mxu0
  %2977 = vmatprep.mubr.bf16.mxu0 0
  %2978 = vmatmul.mubr.bf16.gmra.mrb[0].mxu0 %v2892
  %v2979 = vpop.f32.mrb[0].mxu0
  %v2980 = vadd.f32 0.0, %v2979
  %v2981 = vpop.f32.mrb[0].mxu0
  %v2982 = vpop.f32.mrb[0].mxu0
  %v2983 = vadd.f32 0.0, %v2982
  %v2984 = vpop.f32.mrb[0].mxu0
  %2985 = vmatprep.mubr.bf16.mxu0 0
  %2986 = vmatmul.mubr.bf16.gmra.mrb[0].mxu0 %v2895
  %v2987 = vpop.f32.mrb[0].mxu0
  %v2988 = vadd.f32 0.0, %v2987
  %v2989 = vpop.f32.mrb[0].mxu0
  %v2990 = vpop.f32.mrb[0].mxu0
  %v2991 = vadd.f32 0.0, %v2990
  %v2992 = vpop.f32.mrb[0].mxu0
  %2993 = vdwg.mxu0
  %v2994 = vadd.f32 %v2842, %v2932
  %v2995 = vadd.f32 %v2843, %v2935
  %v2996 = vadd.f32 %v2844, %v2940
  %v2997 = vadd.f32 %v2845, %v2943
  %v2998 = vadd.f32 %v2846, %v2948
  %v2999 = vadd.f32 %v2847, %v2951
  %v3000 = vadd.f32 %v2848, %v2956
  %v3001 = vadd.f32 %v2849, %v2959
  %v3002 = vadd.f32 %v2850, %v2964
  %v3003 = vadd.f32 %v2851, %v2967
  %v3004 = vadd.f32 %v2852, %v2972
  %v3005 = vadd.f32 %v2853, %v2975
  %v3006 = vadd.f32 %v2854, %v2980
  %v3007 = vadd.f32 %v2855, %v2983
  %v3008 = vadd.f32 %v2856, %v2988
  %v3009 = vadd.f32 %v2857, %v2991
  %v3010 = vld [vmem:[%s6] sm:$0x1]
  %v3011 = vld [vmem:[%s7] sm:$0x1]
  %v3012 = vsel %vm1595, %v2994, 0.0
  %3013 = vadd.xlane.f32.xlu0 %v3012
  %v3014 = vpop.xlane.xlu0 %3013
  %v3015 = vsel %vm1595, %v2995, 0.0
  %3016 = vadd.xlane.f32.xlu0 %v3015
  %v3017 = vpop.xlane.xlu0 %3016
  %v3018 = vsel %vm1595, %v2996, 0.0
  %3019 = vadd.xlane.f32.xlu0 %v3018
  %v3020 = vpop.xlane.xlu0 %3019
  %v3021 = vsel %vm1595, %v2997, 0.0
  %3022 = vadd.xlane.f32.xlu0 %v3021
  %v3023 = vpop.xlane.xlu0 %3022
  %v3024 = vsel %vm1595, %v2998, 0.0
  %3025 = vadd.xlane.f32.xlu0 %v3024
  %v3026 = vpop.xlane.xlu0 %3025
  %v3027 = vsel %vm1595, %v2999, 0.0
  %3028 = vadd.xlane.f32.xlu0 %v3027
  %v3029 = vpop.xlane.xlu0 %3028
  %v3030 = vsel %vm1595, %v3000, 0.0
  %3031 = vadd.xlane.f32.xlu0 %v3030
  %v3032 = vpop.xlane.xlu0 %3031
  %v3033 = vsel %vm1595, %v3001, 0.0
  %3034 = vadd.xlane.f32.xlu0 %v3033
  %v3035 = vpop.xlane.xlu0 %3034
  %v3036 = vsel %vm1595, %v3002, 0.0
  %3037 = vadd.xlane.f32.xlu0 %v3036
  %v3038 = vpop.xlane.xlu0 %3037
  %v3039 = vsel %vm1595, %v3003, 0.0
  %3040 = vadd.xlane.f32.xlu0 %v3039
  %v3041 = vpop.xlane.xlu0 %3040
  %v3042 = vsel %vm1595, %v3004, 0.0
  %3043 = vadd.xlane.f32.xlu0 %v3042
  %v3044 = vpop.xlane.xlu0 %3043
  %v3045 = vsel %vm1595, %v3005, 0.0
  %3046 = vadd.xlane.f32.xlu0 %v3045
  %v3047 = vpop.xlane.xlu0 %3046
  %v3048 = vsel %vm1595, %v3006, 0.0
  %3049 = vadd.xlane.f32.xlu0 %v3048
  %v3050 = vpop.xlane.xlu0 %3049
  %v3051 = vsel %vm1595, %v3007, 0.0
  %3052 = vadd.xlane.f32.xlu0 %v3051
  %v3053 = vpop.xlane.xlu0 %3052
  %v3054 = vsel %vm1595, %v3008, 0.0
  %3055 = vadd.xlane.f32.xlu0 %v3054
  %v3056 = vpop.xlane.xlu0 %3055
  %v3057 = vsel %vm1595, %v3009, 0.0
  %3058 = vadd.xlane.f32.xlu0 %v3057
  %v3059 = vpop.xlane.xlu0 %3058
  %v3060 = vrcp.pop 64.0
  %v3061 = vmul.f32 %v3014, %v3060
  %v3062 = vmul.f32 %v3017, %v3060
  %v3063 = vmul.f32 %v3020, %v3060
  %v3064 = vmul.f32 %v3023, %v3060
  %v3065 = vmul.f32 %v3026, %v3060
  %v3066 = vmul.f32 %v3029, %v3060
  %v3067 = vmul.f32 %v3032, %v3060
  %v3068 = vmul.f32 %v3035, %v3060
  %v3069 = vmul.f32 %v3038, %v3060
  %v3070 = vmul.f32 %v3041, %v3060
  %v3071 = vmul.f32 %v3044, %v3060
  %v3072 = vmul.f32 %v3047, %v3060
  %v3073 = vmul.f32 %v3050, %v3060
  %v3074 = vmul.f32 %v3053, %v3060
  %v3075 = vmul.f32 %v3056, %v3060
  %v3076 = vmul.f32 %v3059, %v3060
  %v3077 = vsub.f32 %v2994, %v3061
  %v3078 = vsub.f32 %v2995, %v3062
  %v3079 = vsub.f32 %v2996, %v3063
  %v3080 = vsub.f32 %v2997, %v3064
  %v3081 = vsub.f32 %v2998, %v3065
  %v3082 = vsub.f32 %v2999, %v3066
  %v3083 = vsub.f32 %v3000, %v3067
  %v3084 = vsub.f32 %v3001, %v3068
  %v3085 = vsub.f32 %v3002, %v3069
  %v3086 = vsub.f32 %v3003, %v3070
  %v3087 = vsub.f32 %v3004, %v3071
  %v3088 = vsub.f32 %v3005, %v3072
  %v3089 = vsub.f32 %v3006, %v3073
  %v3090 = vsub.f32 %v3007, %v3074
  %v3091 = vsub.f32 %v3008, %v3075
  %v3092 = vsub.f32 %v3009, %v3076
  %v3093 = vmul.f32 %v3077, %v3077
  %v3094 = vmul.f32 %v3078, %v3078
  %v3095 = vmul.f32 %v3079, %v3079
  %v3096 = vmul.f32 %v3080, %v3080
  %v3097 = vmul.f32 %v3081, %v3081
  %v3098 = vmul.f32 %v3082, %v3082
  %v3099 = vmul.f32 %v3083, %v3083
  %v3100 = vmul.f32 %v3084, %v3084
  %v3101 = vmul.f32 %v3085, %v3085
  %v3102 = vmul.f32 %v3086, %v3086
  %v3103 = vmul.f32 %v3087, %v3087
  %v3104 = vmul.f32 %v3088, %v3088
  %v3105 = vmul.f32 %v3089, %v3089
  %v3106 = vmul.f32 %v3090, %v3090
  %v3107 = vmul.f32 %v3091, %v3091
  %v3108 = vmul.f32 %v3092, %v3092
  %v3109 = vsel %vm1595, %v3093, 0.0
  %3110 = vadd.xlane.f32.xlu0 %v3109
  %v3111 = vpop.xlane.xlu0 %3110
  %v3112 = vsel %vm1595, %v3094, 0.0
  %3113 = vadd.xlane.f32.xlu0 %v3112
  %v3114 = vpop.xlane.xlu0 %3113
  %v3115 = vsel %vm1595, %v3095, 0.0
  %3116 = vadd.xlane.f32.xlu0 %v3115
  %v3117 = vpop.xlane.xlu0 %3116
  %v3118 = vsel %vm1595, %v3096, 0.0
  %3119 = vadd.xlane.f32.xlu0 %v3118
  %v3120 = vpop.xlane.xlu0 %3119
  %v3121 = vsel %vm1595, %v3097, 0.0
  %3122 = vadd.xlane.f32.xlu0 %v3121
  %v3123 = vpop.xlane.xlu0 %3122
  %v3124 = vsel %vm1595, %v3098, 0.0
  %3125 = vadd.xlane.f32.xlu0 %v3124
  %v3126 = vpop.xlane.xlu0 %3125
  %v3127 = vsel %vm1595, %v3099, 0.0
  %3128 = vadd.xlane.f32.xlu0 %v3127
  %v3129 = vpop.xlane.xlu0 %3128
  %v3130 = vsel %vm1595, %v3100, 0.0
  %3131 = vadd.xlane.f32.xlu0 %v3130
  %v3132 = vpop.xlane.xlu0 %3131
  %v3133 = vsel %vm1595, %v3101, 0.0
  %3134 = vadd.xlane.f32.xlu0 %v3133
  %v3135 = vpop.xlane.xlu0 %3134
  %v3136 = vsel %vm1595, %v3102, 0.0
  %3137 = vadd.xlane.f32.xlu0 %v3136
  %v3138 = vpop.xlane.xlu0 %3137
  %v3139 = vsel %vm1595, %v3103, 0.0
  %3140 = vadd.xlane.f32.xlu0 %v3139
  %v3141 = vpop.xlane.xlu0 %3140
  %v3142 = vsel %vm1595, %v3104, 0.0
  %3143 = vadd.xlane.f32.xlu0 %v3142
  %v3144 = vpop.xlane.xlu0 %3143
  %v3145 = vsel %vm1595, %v3105, 0.0
  %3146 = vadd.xlane.f32.xlu0 %v3145
  %v3147 = vpop.xlane.xlu0 %3146
  %v3148 = vsel %vm1595, %v3106, 0.0
  %3149 = vadd.xlane.f32.xlu0 %v3148
  %v3150 = vpop.xlane.xlu0 %3149
  %v3151 = vsel %vm1595, %v3107, 0.0
  %3152 = vadd.xlane.f32.xlu0 %v3151
  %v3153 = vpop.xlane.xlu0 %3152
  %v3154 = vsel %vm1595, %v3108, 0.0
  %3155 = vadd.xlane.f32.xlu0 %v3154
  %v3156 = vpop.xlane.xlu0 %3155
  %v3157 = vmul.f32 %v3111, %v3060
  %v3158 = vmul.f32 %v3114, %v3060
  %v3159 = vmul.f32 %v3117, %v3060
  %v3160 = vmul.f32 %v3120, %v3060
  %v3161 = vmul.f32 %v3123, %v3060
  %v3162 = vmul.f32 %v3126, %v3060
  %v3163 = vmul.f32 %v3129, %v3060
  %v3164 = vmul.f32 %v3132, %v3060
  %v3165 = vmul.f32 %v3135, %v3060
  %v3166 = vmul.f32 %v3138, %v3060
  %v3167 = vmul.f32 %v3141, %v3060
  %v3168 = vmul.f32 %v3144, %v3060
  %v3169 = vmul.f32 %v3147, %v3060
  %v3170 = vmul.f32 %v3150, %v3060
  %v3171 = vmul.f32 %v3153, %v3060
  %v3172 = vmul.f32 %v3156, %v3060
  %v3173 = vadd.f32 %v3157, 1e-05
  %v3174 = vadd.f32 %v3158, 1e-05
  %v3175 = vadd.f32 %v3159, 1e-05
  %v3176 = vadd.f32 %v3160, 1e-05
  %v3177 = vadd.f32 %v3161, 1e-05
  %v3178 = vadd.f32 %v3162, 1e-05
  %v3179 = vadd.f32 %v3163, 1e-05
  %v3180 = vadd.f32 %v3164, 1e-05
  %v3181 = vadd.f32 %v3165, 1e-05
  %v3182 = vadd.f32 %v3166, 1e-05
  %v3183 = vadd.f32 %v3167, 1e-05
  %v3184 = vadd.f32 %v3168, 1e-05
  %v3185 = vadd.f32 %v3169, 1e-05
  %v3186 = vadd.f32 %v3170, 1e-05
  %v3187 = vadd.f32 %v3171, 1e-05
  %v3188 = vadd.f32 %v3172, 1e-05
  %v3189 = vrsqrt.pop %v3173
  %v3190 = vrsqrt.pop %v3174
  %v3191 = vrsqrt.pop %v3175
  %v3192 = vrsqrt.pop %v3176
  %v3193 = vrsqrt.pop %v3177
  %v3194 = vrsqrt.pop %v3178
  %v3195 = vrsqrt.pop %v3179
  %v3196 = vrsqrt.pop %v3180
  %v3197 = vrsqrt.pop %v3181
  %v3198 = vrsqrt.pop %v3182
  %v3199 = vrsqrt.pop %v3183
  %v3200 = vrsqrt.pop %v3184
  %v3201 = vrsqrt.pop %v3185
  %v3202 = vrsqrt.pop %v3186
  %v3203 = vrsqrt.pop %v3187
  %v3204 = vrsqrt.pop %v3188
  %v3205 = vmul.f32 %v3077, %v3189
  %v3206 = vmul.f32 %v3078, %v3190
  %v3207 = vmul.f32 %v3079, %v3191
  %v3208 = vmul.f32 %v3080, %v3192
  %v3209 = vmul.f32 %v3081, %v3193
  %v3210 = vmul.f32 %v3082, %v3194
  %v3211 = vmul.f32 %v3083, %v3195
  %v3212 = vmul.f32 %v3084, %v3196
  %v3213 = vmul.f32 %v3085, %v3197
  %v3214 = vmul.f32 %v3086, %v3198
  %v3215 = vmul.f32 %v3087, %v3199
  %v3216 = vmul.f32 %v3088, %v3200
  %v3217 = vmul.f32 %v3089, %v3201
  %v3218 = vmul.f32 %v3090, %v3202
  %v3219 = vmul.f32 %v3091, %v3203
  %v3220 = vmul.f32 %v3092, %v3204
  %v3222 = vlaneseq
  %v3223 = vshrl.u32 %v3222, 7
  %v3224 = vsub.s32 0, %v3223
  %v3225 = vrot.slane %v3010, %v3224
  %v3227 = vmul.f32 %v3205, %v3225
  %v3228 = vmul.f32 %v3206, %v3225
  %v3229 = vmul.f32 %v3207, %v3225
  %v3230 = vmul.f32 %v3208, %v3225
  %v3231 = vmul.f32 %v3209, %v3225
  %v3232 = vmul.f32 %v3210, %v3225
  %v3233 = vmul.f32 %v3211, %v3225
  %v3234 = vmul.f32 %v3212, %v3225
  %v3235 = vmul.f32 %v3213, %v3225
  %v3236 = vmul.f32 %v3214, %v3225
  %v3237 = vmul.f32 %v3215, %v3225
  %v3238 = vmul.f32 %v3216, %v3225
  %v3239 = vmul.f32 %v3217, %v3225
  %v3240 = vmul.f32 %v3218, %v3225
  %v3241 = vmul.f32 %v3219, %v3225
  %v3242 = vmul.f32 %v3220, %v3225
  %v3244 = vlaneseq
  %v3245 = vshrl.u32 %v3244, 7
  %v3246 = vsub.s32 0, %v3245
  %v3247 = vrot.slane %v3011, %v3246
  %v3249 = vadd.f32 %v3227, %v3247
  %v3250 = vadd.f32 %v3228, %v3247
  %v3251 = vadd.f32 %v3229, %v3247
  %v3252 = vadd.f32 %v3230, %v3247
  %v3253 = vadd.f32 %v3231, %v3247
  %v3254 = vadd.f32 %v3232, %v3247
  %v3255 = vadd.f32 %v3233, %v3247
  %v3256 = vadd.f32 %v3234, %v3247
  %v3257 = vadd.f32 %v3235, %v3247
  %v3258 = vadd.f32 %v3236, %v3247
  %v3259 = vadd.f32 %v3237, %v3247
  %v3260 = vadd.f32 %v3238, %v3247
  %v3261 = vadd.f32 %v3239, %v3247
  %v3262 = vadd.f32 %v3240, %v3247
  %v3263 = vadd.f32 %v3241, %v3247
  %v3264 = vadd.f32 %v3242, %v3247
  %v3265 = vpack.c.bf16 %v3250, %v3249
  %v3266 = vpack.c.bf16 %v3252, %v3251
  %v3267 = vpack.c.bf16 %v3254, %v3253
  %v3268 = vpack.c.bf16 %v3256, %v3255
  %v3269 = vpack.c.bf16 %v3258, %v3257
  %v3270 = vpack.c.bf16 %v3260, %v3259
  %v3271 = vpack.c.bf16 %v3262, %v3261
  %v3272 = vpack.c.bf16 %v3264, %v3263
  %v3273 = vld [vmem:[%s8] sm:$0xff]
  %v3274 = vld [vmem:[%s8 + $0x8] sm:$0xff]
  %v3275 = vld [vmem:[%s8 + $0x10] sm:$0xff]
  %v3276 = vld [vmem:[%s8 + $0x18] sm:$0xff]
  %v3277 = vld [vmem:[%s8 + $0x20] sm:$0xff]
  %v3278 = vld [vmem:[%s8 + $0x28] sm:$0xff]
  %v3279 = vld [vmem:[%s8 + $0x30] sm:$0xff]
  %v3280 = vld [vmem:[%s8 + $0x38] sm:$0xff]
  %v3281 = vld [vmem:[%s8 + $0x40] sm:$0xff]
  %v3282 = vld [vmem:[%s8 + $0x48] sm:$0xff]
  %v3283 = vld [vmem:[%s8 + $0x50] sm:$0xff]
  %v3284 = vld [vmem:[%s8 + $0x58] sm:$0xff]
  %v3285 = vld [vmem:[%s8 + $0x60] sm:$0xff]
  %v3286 = vld [vmem:[%s8 + $0x68] sm:$0xff]
  %v3287 = vld [vmem:[%s8 + $0x70] sm:$0xff]
  %v3288 = vld [vmem:[%s8 + $0x78] sm:$0xff]
  %v3289 = vpack.c.bf16 %v3275, %v3273
  %v3290 = vpack.c.bf16 %v3276, %v3274
  %v3291 = vpack.c.bf16 %v3279, %v3277
  %v3292 = vpack.c.bf16 %v3280, %v3278
  %v3293 = vpack.c.bf16 %v3283, %v3281
  %v3294 = vpack.c.bf16 %v3284, %v3282
  %v3295 = vpack.c.bf16 %v3287, %v3285
  %v3296 = vpack.c.bf16 %v3288, %v3286
  %v3297 = vld [vmem:[%s9] sm:$0x3]
  %v3299 = vlaneseq
  %v3300 = vshrl.u32 %v3299, 7
  %v3301 = vsub.s32 0, %v3300
  %v3302 = vrot.slane %v3297, %v3301
  %v3303 = vlaneseq
  %v3304 = vshrl.u32 %v3303, 7
  %v3305 = vsub.s32 1, %v3304
  %v3306 = vrot.slane %v3297, %v3305
  %v3310 = vsel %vm1595, %v3265, 0
  %v3313 = vsel %vm1595, %v3266, 0
  %v3316 = vsel %vm1595, %v3267, 0
  %v3319 = vsel %vm1595, %v3268, 0
  %v3322 = vsel %vm1595, %v3269, 0
  %v3325 = vsel %vm1595, %v3270, 0
  %v3328 = vsel %vm1595, %v3271, 0
  %v3331 = vsel %vm1595, %v3272, 0
  %3333 = vmatprep.subr.bf16.mxu0 %v3290
  %3334 = vmatpush1.bf16.msra.mxu0 %v3289
  %3335 = vmatprep.subr.bf16.mxu0 %v3292
  %3336 = vmatpush1.bf16.msra.mxu0 %v3291
  %3337 = vmatprep.subr.bf16.mxu0 %v3294
  %3338 = vmatpush1.bf16.msra.mxu0 %v3293
  %3339 = vmatprep.subr.bf16.mxu0 %v3296
  %3340 = vmatpush1.bf16.msra.mxu0 %v3295
  %3341 = vmatprep.subr.bf16.mxu0 0
  %3342 = vmatpush1.bf16.msra.mxu0 0
  %3343 = vmatprep.subr.bf16.mxu0 0
  %3344 = vmatpush1.bf16.msra.mxu0 0
  %3345 = vmatprep.subr.bf16.mxu0 0
  %3346 = vmatpush1.bf16.msra.mxu0 0
  %3347 = vmatprep.subr.bf16.mxu0 0
  %3348 = vmatpush1.bf16.msra.mxu0 0
  %3349 = vmatprep.subr.bf16.mxu0 0
  %3350 = vmatpush1.bf16.msra.mxu0 0
  %3351 = vmatprep.subr.bf16.mxu0 0
  %3352 = vmatpush1.bf16.msra.mxu0 0
  %3353 = vmatprep.subr.bf16.mxu0 0
  %3354 = vmatpush1.bf16.msra.mxu0 0
  %3355 = vmatprep.subr.bf16.mxu0 0
  %3356 = vmatpush1.bf16.msra.mxu0 0
  %3357 = vmatprep.subr.bf16.mxu0 0
  %3358 = vmatpush1.bf16.msra.mxu0 0
  %3359 = vmatprep.subr.bf16.mxu0 0
  %3360 = vmatpush1.bf16.msra.mxu0 0
  %3361 = vmatprep.subr.bf16.mxu0 0
  %3362 = vmatpush1.bf16.msra.mxu0 0
  %3363 = vmatprep.subr.bf16.mxu0 0
  %3364 = vmatpush1.bf16.msra.mxu0 0
  %3365 = vmatprep.mubr.bf16.mxu0 0
  %3366 = vmatmul.mubr.bf16.gmra.mrb[0].mxu0 %v3310
  %v3367 = vpop.f32.mrb[0].mxu0
  %v3368 = vadd.f32 %v3302, %v3367
  %v3369 = vpop.f32.mrb[0].mxu0
  %v3370 = vadd.f32 %v3306, %v3369
  %v3371 = vpop.f32.mrb[0].mxu0
  %v3372 = vadd.f32 %v3302, %v3371
  %v3373 = vpop.f32.mrb[0].mxu0
  %v3374 = vadd.f32 %v3306, %v3373
  %3375 = vmatprep.mubr.bf16.mxu0 0
  %3376 = vmatmul.mubr.bf16.gmra.mrb[0].mxu0 %v3313
  %v3377 = vpop.f32.mrb[0].mxu0
  %v3378 = vadd.f32 %v3302, %v3377
  %v3379 = vpop.f32.mrb[0].mxu0
  %v3380 = vadd.f32 %v3306, %v3379
  %v3381 = vpop.f32.mrb[0].mxu0
  %v3382 = vadd.f32 %v3302, %v3381
  %v3383 = vpop.f32.mrb[0].mxu0
  %v3384 = vadd.f32 %v3306, %v3383
  %3385 = vmatprep.mubr.bf16.mxu0 0
  %3386 = vmatmul.mubr.bf16.gmra.mrb[0].mxu0 %v3316
  %v3387 = vpop.f32.mrb[0].mxu0
  %v3388 = vadd.f32 %v3302, %v3387
  %v3389 = vpop.f32.mrb[0].mxu0
  %v3390 = vadd.f32 %v3306, %v3389
  %v3391 = vpop.f32.mrb[0].mxu0
  %v3392 = vadd.f32 %v3302, %v3391
  %v3393 = vpop.f32.mrb[0].mxu0
  %v3394 = vadd.f32 %v3306, %v3393
  %3395 = vmatprep.mubr.bf16.mxu0 0
  %3396 = vmatmul.mubr.bf16.gmra.mrb[0].mxu0 %v3319
  %v3397 = vpop.f32.mrb[0].mxu0
  %v3398 = vadd.f32 %v3302, %v3397
  %v3399 = vpop.f32.mrb[0].mxu0
  %v3400 = vadd.f32 %v3306, %v3399
  %v3401 = vpop.f32.mrb[0].mxu0
  %v3402 = vadd.f32 %v3302, %v3401
  %v3403 = vpop.f32.mrb[0].mxu0
  %v3404 = vadd.f32 %v3306, %v3403
  %3405 = vmatprep.mubr.bf16.mxu0 0
  %3406 = vmatmul.mubr.bf16.gmra.mrb[0].mxu0 %v3322
  %v3407 = vpop.f32.mrb[0].mxu0
  %v3408 = vadd.f32 %v3302, %v3407
  %v3409 = vpop.f32.mrb[0].mxu0
  %v3410 = vadd.f32 %v3306, %v3409
  %v3411 = vpop.f32.mrb[0].mxu0
  %v3412 = vadd.f32 %v3302, %v3411
  %v3413 = vpop.f32.mrb[0].mxu0
  %v3414 = vadd.f32 %v3306, %v3413
  %3415 = vmatprep.mubr.bf16.mxu0 0
  %3416 = vmatmul.mubr.bf16.gmra.mrb[0].mxu0 %v3325
  %v3417 = vpop.f32.mrb[0].mxu0
  %v3418 = vadd.f32 %v3302, %v3417
  %v3419 = vpop.f32.mrb[0].mxu0
  %v3420 = vadd.f32 %v3306, %v3419
  %v3421 = vpop.f32.mrb[0].mxu0
  %v3422 = vadd.f32 %v3302, %v3421
  %v3423 = vpop.f32.mrb[0].mxu0
  %v3424 = vadd.f32 %v3306, %v3423
  %3425 = vmatprep.mubr.bf16.mxu0 0
  %3426 = vmatmul.mubr.bf16.gmra.mrb[0].mxu0 %v3328
  %v3427 = vpop.f32.mrb[0].mxu0
  %v3428 = vadd.f32 %v3302, %v3427
  %v3429 = vpop.f32.mrb[0].mxu0
  %v3430 = vadd.f32 %v3306, %v3429
  %v3431 = vpop.f32.mrb[0].mxu0
  %v3432 = vadd.f32 %v3302, %v3431
  %v3433 = vpop.f32.mrb[0].mxu0
  %v3434 = vadd.f32 %v3306, %v3433
  %3435 = vmatprep.mubr.bf16.mxu0 0
  %3436 = vmatmul.mubr.bf16.gmra.mrb[0].mxu0 %v3331
  %v3437 = vpop.f32.mrb[0].mxu0
  %v3438 = vadd.f32 %v3302, %v3437
  %v3439 = vpop.f32.mrb[0].mxu0
  %v3440 = vadd.f32 %v3306, %v3439
  %v3441 = vpop.f32.mrb[0].mxu0
  %v3442 = vadd.f32 %v3302, %v3441
  %v3443 = vpop.f32.mrb[0].mxu0
  %v3444 = vadd.f32 %v3306, %v3443
  %3445 = vdwg.mxu0
  %v3446 = vmul.f32 %v3368, 0.5
  %v3447 = vmul.f32 %v3370, 0.5
  %v3448 = vmul.f32 %v3372, 0.5
  %v3449 = vmul.f32 %v3374, 0.5
  %v3450 = vmul.f32 %v3378, 0.5
  %v3451 = vmul.f32 %v3380, 0.5
  %v3452 = vmul.f32 %v3382, 0.5
  %v3453 = vmul.f32 %v3384, 0.5
  %v3454 = vmul.f32 %v3388, 0.5
  %v3455 = vmul.f32 %v3390, 0.5
  %v3456 = vmul.f32 %v3392, 0.5
  %v3457 = vmul.f32 %v3394, 0.5
  %v3458 = vmul.f32 %v3398, 0.5
  %v3459 = vmul.f32 %v3400, 0.5
  %v3460 = vmul.f32 %v3402, 0.5
  %v3461 = vmul.f32 %v3404, 0.5
  %v3462 = vmul.f32 %v3408, 0.5
  %v3463 = vmul.f32 %v3410, 0.5
  %v3464 = vmul.f32 %v3412, 0.5
  %v3465 = vmul.f32 %v3414, 0.5
  %v3466 = vmul.f32 %v3418, 0.5
  %v3467 = vmul.f32 %v3420, 0.5
  %v3468 = vmul.f32 %v3422, 0.5
  %v3469 = vmul.f32 %v3424, 0.5
  %v3470 = vmul.f32 %v3428, 0.5
  %v3471 = vmul.f32 %v3430, 0.5
  %v3472 = vmul.f32 %v3432, 0.5
  %v3473 = vmul.f32 %v3434, 0.5
  %v3474 = vmul.f32 %v3438, 0.5
  %v3475 = vmul.f32 %v3440, 0.5
  %v3476 = vmul.f32 %v3442, 0.5
  %v3477 = vmul.f32 %v3444, 0.5
  %v3478 = vmul.f32 %v3368, 0.044715
  %v3479 = vmul.f32 %v3370, 0.044715
  %v3480 = vmul.f32 %v3372, 0.044715
  %v3481 = vmul.f32 %v3374, 0.044715
  %v3482 = vmul.f32 %v3378, 0.044715
  %v3483 = vmul.f32 %v3380, 0.044715
  %v3484 = vmul.f32 %v3382, 0.044715
  %v3485 = vmul.f32 %v3384, 0.044715
  %v3486 = vmul.f32 %v3388, 0.044715
  %v3487 = vmul.f32 %v3390, 0.044715
  %v3488 = vmul.f32 %v3392, 0.044715
  %v3489 = vmul.f32 %v3394, 0.044715
  %v3490 = vmul.f32 %v3398, 0.044715
  %v3491 = vmul.f32 %v3400, 0.044715
  %v3492 = vmul.f32 %v3402, 0.044715
  %v3493 = vmul.f32 %v3404, 0.044715
  %v3494 = vmul.f32 %v3408, 0.044715
  %v3495 = vmul.f32 %v3410, 0.044715
  %v3496 = vmul.f32 %v3412, 0.044715
  %v3497 = vmul.f32 %v3414, 0.044715
  %v3498 = vmul.f32 %v3418, 0.044715
  %v3499 = vmul.f32 %v3420, 0.044715
  %v3500 = vmul.f32 %v3422, 0.044715
  %v3501 = vmul.f32 %v3424, 0.044715
  %v3502 = vmul.f32 %v3428, 0.044715
  %v3503 = vmul.f32 %v3430, 0.044715
  %v3504 = vmul.f32 %v3432, 0.044715
  %v3505 = vmul.f32 %v3434, 0.044715
  %v3506 = vmul.f32 %v3438, 0.044715
  %v3507 = vmul.f32 %v3440, 0.044715
  %v3508 = vmul.f32 %v3442, 0.044715
  %v3509 = vmul.f32 %v3444, 0.044715
  %v3510 = vmul.f32 %v3478, %v3368
  %v3511 = vmul.f32 %v3479, %v3370
  %v3512 = vmul.f32 %v3480, %v3372
  %v3513 = vmul.f32 %v3481, %v3374
  %v3514 = vmul.f32 %v3482, %v3378
  %v3515 = vmul.f32 %v3483, %v3380
  %v3516 = vmul.f32 %v3484, %v3382
  %v3517 = vmul.f32 %v3485, %v3384
  %v3518 = vmul.f32 %v3486, %v3388
  %v3519 = vmul.f32 %v3487, %v3390
  %v3520 = vmul.f32 %v3488, %v3392
  %v3521 = vmul.f32 %v3489, %v3394
  %v3522 = vmul.f32 %v3490, %v3398
  %v3523 = vmul.f32 %v3491, %v3400
  %v3524 = vmul.f32 %v3492, %v3402
  %v3525 = vmul.f32 %v3493, %v3404
  %v3526 = vmul.f32 %v3494, %v3408
  %v3527 = vmul.f32 %v3495, %v3410
  %v3528 = vmul.f32 %v3496, %v3412
  %v3529 = vmul.f32 %v3497, %v3414
  %v3530 = vmul.f32 %v3498, %v3418
  %v3531 = vmul.f32 %v3499, %v3420
  %v3532 = vmul.f32 %v3500, %v3422
  %v3533 = vmul.f32 %v3501, %v3424
  %v3534 = vmul.f32 %v3502, %v3428
  %v3535 = vmul.f32 %v3503, %v3430
  %v3536 = vmul.f32 %v3504, %v3432
  %v3537 = vmul.f32 %v3505, %v3434
  %v3538 = vmul.f32 %v3506, %v3438
  %v3539 = vmul.f32 %v3507, %v3440
  %v3540 = vmul.f32 %v3508, %v3442
  %v3541 = vmul.f32 %v3509, %v3444
  %v3542 = vmul.f32 %v3510, %v3368
  %v3543 = vmul.f32 %v3511, %v3370
  %v3544 = vmul.f32 %v3512, %v3372
  %v3545 = vmul.f32 %v3513, %v3374
  %v3546 = vmul.f32 %v3514, %v3378
  %v3547 = vmul.f32 %v3515, %v3380
  %v3548 = vmul.f32 %v3516, %v3382
  %v3549 = vmul.f32 %v3517, %v3384
  %v3550 = vmul.f32 %v3518, %v3388
  %v3551 = vmul.f32 %v3519, %v3390
  %v3552 = vmul.f32 %v3520, %v3392
  %v3553 = vmul.f32 %v3521, %v3394
  %v3554 = vmul.f32 %v3522, %v3398
  %v3555 = vmul.f32 %v3523, %v3400
  %v3556 = vmul.f32 %v3524, %v3402
  %v3557 = vmul.f32 %v3525, %v3404
  %v3558 = vmul.f32 %v3526, %v3408
  %v3559 = vmul.f32 %v3527, %v3410
  %v3560 = vmul.f32 %v3528, %v3412
  %v3561 = vmul.f32 %v3529, %v3414
  %v3562 = vmul.f32 %v3530, %v3418
  %v3563 = vmul.f32 %v3531, %v3420
  %v3564 = vmul.f32 %v3532, %v3422
  %v3565 = vmul.f32 %v3533, %v3424
  %v3566 = vmul.f32 %v3534, %v3428
  %v3567 = vmul.f32 %v3535, %v3430
  %v3568 = vmul.f32 %v3536, %v3432
  %v3569 = vmul.f32 %v3537, %v3434
  %v3570 = vmul.f32 %v3538, %v3438
  %v3571 = vmul.f32 %v3539, %v3440
  %v3572 = vmul.f32 %v3540, %v3442
  %v3573 = vmul.f32 %v3541, %v3444
  %v3574 = vadd.f32 %v3368, %v3542
  %v3575 = vadd.f32 %v3370, %v3543
  %v3576 = vadd.f32 %v3372, %v3544
  %v3577 = vadd.f32 %v3374, %v3545
  %v3578 = vadd.f32 %v3378, %v3546
  %v3579 = vadd.f32 %v3380, %v3547
  %v3580 = vadd.f32 %v3382, %v3548
  %v3581 = vadd.f32 %v3384, %v3549
  %v3582 = vadd.f32 %v3388, %v3550
  %v3583 = vadd.f32 %v3390, %v3551
  %v3584 = vadd.f32 %v3392, %v3552
  %v3585 = vadd.f32 %v3394, %v3553
  %v3586 = vadd.f32 %v3398, %v3554
  %v3587 = vadd.f32 %v3400, %v3555
  %v3588 = vadd.f32 %v3402, %v3556
  %v3589 = vadd.f32 %v3404, %v3557
  %v3590 = vadd.f32 %v3408, %v3558
  %v3591 = vadd.f32 %v3410, %v3559
  %v3592 = vadd.f32 %v3412, %v3560
  %v3593 = vadd.f32 %v3414, %v3561
  %v3594 = vadd.f32 %v3418, %v3562
  %v3595 = vadd.f32 %v3420, %v3563
  %v3596 = vadd.f32 %v3422, %v3564
  %v3597 = vadd.f32 %v3424, %v3565
  %v3598 = vadd.f32 %v3428, %v3566
  %v3599 = vadd.f32 %v3430, %v3567
  %v3600 = vadd.f32 %v3432, %v3568
  %v3601 = vadd.f32 %v3434, %v3569
  %v3602 = vadd.f32 %v3438, %v3570
  %v3603 = vadd.f32 %v3440, %v3571
  %v3604 = vadd.f32 %v3442, %v3572
  %v3605 = vadd.f32 %v3444, %v3573
  %v3606 = vmul.f32 %v3574, 0.7978846
  %v3607 = vmul.f32 %v3575, 0.7978846
  %v3608 = vmul.f32 %v3576, 0.7978846
  %v3609 = vmul.f32 %v3577, 0.7978846
  %v3610 = vmul.f32 %v3578, 0.7978846
  %v3611 = vmul.f32 %v3579, 0.7978846
  %v3612 = vmul.f32 %v3580, 0.7978846
  %v3613 = vmul.f32 %v3581, 0.7978846
  %v3614 = vmul.f32 %v3582, 0.7978846
  %v3615 = vmul.f32 %v3583, 0.7978846
  %v3616 = vmul.f32 %v3584, 0.7978846
  %v3617 = vmul.f32 %v3585, 0.7978846
  %v3618 = vmul.f32 %v3586, 0.7978846
  %v3619 = vmul.f32 %v3587, 0.7978846
  %v3620 = vmul.f32 %v3588, 0.7978846
  %v3621 = vmul.f32 %v3589, 0.7978846
  %v3622 = vmul.f32 %v3590, 0.7978846
  %v3623 = vmul.f32 %v3591, 0.7978846
  %v3624 = vmul.f32 %v3592, 0.7978846
  %v3625 = vmul.f32 %v3593, 0.7978846
  %v3626 = vmul.f32 %v3594, 0.7978846
  %v3627 = vmul.f32 %v3595, 0.7978846
  %v3628 = vmul.f32 %v3596, 0.7978846
  %v3629 = vmul.f32 %v3597, 0.7978846
  %v3630 = vmul.f32 %v3598, 0.7978846
  %v3631 = vmul.f32 %v3599, 0.7978846
  %v3632 = vmul.f32 %v3600, 0.7978846
  %v3633 = vmul.f32 %v3601, 0.7978846
  %v3634 = vmul.f32 %v3602, 0.7978846
  %v3635 = vmul.f32 %v3603, 0.7978846
  %v3636 = vmul.f32 %v3604, 0.7978846
  %v3637 = vmul.f32 %v3605, 0.7978846
  %v3638 = vtanh.pop %v3606
  %v3639 = vtanh.pop %v3607
  %v3640 = vtanh.pop %v3608
  %v3641 = vtanh.pop %v3609
  %v3642 = vtanh.pop %v3610
  %v3643 = vtanh.pop %v3611
  %v3644 = vtanh.pop %v3612
  %v3645 = vtanh.pop %v3613
  %v3646 = vtanh.pop %v3614
  %v3647 = vtanh.pop %v3615
  %v3648 = vtanh.pop %v3616
  %v3649 = vtanh.pop %v3617
  %v3650 = vtanh.pop %v3618
  %v3651 = vtanh.pop %v3619
  %v3652 = vtanh.pop %v3620
  %v3653 = vtanh.pop %v3621
  %v3654 = vtanh.pop %v3622
  %v3655 = vtanh.pop %v3623
  %v3656 = vtanh.pop %v3624
  %v3657 = vtanh.pop %v3625
  %v3658 = vtanh.pop %v3626
  %v3659 = vtanh.pop %v3627
  %v3660 = vtanh.pop %v3628
  %v3661 = vtanh.pop %v3629
  %v3662 = vtanh.pop %v3630
  %v3663 = vtanh.pop %v3631
  %v3664 = vtanh.pop %v3632
  %v3665 = vtanh.pop %v3633
  %v3666 = vtanh.pop %v3634
  %v3667 = vtanh.pop %v3635
  %v3668 = vtanh.pop %v3636
  %v3669 = vtanh.pop %v3637
  %v3670 = vadd.f32 %v3638, 1.0
  %v3671 = vadd.f32 %v3639, 1.0
  %v3672 = vadd.f32 %v3640, 1.0
  %v3673 = vadd.f32 %v3641, 1.0
  %v3674 = vadd.f32 %v3642, 1.0
  %v3675 = vadd.f32 %v3643, 1.0
  %v3676 = vadd.f32 %v3644, 1.0
  %v3677 = vadd.f32 %v3645, 1.0
  %v3678 = vadd.f32 %v3646, 1.0
  %v3679 = vadd.f32 %v3647, 1.0
  %v3680 = vadd.f32 %v3648, 1.0
  %v3681 = vadd.f32 %v3649, 1.0
  %v3682 = vadd.f32 %v3650, 1.0
  %v3683 = vadd.f32 %v3651, 1.0
  %v3684 = vadd.f32 %v3652, 1.0
  %v3685 = vadd.f32 %v3653, 1.0
  %v3686 = vadd.f32 %v3654, 1.0
  %v3687 = vadd.f32 %v3655, 1.0
  %v3688 = vadd.f32 %v3656, 1.0
  %v3689 = vadd.f32 %v3657, 1.0
  %v3690 = vadd.f32 %v3658, 1.0
  %v3691 = vadd.f32 %v3659, 1.0
  %v3692 = vadd.f32 %v3660, 1.0
  %v3693 = vadd.f32 %v3661, 1.0
  %v3694 = vadd.f32 %v3662, 1.0
  %v3695 = vadd.f32 %v3663, 1.0
  %v3696 = vadd.f32 %v3664, 1.0
  %v3697 = vadd.f32 %v3665, 1.0
  %v3698 = vadd.f32 %v3666, 1.0
  %v3699 = vadd.f32 %v3667, 1.0
  %v3700 = vadd.f32 %v3668, 1.0
  %v3701 = vadd.f32 %v3669, 1.0
  %v3702 = vmul.f32 %v3446, %v3670
  %v3703 = vmul.f32 %v3447, %v3671
  %v3704 = vmul.f32 %v3448, %v3672
  %v3705 = vmul.f32 %v3449, %v3673
  %v3706 = vmul.f32 %v3450, %v3674
  %v3707 = vmul.f32 %v3451, %v3675
  %v3708 = vmul.f32 %v3452, %v3676
  %v3709 = vmul.f32 %v3453, %v3677
  %v3710 = vmul.f32 %v3454, %v3678
  %v3711 = vmul.f32 %v3455, %v3679
  %v3712 = vmul.f32 %v3456, %v3680
  %v3713 = vmul.f32 %v3457, %v3681
  %v3714 = vmul.f32 %v3458, %v3682
  %v3715 = vmul.f32 %v3459, %v3683
  %v3716 = vmul.f32 %v3460, %v3684
  %v3717 = vmul.f32 %v3461, %v3685
  %v3718 = vmul.f32 %v3462, %v3686
  %v3719 = vmul.f32 %v3463, %v3687
  %v3720 = vmul.f32 %v3464, %v3688
  %v3721 = vmul.f32 %v3465, %v3689
  %v3722 = vmul.f32 %v3466, %v3690
  %v3723 = vmul.f32 %v3467, %v3691
  %v3724 = vmul.f32 %v3468, %v3692
  %v3725 = vmul.f32 %v3469, %v3693
  %v3726 = vmul.f32 %v3470, %v3694
  %v3727 = vmul.f32 %v3471, %v3695
  %v3728 = vmul.f32 %v3472, %v3696
  %v3729 = vmul.f32 %v3473, %v3697
  %v3730 = vmul.f32 %v3474, %v3698
  %v3731 = vmul.f32 %v3475, %v3699
  %v3732 = vmul.f32 %v3476, %v3700
  %v3733 = vmul.f32 %v3477, %v3701
  %v3734 = vpack.c.bf16 %v3704, %v3702
  %v3735 = vpack.c.bf16 %v3705, %v3703
  %v3736 = vpack.c.bf16 %v3708, %v3706
  %v3737 = vpack.c.bf16 %v3709, %v3707
  %v3738 = vpack.c.bf16 %v3712, %v3710
  %v3739 = vpack.c.bf16 %v3713, %v3711
  %v3740 = vpack.c.bf16 %v3716, %v3714
  %v3741 = vpack.c.bf16 %v3717, %v3715
  %v3742 = vpack.c.bf16 %v3720, %v3718
  %v3743 = vpack.c.bf16 %v3721, %v3719
  %v3744 = vpack.c.bf16 %v3724, %v3722
  %v3745 = vpack.c.bf16 %v3725, %v3723
  %v3746 = vpack.c.bf16 %v3728, %v3726
  %v3747 = vpack.c.bf16 %v3729, %v3727
  %v3748 = vpack.c.bf16 %v3732, %v3730
  %v3749 = vpack.c.bf16 %v3733, %v3731
  %v3750 = vld [vmem:[%s10] sm:$0xff]
  %v3751 = vld [vmem:[%s10 + $0x8] sm:$0xff]
  %v3752 = vld [vmem:[%s10 + $0x10] sm:$0xff]
  %v3753 = vld [vmem:[%s10 + $0x18] sm:$0xff]
  %v3754 = vld [vmem:[%s10 + $0x20] sm:$0xff]
  %v3755 = vld [vmem:[%s10 + $0x28] sm:$0xff]
  %v3756 = vld [vmem:[%s10 + $0x30] sm:$0xff]
  %v3757 = vld [vmem:[%s10 + $0x38] sm:$0xff]
  %v3758 = vld [vmem:[%s10 + $0x40] sm:$0xff]
  %v3759 = vld [vmem:[%s10 + $0x48] sm:$0xff]
  %v3760 = vld [vmem:[%s10 + $0x50] sm:$0xff]
  %v3761 = vld [vmem:[%s10 + $0x58] sm:$0xff]
  %v3762 = vld [vmem:[%s10 + $0x60] sm:$0xff]
  %v3763 = vld [vmem:[%s10 + $0x68] sm:$0xff]
  %v3764 = vld [vmem:[%s10 + $0x70] sm:$0xff]
  %v3765 = vld [vmem:[%s10 + $0x78] sm:$0xff]
  %v3766 = vld [vmem:[%s10 + $0x80] sm:$0xff]
  %v3767 = vld [vmem:[%s10 + $0x88] sm:$0xff]
  %v3768 = vld [vmem:[%s10 + $0x90] sm:$0xff]
  %v3769 = vld [vmem:[%s10 + $0x98] sm:$0xff]
  %v3770 = vld [vmem:[%s10 + $0xa0] sm:$0xff]
  %v3771 = vld [vmem:[%s10 + $0xa8] sm:$0xff]
  %v3772 = vld [vmem:[%s10 + $0xb0] sm:$0xff]
  %v3773 = vld [vmem:[%s10 + $0xb8] sm:$0xff]
  %v3774 = vld [vmem:[%s10 + $0xc0] sm:$0xff]
  %v3775 = vld [vmem:[%s10 + $0xc8] sm:$0xff]
  %v3776 = vld [vmem:[%s10 + $0xd0] sm:$0xff]
  %v3777 = vld [vmem:[%s10 + $0xd8] sm:$0xff]
  %v3778 = vld [vmem:[%s10 + $0xe0] sm:$0xff]
  %v3779 = vld [vmem:[%s10 + $0xe8] sm:$0xff]
  %v3780 = vld [vmem:[%s10 + $0xf0] sm:$0xff]
  %v3781 = vld [vmem:[%s10 + $0xf8] sm:$0xff]
  %v3782 = vpack.c.bf16 %v3751, %v3750
  %v3783 = vpack.c.bf16 %v3753, %v3752
  %v3784 = vpack.c.bf16 %v3755, %v3754
  %v3785 = vpack.c.bf16 %v3757, %v3756
  %v3786 = vpack.c.bf16 %v3759, %v3758
  %v3787 = vpack.c.bf16 %v3761, %v3760
  %v3788 = vpack.c.bf16 %v3763, %v3762
  %v3789 = vpack.c.bf16 %v3765, %v3764
  %v3790 = vpack.c.bf16 %v3767, %v3766
  %v3791 = vpack.c.bf16 %v3769, %v3768
  %v3792 = vpack.c.bf16 %v3771, %v3770
  %v3793 = vpack.c.bf16 %v3773, %v3772
  %v3794 = vpack.c.bf16 %v3775, %v3774
  %v3795 = vpack.c.bf16 %v3777, %v3776
  %v3796 = vpack.c.bf16 %v3779, %v3778
  %v3797 = vpack.c.bf16 %v3781, %v3780
  %v3798 = vld [vmem:[%s11] sm:$0x1]
  %v3800 = vlaneseq
  %v3801 = vshrl.u32 %v3800, 7
  %v3802 = vsub.s32 0, %v3801
  %v3803 = vrot.slane %v3798, %v3802
  %3805 = vmatprep.subr.bf16.mxu0 0
  %3806 = vmatpush1.bf16.msra.mxu0 %v3782
  %3807 = vmatprep.subr.bf16.mxu0 0
  %3808 = vmatpush1.bf16.msra.mxu0 %v3783
  %3809 = vmatprep.subr.bf16.mxu0 0
  %3810 = vmatpush1.bf16.msra.mxu0 %v3784
  %3811 = vmatprep.subr.bf16.mxu0 0
  %3812 = vmatpush1.bf16.msra.mxu0 %v3785
  %3813 = vmatprep.subr.bf16.mxu0 0
  %3814 = vmatpush1.bf16.msra.mxu0 %v3786
  %3815 = vmatprep.subr.bf16.mxu0 0
  %3816 = vmatpush1.bf16.msra.mxu0 %v3787
  %3817 = vmatprep.subr.bf16.mxu0 0
  %3818 = vmatpush1.bf16.msra.mxu0 %v3788
  %3819 = vmatprep.subr.bf16.mxu0 0
  %3820 = vmatpush1.bf16.msra.mxu0 %v3789
  %3821 = vmatprep.subr.bf16.mxu0 0
  %3822 = vmatpush1.bf16.msra.mxu0 %v3790
  %3823 = vmatprep.subr.bf16.mxu0 0
  %3824 = vmatpush1.bf16.msra.mxu0 %v3791
  %3825 = vmatprep.subr.bf16.mxu0 0
  %3826 = vmatpush1.bf16.msra.mxu0 %v3792
  %3827 = vmatprep.subr.bf16.mxu0 0
  %3828 = vmatpush1.bf16.msra.mxu0 %v3793
  %3829 = vmatprep.subr.bf16.mxu0 0
  %3830 = vmatpush1.bf16.msra.mxu0 %v3794
  %3831 = vmatprep.subr.bf16.mxu0 0
  %3832 = vmatpush1.bf16.msra.mxu0 %v3795
  %3833 = vmatprep.subr.bf16.mxu0 0
  %3834 = vmatpush1.bf16.msra.mxu0 %v3796
  %3835 = vmatprep.subr.bf16.mxu0 0
  %3836 = vmatpush1.bf16.msra.mxu0 %v3797
  %3837 = vmatprep.mubr.bf16.mxu0 %v3735
  %3838 = vmatmul.mubr.bf16.gmra.mrb[0].mxu0 %v3734
  %v3839 = vpop.f32.mrb[0].mxu0
  %v3840 = vadd.f32 %v3803, %v3839
  %v3841 = vpop.f32.mrb[0].mxu0
  %v3842 = vpop.f32.mrb[0].mxu0
  %v3843 = vadd.f32 %v3803, %v3842
  %v3844 = vpop.f32.mrb[0].mxu0
  %3845 = vmatprep.mubr.bf16.mxu0 %v3737
  %3846 = vmatmul.mubr.bf16.gmra.mrb[0].mxu0 %v3736
  %v3847 = vpop.f32.mrb[0].mxu0
  %v3848 = vadd.f32 %v3803, %v3847
  %v3849 = vpop.f32.mrb[0].mxu0
  %v3850 = vpop.f32.mrb[0].mxu0
  %v3851 = vadd.f32 %v3803, %v3850
  %v3852 = vpop.f32.mrb[0].mxu0
  %3853 = vmatprep.mubr.bf16.mxu0 %v3739
  %3854 = vmatmul.mubr.bf16.gmra.mrb[0].mxu0 %v3738
  %v3855 = vpop.f32.mrb[0].mxu0
  %v3856 = vadd.f32 %v3803, %v3855
  %v3857 = vpop.f32.mrb[0].mxu0
  %v3858 = vpop.f32.mrb[0].mxu0
  %v3859 = vadd.f32 %v3803, %v3858
  %v3860 = vpop.f32.mrb[0].mxu0
  %3861 = vmatprep.mubr.bf16.mxu0 %v3741
  %3862 = vmatmul.mubr.bf16.gmra.mrb[0].mxu0 %v3740
  %v3863 = vpop.f32.mrb[0].mxu0
  %v3864 = vadd.f32 %v3803, %v3863
  %v3865 = vpop.f32.mrb[0].mxu0
  %v3866 = vpop.f32.mrb[0].mxu0
  %v3867 = vadd.f32 %v3803, %v3866
  %v3868 = vpop.f32.mrb[0].mxu0
  %3869 = vmatprep.mubr.bf16.mxu0 %v3743
  %3870 = vmatmul.mubr.bf16.gmra.mrb[0].mxu0 %v3742
  %v3871 = vpop.f32.mrb[0].mxu0
  %v3872 = vadd.f32 %v3803, %v3871
  %v3873 = vpop.f32.mrb[0].mxu0
  %v3874 = vpop.f32.mrb[0].mxu0
  %v3875 = vadd.f32 %v3803, %v3874
  %v3876 = vpop.f32.mrb[0].mxu0
  %3877 = vmatprep.mubr.bf16.mxu0 %v3745
  %3878 = vmatmul.mubr.bf16.gmra.mrb[0].mxu0 %v3744
  %v3879 = vpop.f32.mrb[0].mxu0
  %v3880 = vadd.f32 %v3803, %v3879
  %v3881 = vpop.f32.mrb[0].mxu0
  %v3882 = vpop.f32.mrb[0].mxu0
  %v3883 = vadd.f32 %v3803, %v3882
  %v3884 = vpop.f32.mrb[0].mxu0
  %3885 = vmatprep.mubr.bf16.mxu0 %v3747
  %3886 = vmatmul.mubr.bf16.gmra.mrb[0].mxu0 %v3746
  %v3887 = vpop.f32.mrb[0].mxu0
  %v3888 = vadd.f32 %v3803, %v3887
  %v3889 = vpop.f32.mrb[0].mxu0
  %v3890 = vpop.f32.mrb[0].mxu0
  %v3891 = vadd.f32 %v3803, %v3890
  %v3892 = vpop.f32.mrb[0].mxu0
  %3893 = vmatprep.mubr.bf16.mxu0 %v3749
  %3894 = vmatmul.mubr.bf16.gmra.mrb[0].mxu0 %v3748
  %v3895 = vpop.f32.mrb[0].mxu0
  %v3896 = vadd.f32 %v3803, %v3895
  %v3897 = vpop.f32.mrb[0].mxu0
  %v3898 = vpop.f32.mrb[0].mxu0
  %v3899 = vadd.f32 %v3803, %v3898
  %v3900 = vpop.f32.mrb[0].mxu0
  %3901 = vdwg.mxu0
  %v3902 = vadd.f32 %v2994, %v3840
  %v3903 = vadd.f32 %v2995, %v3843
  %v3904 = vadd.f32 %v2996, %v3848
  %v3905 = vadd.f32 %v2997, %v3851
  %v3906 = vadd.f32 %v2998, %v3856
  %v3907 = vadd.f32 %v2999, %v3859
  %v3908 = vadd.f32 %v3000, %v3864
  %v3909 = vadd.f32 %v3001, %v3867
  %v3910 = vadd.f32 %v3002, %v3872
  %v3911 = vadd.f32 %v3003, %v3875
  %v3912 = vadd.f32 %v3004, %v3880
  %v3913 = vadd.f32 %v3005, %v3883
  %v3914 = vadd.f32 %v3006, %v3888
  %v3915 = vadd.f32 %v3007, %v3891
  %v3916 = vadd.f32 %v3008, %v3896
  %v3917 = vadd.f32 %v3009, %v3899
  %3918 = vst.msk [vmem:[%s12] sm:$0xff] %vm1595, %v3902
  %3919 = vst.msk [vmem:[%s12 + $0x8] sm:$0xff] %vm1595, %v3903
  %3920 = vst.msk [vmem:[%s12 + $0x10] sm:$0xff] %vm1595, %v3904
  %3921 = vst.msk [vmem:[%s12 + $0x18] sm:$0xff] %vm1595, %v3905
  %3922 = vst.msk [vmem:[%s12 + $0x20] sm:$0xff] %vm1595, %v3906
  %3923 = vst.msk [vmem:[%s12 + $0x28] sm:$0xff] %vm1595, %v3907
  %3924 = vst.msk [vmem:[%s12 + $0x30] sm:$0xff] %vm1595, %v3908
  %3925 = vst.msk [vmem:[%s12 + $0x38] sm:$0xff] %vm1595, %v3909
  %3926 = vst.msk [vmem:[%s12 + $0x40] sm:$0xff] %vm1595, %v3910
  %3927 = vst.msk [vmem:[%s12 + $0x48] sm:$0xff] %vm1595, %v3911
  %3928 = vst.msk [vmem:[%s12 + $0x50] sm:$0xff] %vm1595, %v3912
  %3929 = vst.msk [vmem:[%s12 + $0x58] sm:$0xff] %vm1595, %v3913
  %3930 = vst.msk [vmem:[%s12 + $0x60] sm:$0xff] %vm1595, %v3914
  %3931 = vst.msk [vmem:[%s12 + $0x68] sm:$0xff] %vm1595, %v3915
  %3932 = vst.msk [vmem:[%s12 + $0x70] sm:$0xff] %vm1595, %v3916
  %3933 = vst.msk [vmem:[%s12 + $0x78] sm:$0xff] %vm1595, %v3917
  // Predicated region
  $region50: #{multi_scale_block.3} parent=0 // pred_check
    _
  $region51: #{multi_scale_block.3} parent=0 // pred_check_branch
    %3935 = sbr.rel (0) target = $region53
  $region52: #{multi_scale_block.3} parent=0 // pred_region
    _
  $region53: #{multi_scale_block.3} parent=0 // pred_fallthru
    _
  // Predicated region
  $region54: #{multi_scale_block.3} parent=0 // pred_check
    _
  $region55: #{multi_scale_block.3} parent=0 // pred_check_branch
    %3937 = sbr.rel (0) target = $region57
  $region56: #{multi_scale_block.3} parent=0 // pred_region
    _
  $region57: #{multi_scale_block.3} parent=0 // pred_fallthru
    _

</llo_original>
